<compile_context>
chip_gen: v7x
topology: tpu7x:2x2x1
jax: 0.10.0
libtpu: 0.0.40
codegen_flags: <defaults>
</compile_context>

<pallas_src>
import functools

import jax
import jax.numpy as jnp
from jax import lax
from jax.experimental import pallas as pl
from jax.experimental.pallas import tpu as pltpu  # noqa: F401  (no TPU-specific primitives needed)

KSIZE = 3        # convolution kernel size used by the module (convolution_kernel=3)
CH_ALIGN = 16    # channel padding multiple (one full bf16 sublane tile)


def _round_up(v, m):
    return (v + m - 1) // m * m


def _ilog2(v):
    assert v > 0 and v & (v - 1) == 0
    return v.bit_length() - 1


# ---------------------------------------------------------------------------
# In-kernel helpers.  Pure functions of VMEM-resident values; they use only
# unit-stride slices, concatenates, iota/compare and matmuls, so they lower
# robustly with Mosaic.
# ---------------------------------------------------------------------------
def _shift_lanes(x, s):
    """out[:, p] = x[:, p + s], zero-filled where p + s is out of range."""
    if s == 0:
        return x
    c, l = x.shape
    z = jnp.zeros((c, abs(s)), x.dtype)
    if s > 0:
        return jnp.concatenate([x[:, s:], z], axis=1)
    return jnp.concatenate([z, x[:, :l + s]], axis=1)


def _boundary_masks(h, w, n_images, dtype):
    """Per-tap boundary masks of shape (1, n*h*w); None where no mask is needed."""
    hw = h * w
    l = n_images * hw
    p = lax.broadcasted_iota(jnp.int32, (1, l), 1)
    p_loc = p & (hw - 1)                 # position within one image (hw is a power of 2)
    col = p_loc & (w - 1)
    row = p_loc >> _ilog2(w)
    row_ok = {0: row >= 1, 1: None, 2: row <= h - 2}
    col_ok = {0: col >= 1, 1: None, 2: col <= w - 2}
    masks = {}
    for dy in range(KSIZE):
        for dx in range(KSIZE):
            parts = [m for m in (row_ok[dy], col_ok[dx]) if m is not None]
            if not parts:
                masks[(dy, dx)] = None
            elif len(parts) == 1:
                masks[(dy, dx)] = parts[0].astype(dtype)
            else:
                masks[(dy, dx)] = jnp.logical_and(*parts).astype(dtype)
    return masks


def _tap(x, dy, dx, w, masks):
    """im2col tap (dy, dx): x shifted by (dy-1, dx-1) rows/cols, boundary-zeroed."""
    t = _shift_lanes(x, (dy - 1) * w + (dx - 1))
    m = masks[(dy, dx)]
    return t if m is None else t * m


def _downsample_matrix(h, w, n_images):
    """(n*h*w, n*(h/2)*(w/2)) 0/1 bf16 matrix: stride-2 spatial subsampling done
    on the MXU instead of with lane shuffles."""
    hw, ho, wo = h * w, h // 2, w // 2
    hwo = ho * wo
    li, lo = n_images * hw, n_images * hwo
    p = lax.broadcasted_iota(jnp.int32, (li, lo), 0)
    q = lax.broadcasted_iota(jnp.int32, (li, lo), 1)
    img = q >> _ilog2(hwo)
    ql = q & (hwo - 1)
    src = img * hw + 2 * (ql >> _ilog2(wo)) * w + 2 * (ql & (wo - 1))
    return (p == src).astype(jnp.bfloat16)


def _upsample_matrices(h, w, n_images):
    """Four (n*h*w, n*2h*2w) 0/1 bf16 placement matrices for the sub-pixel phases
    (pa, pb) in [(0,0), (0,1), (1,0), (1,1)]:  out[2a+pa, 2b+pb] = phase[a, b]."""
    hw, wo = h * w, 2 * w
    hwo = 4 * hw
    li, lo = n_images * hw, n_images * hwo
    p = lax.broadcasted_iota(jnp.int32, (li, lo), 0)
    q = lax.broadcasted_iota(jnp.int32, (li, lo), 1)
    img = p >> _ilog2(hw)
    p_loc = p & (hw - 1)
    base = img * hwo + 2 * (p_loc >> _ilog2(w)) * wo + 2 * (p_loc & (w - 1))
    return [(q == base + pa * wo + pb).astype(jnp.bfloat16)
            for pa in (0, 1) for pb in (0, 1)]


# ---------------------------------------------------------------------------
# The fused kernel: the whole network forward for the whole (folded) batch.
# ---------------------------------------------------------------------------
def _fused_kernel(x_ref, w_ref, s_ref, o_ref, *, plan, n_images):
    x = x_ref[...]                               # (C_pad, n*H*W) bf16, stays in VMEM
    mask_cache = {}
    skip = None

    def masks_for(h, w):
        if (h, w) not in mask_cache:
            mask_cache[(h, w)] = _boundary_masks(h, w, n_images, x.dtype)
        return mask_cache[(h, w)]

    for e in plan:
        if e["kind"] == "skip":
            skip = x
            continue

        h, w = e["hw"]
        cout = e["cout"]
        shift = s_ref[:cout, e["scol"]:e["scol"] + 1]               # (Cout, 1) f32
        masks = masks_for(h, w)

        if e["kind"] == "conv":
            taps = [_tap(x, dy, dx, w, masks)
                    for dy in range(KSIZE) for dx in range(KSIZE)]
            patches = jnp.concatenate(taps, axis=0)                 # (9*Cin_pad, L) bf16
            wmat = w_ref[e["row"]:e["row"] + cout, :patches.shape[0]]
            y = jnp.dot(wmat, patches, preferred_element_type=jnp.float32) + shift
            if e["residual"]:
                y = y + skip.astype(jnp.float32)
            if e["relu"]:
                y = jnp.maximum(y, 0.0)
            if e["stride"] == 2:                                    # subsample via MXU
                y = jnp.dot(y.astype(jnp.bfloat16),
                            _downsample_matrix(h, w, n_images),
                            preferred_element_type=jnp.float32)
        else:  # "deconv": stride-2 transposed conv via 4 sub-pixel phase matmuls
            t01 = _tap(x, 1, 2, w, masks)                           # x[a, b+1]
            t10 = _tap(x, 2, 1, w, masks)                           # x[a+1, b]
            t11 = _tap(x, 2, 2, w, masks)                           # x[a+1, b+1]
            phase_patches = (x,
                             jnp.concatenate([x, t01], axis=0),
                             jnp.concatenate([x, t10], axis=0),
                             jnp.concatenate([x, t01, t10, t11], axis=0))
            y = None
            row = e["row"]
            for patches, place in zip(phase_patches, _upsample_matrices(h, w, n_images)):
                wmat = w_ref[row:row + cout, :patches.shape[0]]
                row += cout
                yp = jnp.dot(wmat, patches, preferred_element_type=jnp.float32) + shift
                if e["relu"]:
                    yp = jnp.maximum(yp, 0.0)
                contrib = jnp.dot(yp.astype(jnp.bfloat16), place,
                                  preferred_element_type=jnp.float32)
                y = contrib if y is None else y + contrib

        if e["last"]:
            o_ref[...] = y                                          # lane-dense f32 store
        else:
            x = y.astype(jnp.bfloat16)


# ---------------------------------------------------------------------------
# Parameter construction (deterministic, BN eval-mode folded).
# ---------------------------------------------------------------------------
def _fold_bn(bias, gamma, beta, mean, var, eps=1e-5):
    scale = gamma / jnp.sqrt(var + eps)
    shift = (bias - mean) * scale + beta
    return scale, shift


def _init_conv_params(key, k, cin, cout):
    # Weight stored as (k, k, cin, cout).  For decoder (ConvTranspose2d) layers it is
    # the transposed-conv kernel w_t[ci, co, ky, kx] reordered to (ky, kx, ci, co).
    # TODO(synk): loading real PyTorch weights requires the layout transposes
    #             Conv2d (cout,cin,kh,kw)->(kh,kw,cin,cout) and
    #             ConvTranspose2d (cin,cout,kh,kw)->(kh,kw,cin,cout).
    wkey, bkey = jax.random.split(key)
    std = (2.0 / (k * k * cin)) ** 0.5
    w = jax.random.normal(wkey, (k, k, cin, cout), jnp.float32) * std
    b = jax.random.normal(bkey, (cout,), jnp.float32) * 0.01
    gamma = jnp.ones((cout,), jnp.float32)
    beta = jnp.zeros((cout,), jnp.float32)
    mean = jnp.zeros((cout,), jnp.float32)
    var = jnp.ones((cout,), jnp.float32)
    scale, shift = _fold_bn(b, gamma, beta, mean, var)
    return dict(w=w, scale=scale, shift=shift)


def make_encoder_decoder_resnet_params(key, input_channels, output_channels,
                                       encoding_channels, decoding_channels,
                                       nb_residual_blocks, kernel=KSIZE):
    n_layers = 2 + len(encoding_channels) + 2 * nb_residual_blocks + len(decoding_channels)
    keys = iter(jax.random.split(key, n_layers))
    params = {}
    params["initial"] = _init_conv_params(next(keys), kernel, input_channels,
                                          encoding_channels[0])
    prev = encoding_channels[0]
    params["encoders"] = []
    for cur in encoding_channels:
        params["encoders"].append(_init_conv_params(next(keys), kernel, prev, cur))
        prev = cur
    params["residuals"] = []
    for _ in range(nb_residual_blocks):
        params["residuals"].append(dict(
            block1=_init_conv_params(next(keys), kernel, prev, prev),
            block2=_init_conv_params(next(keys), kernel, prev, prev)))
    params["decoders"] = []
    for cur in decoding_channels:
        params["decoders"].append(_init_conv_params(next(keys), kernel, prev, cur))
        prev = cur
    params["out"] = _init_conv_params(next(keys), kernel, prev, output_channels)
    return params


# ---------------------------------------------------------------------------
# Host-side plan / parameter-bank construction.
# ---------------------------------------------------------------------------
def _build_plan_and_banks(params, input_channels, h, w):
    plan = []
    wblocks = []     # (Cout_pad, K_i) f32 weight blocks (BN scale folded in)
    shifts = []      # (CH_ALIGN,) f32 per-layer shift vectors (one bank column each)
    row = 0
    cur_h, cur_w = h, w
    prev_real = input_channels

    def scaled_w(p):
        return p["w"] * p["scale"].reshape(1, 1, 1, -1)

    def add_shift(p, cout_real):
        shifts.append(jnp.pad(p["shift"], (0, CH_ALIGN - cout_real)))
        return len(shifts) - 1

    def add_conv(p, *, relu, stride, residual=False, last=False):
        nonlocal row, cur_h, cur_w, prev_real
        cin_real, cout_real = prev_real, p["w"].shape[3]
        cin_pad = _round_up(cin_real, CH_ALIGN)
        cout_pad = _round_up(cout_real, CH_ALIGN)
        w4 = jnp.pad(scaled_w(p), ((0, 0), (0, 0),
                                   (0, cin_pad - cin_real), (0, cout_pad - cout_real)))
        # column order (dy, dx, ci) matches the tap concatenation in the kernel
        wblocks.append(jnp.transpose(w4, (3, 0, 1, 2)).reshape(cout_pad, -1))
        plan.append(dict(kind="conv", hw=(cur_h, cur_w), cout=cout_pad, row=row,
                         scol=add_shift(p, cout_real), relu=relu, stride=stride,
                         residual=residual, last=last))
        row += cout_pad
        prev_real = cout_real
        if stride == 2:
            cur_h //= 2
            cur_w //= 2

    def add_deconv(p, *, relu=True):
        nonlocal row, cur_h, cur_w, prev_real
        cin_real, cout_real = prev_real, p["w"].shape[3]
        cin_pad = _round_up(cin_real, CH_ALIGN)
        cout_pad = _round_up(cout_real, CH_ALIGN)
        ws = scaled_w(p)

        def wt(ky, kx):                                    # (Cout_pad, Cin_pad)
            m = jnp.pad(ws[ky, kx], ((0, cin_pad - cin_real), (0, cout_pad - cout_real)))
            return m.T

        # Sub-pixel phase weights for ConvTranspose2d(stride=2, padding=1,
        # output_padding=1); column blocks match the kernel's phase patches:
        #   ee: [x]            eo: [x, x[a,b+1]]
        #   oe: [x, x[a+1,b]]  oo: [x, x[a,b+1], x[a+1,b], x[a+1,b+1]]
        wblocks.append(wt(1, 1))
        wblocks.append(jnp.concatenate([wt(1, 2), wt(1, 0)], axis=1))
        wblocks.append(jnp.concatenate([wt(2, 1), wt(0, 1)], axis=1))
        wblocks.append(jnp.concatenate([wt(2, 2), wt(2, 0), wt(0, 2), wt(0, 0)], axis=1))
        plan.append(dict(kind="deconv", hw=(cur_h, cur_w), cout=cout_pad, row=row,
                         scol=add_shift(p, cout_real), relu=relu, stride=2,
                         residual=False, last=False))
        row += 4 * cout_pad
        prev_real = cout_real
        cur_h *= 2
        cur_w *= 2

    add_conv(params["initial"], relu=True, stride=1)
    for enc in params["encoders"]:
        add_conv(enc, relu=True, stride=2)
    for res in params["residuals"]:
        # TODO(synk): assumes BlockRes = (Conv-BN-ReLU -> Conv-BN) + identity with no
        #             activation after the addition.
        plan.append(dict(kind="skip"))
        add_conv(res["block1"], relu=True, stride=1)
        add_conv(res["block2"], relu=False, stride=1, residual=True)
    for dec in params["decoders"]:
        add_deconv(dec, relu=True)
    add_conv(params["out"], relu=False, stride=1, last=True)

    kmax = max(b.shape[1] for b in wblocks)
    wbank = jnp.concatenate(
        [jnp.pad(b, ((0, 0), (0, kmax - b.shape[1]))) for b in wblocks], axis=0)
    pad_rows = _round_up(wbank.shape[0], 8) - wbank.shape[0]
    if pad_rows:
        wbank = jnp.pad(wbank, ((0, pad_rows), (0, 0)))
    sbank = jnp.stack(shifts, axis=1)                       # (CH_ALIGN, n_layers)
    return (plan, wbank.astype(jnp.bfloat16), sbank.astype(jnp.float32),
            plan[-1]["cout"], (cur_h, cur_w))


# ---------------------------------------------------------------------------
# Forward pass (mirrors EncoderDecoderResnet.forward; NCHW in / NCHW out).
# ---------------------------------------------------------------------------
def encoder_decoder_resnet_forward(x_nchw, params):
    n, cin, h, w = x_nchw.shape
    assert h & (h - 1) == 0 and w & (w - 1) == 0 and min(h, w) >= 4, \
        "power-of-two spatial sizes required"
    # TODO(synk): non-power-of-two spatial sizes would need div/mod-based masks.

    plan, wbank, sbank, out_cpad, (oh, ow) = _build_plan_and_banks(params, cin, h, w)

    # Lane-dense (C_pad, n*H*W) bf16 activation layout; batch folded into lanes so
    # the whole forward is a single grid-less pallas_call.
    # TODO(synk): for large batches on v7x, add a batch grid axis marked "parallel"
    #             so both TensorCores are used.
    cin_pad = _round_up(cin, CH_ALIGN)
    x2d = jnp.transpose(x_nchw, (1, 0, 2, 3)).reshape(cin, n * h * w)
    x2d = jnp.pad(x2d, ((0, cin_pad - cin), (0, 0))).astype(jnp.bfloat16)

    out = pl.pallas_call(
        functools.partial(_fused_kernel, plan=plan, n_images=n),
        out_shape=jax.ShapeDtypeStruct((out_cpad, n * oh * ow), jnp.float32),
    )(x2d, wbank, sbank)

    cout = params["out"]["w"].shape[3]
    out = out.reshape(out_cpad, n, oh, ow)[:cout]
    return jnp.transpose(out, (1, 0, 2, 3))                 # -> NCHW


# ---------------------------------------------------------------------------
# Pure-JAX f32 reference (lax convolutions) used only for validation.
# ---------------------------------------------------------------------------
def _reference_forward(x, params):
    dn = ("NCHW", "OIHW", "NCHW")

    def affine(y, p):
        return y * p["scale"].reshape(1, -1, 1, 1) + p["shift"].reshape(1, -1, 1, 1)

    def conv_bn(x, p, *, stride, relu):
        w_oihw = jnp.transpose(p["w"], (3, 2, 0, 1))
        y = lax.conv_general_dilated(x, w_oihw, (stride, stride), ((1, 1), (1, 1)),
                                     dimension_numbers=dn)
        y = affine(y, p)
        return jnp.maximum(y, 0.0) if relu else y

    def deconv_bn(x, p, *, relu):
        # ConvTranspose2d(stride=2, padding=1, output_padding=1) == stride-1 conv of
        # the 2x-dilated input with the spatially flipped, in/out-swapped kernel.
        w_oihw = jnp.transpose(jnp.flip(p["w"], axis=(0, 1)), (3, 2, 0, 1))
        y = lax.conv_general_dilated(x, w_oihw, (1, 1), ((1, 2), (1, 2)),
                                     lhs_dilation=(2, 2), dimension_numbers=dn)
        y = affine(y, p)
        return jnp.maximum(y, 0.0) if relu else y

    x = conv_bn(x, params["initial"], stride=1, relu=True)
    for enc in params["encoders"]:
        x = conv_bn(x, enc, stride=2, relu=True)
    for res in params["residuals"]:
        r = x
        y = conv_bn(x, res["block1"], stride=1, relu=True)
        x = conv_bn(y, res["block2"], stride=1, relu=False) + r
    for dec in params["decoders"]:
        x = deconv_bn(x, dec, relu=True)
    return conv_bn(x, params["out"], stride=1, relu=False)


# ---------------------------------------------------------------------------
if __name__ == "__main__":
    # Config: dimensionality=2, input_channels=4, output_channels=3,
    # encoding_channels=[8, 16], decoding_channels=[16, 8], nb_residual_blocks=2.
    key = jax.random.PRNGKey(0)
    pkey, xkey = jax.random.split(key)

    params = make_encoder_decoder_resnet_params(
        pkey,
        input_channels=4,
        output_channels=3,
        encoding_channels=[8, 16],
        decoding_channels=[16, 8],
        nb_residual_blocks=2,
    )

    x = jax.random.normal(xkey, (2, 4, 16, 16), jnp.float32)    # NCHW, like PyTorch

    fwd = jax.jit(encoder_decoder_resnet_forward)
    out = jax.block_until_ready(fwd(x, params))

    assert out.shape == (2, 3, 16, 16), out.shape
    assert out.dtype == jnp.float32
    assert bool(jnp.all(jnp.isfinite(out)))

    # Validate against the f32 lax reference (kernel uses bf16 activations/weights,
    # so allow a small tolerance).
    ref = _reference_forward(x, params)
    err = float(jnp.max(jnp.abs(out - ref)))
    ref_mag = float(jnp.max(jnp.abs(ref)))
    assert err <= 0.1 * ref_mag + 1e-2, (err, ref_mag)

    # TODO(synk): BatchNorm training-mode (batch statistics) is not implemented;
    #             eval-mode running-stats semantics are folded into scale/shift.
    print("KERNEL_OK")
</pallas_src>

<mosaic_0001>
module attributes {stable_mosaic.version = 11 : i64} {
  func.func @_fused_kernel(%arg0: memref<16x512xbf16, #tpu.memory_space<vmem>>, %arg1: memref<256x144xbf16, #tpu.memory_space<vmem>>, %arg2: memref<16x10xf32, #tpu.memory_space<vmem>>, %arg3: memref<16x512xf32, #tpu.memory_space<vmem>>) attributes {dimension_semantics = [], scalar_prefetch = 0 : i64, scratch_operands = 0 : i64, tpu.core_type = #tpu.core_type<tc>} {
    %c0 = arith.constant 0 : index
    %c0_0 = arith.constant 0 : index
    %0 = vector.load %arg0[%c0, %c0_0] : memref<16x512xbf16, #tpu.memory_space<vmem>>, vector<16x512xbf16>
    %c0_1 = arith.constant 0 : index
    %c0_2 = arith.constant 0 : index
    %1 = vector.load %arg2[%c0_1, %c0_2] : memref<16x10xf32, #tpu.memory_space<vmem>>, vector<16x1xf32>
    %2 = tpu.iota {dimensions = array<i32: 1>} : vector<1x512xi32>
    %c255_i32 = arith.constant 255 : i32
    %3 = vector.broadcast %c255_i32 : i32 to vector<1x512xi32>
    %4 = arith.andi %2, %3 : vector<1x512xi32>
    %c15_i32 = arith.constant 15 : i32
    %5 = vector.broadcast %c15_i32 : i32 to vector<1x512xi32>
    %6 = arith.andi %4, %5 : vector<1x512xi32>
    %c4_i32 = arith.constant 4 : i32
    %7 = vector.broadcast %c4_i32 : i32 to vector<1x512xi32>
    %8 = arith.shrsi %4, %7 : vector<1x512xi32>
    %c1_i32 = arith.constant 1 : i32
    %9 = vector.broadcast %c1_i32 : i32 to vector<1x512xi32>
    %10 = arith.cmpi sge, %8, %9 : vector<1x512xi32>
    %c14_i32 = arith.constant 14 : i32
    %11 = vector.broadcast %c14_i32 : i32 to vector<1x512xi32>
    %12 = arith.cmpi sle, %8, %11 : vector<1x512xi32>
    %c1_i32_3 = arith.constant 1 : i32
    %13 = vector.broadcast %c1_i32_3 : i32 to vector<1x512xi32>
    %14 = arith.cmpi sge, %6, %13 : vector<1x512xi32>
    %c14_i32_4 = arith.constant 14 : i32
    %15 = vector.broadcast %c14_i32_4 : i32 to vector<1x512xi32>
    %16 = arith.cmpi sle, %6, %15 : vector<1x512xi32>
    %17 = arith.andi %10, %14 : vector<1x512xi1>
    %18 = arith.extui %17 : vector<1x512xi1> to vector<1x512xi32>
    %19 = arith.sitofp %18 : vector<1x512xi32> to vector<1x512xf32>
    %20 = arith.truncf %19 : vector<1x512xf32> to vector<1x512xbf16>
    %21 = arith.extui %10 : vector<1x512xi1> to vector<1x512xi32>
    %22 = arith.sitofp %21 : vector<1x512xi32> to vector<1x512xf32>
    %23 = arith.truncf %22 : vector<1x512xf32> to vector<1x512xbf16>
    %24 = arith.andi %10, %16 : vector<1x512xi1>
    %25 = arith.extui %24 : vector<1x512xi1> to vector<1x512xi32>
    %26 = arith.sitofp %25 : vector<1x512xi32> to vector<1x512xf32>
    %27 = arith.truncf %26 : vector<1x512xf32> to vector<1x512xbf16>
    %28 = arith.extui %14 : vector<1x512xi1> to vector<1x512xi32>
    %29 = arith.sitofp %28 : vector<1x512xi32> to vector<1x512xf32>
    %30 = arith.truncf %29 : vector<1x512xf32> to vector<1x512xbf16>
    %31 = arith.extui %16 : vector<1x512xi1> to vector<1x512xi32>
    %32 = arith.sitofp %31 : vector<1x512xi32> to vector<1x512xf32>
    %33 = arith.truncf %32 : vector<1x512xf32> to vector<1x512xbf16>
    %34 = arith.andi %12, %14 : vector<1x512xi1>
    %35 = arith.extui %34 : vector<1x512xi1> to vector<1x512xi32>
    %36 = arith.sitofp %35 : vector<1x512xi32> to vector<1x512xf32>
    %37 = arith.truncf %36 : vector<1x512xf32> to vector<1x512xbf16>
    %38 = arith.extui %12 : vector<1x512xi1> to vector<1x512xi32>
    %39 = arith.sitofp %38 : vector<1x512xi32> to vector<1x512xf32>
    %40 = arith.truncf %39 : vector<1x512xf32> to vector<1x512xbf16>
    %41 = arith.andi %12, %16 : vector<1x512xi1>
    %42 = arith.extui %41 : vector<1x512xi1> to vector<1x512xi32>
    %43 = arith.sitofp %42 : vector<1x512xi32> to vector<1x512xf32>
    %44 = arith.truncf %43 : vector<1x512xf32> to vector<1x512xbf16>
    %cst = arith.constant 0.000000e+00 : bf16
    %45 = vector.broadcast %cst : bf16 to vector<16x17xbf16>
    %46 = vector.extract_strided_slice %0 {offsets = [0, 0], sizes = [16, 495], strides = [1, 1]} : vector<16x512xbf16> to vector<16x495xbf16>
    %47 = tpu.concatenate %45, %46 in 1 : vector<16x17xbf16>, vector<16x495xbf16> -> vector<16x512xbf16>
    %48 = vector.broadcast %20 : vector<1x512xbf16> to vector<16x512xbf16>
    %49 = arith.mulf %47, %48 : vector<16x512xbf16>
    %cst_5 = arith.constant 0.000000e+00 : bf16
    %50 = vector.broadcast %cst_5 : bf16 to vector<16x16xbf16>
    %51 = vector.extract_strided_slice %0 {offsets = [0, 0], sizes = [16, 496], strides = [1, 1]} : vector<16x512xbf16> to vector<16x496xbf16>
    %52 = tpu.concatenate %50, %51 in 1 : vector<16x16xbf16>, vector<16x496xbf16> -> vector<16x512xbf16>
    %53 = vector.broadcast %23 : vector<1x512xbf16> to vector<16x512xbf16>
    %54 = arith.mulf %52, %53 : vector<16x512xbf16>
    %cst_6 = arith.constant 0.000000e+00 : bf16
    %55 = vector.broadcast %cst_6 : bf16 to vector<16x15xbf16>
    %56 = vector.extract_strided_slice %0 {offsets = [0, 0], sizes = [16, 497], strides = [1, 1]} : vector<16x512xbf16> to vector<16x497xbf16>
    %57 = tpu.concatenate %55, %56 in 1 : vector<16x15xbf16>, vector<16x497xbf16> -> vector<16x512xbf16>
    %58 = vector.broadcast %27 : vector<1x512xbf16> to vector<16x512xbf16>
    %59 = arith.mulf %57, %58 : vector<16x512xbf16>
    %cst_7 = arith.constant 0.000000e+00 : bf16
    %60 = vector.broadcast %cst_7 : bf16 to vector<16x1xbf16>
    %61 = vector.extract_strided_slice %0 {offsets = [0, 0], sizes = [16, 511], strides = [1, 1]} : vector<16x512xbf16> to vector<16x511xbf16>
    %62 = tpu.concatenate %60, %61 in 1 : vector<16x1xbf16>, vector<16x511xbf16> -> vector<16x512xbf16>
    %63 = vector.broadcast %30 : vector<1x512xbf16> to vector<16x512xbf16>
    %64 = arith.mulf %62, %63 : vector<16x512xbf16>
    %cst_8 = arith.constant 0.000000e+00 : bf16
    %65 = vector.broadcast %cst_8 : bf16 to vector<16x1xbf16>
    %66 = vector.extract_strided_slice %0 {offsets = [0, 1], sizes = [16, 511], strides = [1, 1]} : vector<16x512xbf16> to vector<16x511xbf16>
    %67 = tpu.concatenate %66, %65 in 1 : vector<16x511xbf16>, vector<16x1xbf16> -> vector<16x512xbf16>
    %68 = vector.broadcast %33 : vector<1x512xbf16> to vector<16x512xbf16>
    %69 = arith.mulf %67, %68 : vector<16x512xbf16>
    %cst_9 = arith.constant 0.000000e+00 : bf16
    %70 = vector.broadcast %cst_9 : bf16 to vector<16x15xbf16>
    %71 = vector.extract_strided_slice %0 {offsets = [0, 15], sizes = [16, 497], strides = [1, 1]} : vector<16x512xbf16> to vector<16x497xbf16>
    %72 = tpu.concatenate %71, %70 in 1 : vector<16x497xbf16>, vector<16x15xbf16> -> vector<16x512xbf16>
    %73 = vector.broadcast %37 : vector<1x512xbf16> to vector<16x512xbf16>
    %74 = arith.mulf %72, %73 : vector<16x512xbf16>
    %cst_10 = arith.constant 0.000000e+00 : bf16
    %75 = vector.broadcast %cst_10 : bf16 to vector<16x16xbf16>
    %76 = vector.extract_strided_slice %0 {offsets = [0, 16], sizes = [16, 496], strides = [1, 1]} : vector<16x512xbf16> to vector<16x496xbf16>
    %77 = tpu.concatenate %76, %75 in 1 : vector<16x496xbf16>, vector<16x16xbf16> -> vector<16x512xbf16>
    %78 = vector.broadcast %40 : vector<1x512xbf16> to vector<16x512xbf16>
    %79 = arith.mulf %77, %78 : vector<16x512xbf16>
    %cst_11 = arith.constant 0.000000e+00 : bf16
    %80 = vector.broadcast %cst_11 : bf16 to vector<16x17xbf16>
    %81 = vector.extract_strided_slice %0 {offsets = [0, 17], sizes = [16, 495], strides = [1, 1]} : vector<16x512xbf16> to vector<16x495xbf16>
    %82 = tpu.concatenate %81, %80 in 1 : vector<16x495xbf16>, vector<16x17xbf16> -> vector<16x512xbf16>
    %83 = vector.broadcast %44 : vector<1x512xbf16> to vector<16x512xbf16>
    %84 = arith.mulf %82, %83 : vector<16x512xbf16>
    %85 = tpu.concatenate %49, %54, %59, %64, %0, %69, %74, %79, %84 in 0 : vector<16x512xbf16>, vector<16x512xbf16>, vector<16x512xbf16>, vector<16x512xbf16>, vector<16x512xbf16>, vector<16x512xbf16>, vector<16x512xbf16>, vector<16x512xbf16>, vector<16x512xbf16> -> vector<144x512xbf16>
    %c0_12 = arith.constant 0 : index
    %c0_13 = arith.constant 0 : index
    %86 = vector.load %arg1[%c0_12, %c0_13] : memref<256x144xbf16, #tpu.memory_space<vmem>>, vector<16x144xbf16>
    %cst_14 = arith.constant dense<0.000000e+00> : vector<16x512xf32>
    %87 = tpu.matmul %86, %85, %cst_14 {dimension_numbers = #tpu.dot_dimension_numbers<[1], [0], [0], [1], [0, 0, 1, 1], [], []>} : vector<16x144xbf16>, vector<144x512xbf16>, vector<16x512xf32> -> vector<16x512xf32>
    %88 = vector.broadcast %1 : vector<16x1xf32> to vector<16x512xf32>
    %89 = arith.addf %87, %88 : vector<16x512xf32>
    %cst_15 = arith.constant 0.000000e+00 : f32
    %90 = vector.broadcast %cst_15 : f32 to vector<16x512xf32>
    %91 = arith.maximumf %89, %90 : vector<16x512xf32>
    %92 = arith.truncf %91 : vector<16x512xf32> to vector<16x512xbf16>
    %c0_16 = arith.constant 0 : index
    %c1 = arith.constant 1 : index
    %93 = vector.load %arg2[%c0_16, %c1] : memref<16x10xf32, #tpu.memory_space<vmem>>, vector<16x1xf32>
    %cst_17 = arith.constant 0.000000e+00 : bf16
    %94 = vector.broadcast %cst_17 : bf16 to vector<16x17xbf16>
    %95 = vector.extract_strided_slice %92 {offsets = [0, 0], sizes = [16, 495], strides = [1, 1]} : vector<16x512xbf16> to vector<16x495xbf16>
    %96 = tpu.concatenate %94, %95 in 1 : vector<16x17xbf16>, vector<16x495xbf16> -> vector<16x512xbf16>
    %97 = vector.broadcast %20 : vector<1x512xbf16> to vector<16x512xbf16>
    %98 = arith.mulf %96, %97 : vector<16x512xbf16>
    %cst_18 = arith.constant 0.000000e+00 : bf16
    %99 = vector.broadcast %cst_18 : bf16 to vector<16x16xbf16>
    %100 = vector.extract_strided_slice %92 {offsets = [0, 0], sizes = [16, 496], strides = [1, 1]} : vector<16x512xbf16> to vector<16x496xbf16>
    %101 = tpu.concatenate %99, %100 in 1 : vector<16x16xbf16>, vector<16x496xbf16> -> vector<16x512xbf16>
    %102 = vector.broadcast %23 : vector<1x512xbf16> to vector<16x512xbf16>
    %103 = arith.mulf %101, %102 : vector<16x512xbf16>
    %cst_19 = arith.constant 0.000000e+00 : bf16
    %104 = vector.broadcast %cst_19 : bf16 to vector<16x15xbf16>
    %105 = vector.extract_strided_slice %92 {offsets = [0, 0], sizes = [16, 497], strides = [1, 1]} : vector<16x512xbf16> to vector<16x497xbf16>
    %106 = tpu.concatenate %104, %105 in 1 : vector<16x15xbf16>, vector<16x497xbf16> -> vector<16x512xbf16>
    %107 = vector.broadcast %27 : vector<1x512xbf16> to vector<16x512xbf16>
    %108 = arith.mulf %106, %107 : vector<16x512xbf16>
    %cst_20 = arith.constant 0.000000e+00 : bf16
    %109 = vector.broadcast %cst_20 : bf16 to vector<16x1xbf16>
    %110 = vector.extract_strided_slice %92 {offsets = [0, 0], sizes = [16, 511], strides = [1, 1]} : vector<16x512xbf16> to vector<16x511xbf16>
    %111 = tpu.concatenate %109, %110 in 1 : vector<16x1xbf16>, vector<16x511xbf16> -> vector<16x512xbf16>
    %112 = vector.broadcast %30 : vector<1x512xbf16> to vector<16x512xbf16>
    %113 = arith.mulf %111, %112 : vector<16x512xbf16>
    %cst_21 = arith.constant 0.000000e+00 : bf16
    %114 = vector.broadcast %cst_21 : bf16 to vector<16x1xbf16>
    %115 = vector.extract_strided_slice %92 {offsets = [0, 1], sizes = [16, 511], strides = [1, 1]} : vector<16x512xbf16> to vector<16x511xbf16>
    %116 = tpu.concatenate %115, %114 in 1 : vector<16x511xbf16>, vector<16x1xbf16> -> vector<16x512xbf16>
    %117 = vector.broadcast %33 : vector<1x512xbf16> to vector<16x512xbf16>
    %118 = arith.mulf %116, %117 : vector<16x512xbf16>
    %cst_22 = arith.constant 0.000000e+00 : bf16
    %119 = vector.broadcast %cst_22 : bf16 to vector<16x15xbf16>
    %120 = vector.extract_strided_slice %92 {offsets = [0, 15], sizes = [16, 497], strides = [1, 1]} : vector<16x512xbf16> to vector<16x497xbf16>
    %121 = tpu.concatenate %120, %119 in 1 : vector<16x497xbf16>, vector<16x15xbf16> -> vector<16x512xbf16>
    %122 = vector.broadcast %37 : vector<1x512xbf16> to vector<16x512xbf16>
    %123 = arith.mulf %121, %122 : vector<16x512xbf16>
    %cst_23 = arith.constant 0.000000e+00 : bf16
    %124 = vector.broadcast %cst_23 : bf16 to vector<16x16xbf16>
    %125 = vector.extract_strided_slice %92 {offsets = [0, 16], sizes = [16, 496], strides = [1, 1]} : vector<16x512xbf16> to vector<16x496xbf16>
    %126 = tpu.concatenate %125, %124 in 1 : vector<16x496xbf16>, vector<16x16xbf16> -> vector<16x512xbf16>
    %127 = vector.broadcast %40 : vector<1x512xbf16> to vector<16x512xbf16>
    %128 = arith.mulf %126, %127 : vector<16x512xbf16>
    %cst_24 = arith.constant 0.000000e+00 : bf16
    %129 = vector.broadcast %cst_24 : bf16 to vector<16x17xbf16>
    %130 = vector.extract_strided_slice %92 {offsets = [0, 17], sizes = [16, 495], strides = [1, 1]} : vector<16x512xbf16> to vector<16x495xbf16>
    %131 = tpu.concatenate %130, %129 in 1 : vector<16x495xbf16>, vector<16x17xbf16> -> vector<16x512xbf16>
    %132 = vector.broadcast %44 : vector<1x512xbf16> to vector<16x512xbf16>
    %133 = arith.mulf %131, %132 : vector<16x512xbf16>
    %134 = tpu.concatenate %98, %103, %108, %113, %92, %118, %123, %128, %133 in 0 : vector<16x512xbf16>, vector<16x512xbf16>, vector<16x512xbf16>, vector<16x512xbf16>, vector<16x512xbf16>, vector<16x512xbf16>, vector<16x512xbf16>, vector<16x512xbf16>, vector<16x512xbf16> -> vector<144x512xbf16>
    %c16 = arith.constant 16 : index
    %c0_25 = arith.constant 0 : index
    %135 = vector.load %arg1[%c16, %c0_25] : memref<256x144xbf16, #tpu.memory_space<vmem>>, vector<16x144xbf16>
    %cst_26 = arith.constant dense<0.000000e+00> : vector<16x512xf32>
    %136 = tpu.matmul %135, %134, %cst_26 {dimension_numbers = #tpu.dot_dimension_numbers<[1], [0], [0], [1], [0, 0, 1, 1], [], []>} : vector<16x144xbf16>, vector<144x512xbf16>, vector<16x512xf32> -> vector<16x512xf32>
    %137 = vector.broadcast %93 : vector<16x1xf32> to vector<16x512xf32>
    %138 = arith.addf %136, %137 : vector<16x512xf32>
    %cst_27 = arith.constant 0.000000e+00 : f32
    %139 = vector.broadcast %cst_27 : f32 to vector<16x512xf32>
    %140 = arith.maximumf %138, %139 : vector<16x512xf32>
    %141 = arith.truncf %140 : vector<16x512xf32> to vector<16x512xbf16>
    %142 = tpu.iota {dimensions = array<i32: 0>} : vector<512x128xi32>
    %143 = tpu.iota {dimensions = array<i32: 1>} : vector<512x128xi32>
    %c6_i32 = arith.constant 6 : i32
    %144 = vector.broadcast %c6_i32 : i32 to vector<512x128xi32>
    %145 = arith.shrsi %143, %144 : vector<512x128xi32>
    %c63_i32 = arith.constant 63 : i32
    %146 = vector.broadcast %c63_i32 : i32 to vector<512x128xi32>
    %147 = arith.andi %143, %146 : vector<512x128xi32>
    %c256_i32 = arith.constant 256 : i32
    %148 = vector.broadcast %c256_i32 : i32 to vector<512x128xi32>
    %149 = arith.muli %145, %148 : vector<512x128xi32>
    %c3_i32 = arith.constant 3 : i32
    %150 = vector.broadcast %c3_i32 : i32 to vector<512x128xi32>
    %151 = arith.shrsi %147, %150 : vector<512x128xi32>
    %c2_i32 = arith.constant 2 : i32
    %152 = vector.broadcast %c2_i32 : i32 to vector<512x128xi32>
    %153 = arith.muli %152, %151 : vector<512x128xi32>
    %c16_i32 = arith.constant 16 : i32
    %154 = vector.broadcast %c16_i32 : i32 to vector<512x128xi32>
    %155 = arith.muli %153, %154 : vector<512x128xi32>
    %156 = arith.addi %149, %155 : vector<512x128xi32>
    %c7_i32 = arith.constant 7 : i32
    %157 = vector.broadcast %c7_i32 : i32 to vector<512x128xi32>
    %158 = arith.andi %147, %157 : vector<512x128xi32>
    %c2_i32_28 = arith.constant 2 : i32
    %159 = vector.broadcast %c2_i32_28 : i32 to vector<512x128xi32>
    %160 = arith.muli %159, %158 : vector<512x128xi32>
    %161 = arith.addi %156, %160 : vector<512x128xi32>
    %162 = arith.cmpi eq, %142, %161 : vector<512x128xi32>
    %163 = arith.extui %162 : vector<512x128xi1> to vector<512x128xi32>
    %164 = arith.sitofp %163 : vector<512x128xi32> to vector<512x128xf32>
    %165 = arith.truncf %164 : vector<512x128xf32> to vector<512x128xbf16>
    %cst_29 = arith.constant dense<0.000000e+00> : vector<16x128xf32>
    %166 = tpu.matmul %141, %165, %cst_29 {dimension_numbers = #tpu.dot_dimension_numbers<[1], [0], [0], [1], [0, 0, 1, 1], [], []>} : vector<16x512xbf16>, vector<512x128xbf16>, vector<16x128xf32> -> vector<16x128xf32>
    %167 = arith.truncf %166 : vector<16x128xf32> to vector<16x128xbf16>
    %c0_30 = arith.constant 0 : index
    %c2 = arith.constant 2 : index
    %168 = vector.load %arg2[%c0_30, %c2] : memref<16x10xf32, #tpu.memory_space<vmem>>, vector<16x1xf32>
    %169 = tpu.iota {dimensions = array<i32: 1>} : vector<1x128xi32>
    %c63_i32_31 = arith.constant 63 : i32
    %170 = vector.broadcast %c63_i32_31 : i32 to vector<1x128xi32>
    %171 = arith.andi %169, %170 : vector<1x128xi32>
    %c7_i32_32 = arith.constant 7 : i32
    %172 = vector.broadcast %c7_i32_32 : i32 to vector<1x128xi32>
    %173 = arith.andi %171, %172 : vector<1x128xi32>
    %c3_i32_33 = arith.constant 3 : i32
    %174 = vector.broadcast %c3_i32_33 : i32 to vector<1x128xi32>
    %175 = arith.shrsi %171, %174 : vector<1x128xi32>
    %c1_i32_34 = arith.constant 1 : i32
    %176 = vector.broadcast %c1_i32_34 : i32 to vector<1x128xi32>
    %177 = arith.cmpi sge, %175, %176 : vector<1x128xi32>
    %c6_i32_35 = arith.constant 6 : i32
    %178 = vector.broadcast %c6_i32_35 : i32 to vector<1x128xi32>
    %179 = arith.cmpi sle, %175, %178 : vector<1x128xi32>
    %c1_i32_36 = arith.constant 1 : i32
    %180 = vector.broadcast %c1_i32_36 : i32 to vector<1x128xi32>
    %181 = arith.cmpi sge, %173, %180 : vector<1x128xi32>
    %c6_i32_37 = arith.constant 6 : i32
    %182 = vector.broadcast %c6_i32_37 : i32 to vector<1x128xi32>
    %183 = arith.cmpi sle, %173, %182 : vector<1x128xi32>
    %184 = arith.andi %177, %181 : vector<1x128xi1>
    %185 = arith.extui %184 : vector<1x128xi1> to vector<1x128xi32>
    %186 = arith.sitofp %185 : vector<1x128xi32> to vector<1x128xf32>
    %187 = arith.truncf %186 : vector<1x128xf32> to vector<1x128xbf16>
    %188 = arith.extui %177 : vector<1x128xi1> to vector<1x128xi32>
    %189 = arith.sitofp %188 : vector<1x128xi32> to vector<1x128xf32>
    %190 = arith.truncf %189 : vector<1x128xf32> to vector<1x128xbf16>
    %191 = arith.andi %177, %183 : vector<1x128xi1>
    %192 = arith.extui %191 : vector<1x128xi1> to vector<1x128xi32>
    %193 = arith.sitofp %192 : vector<1x128xi32> to vector<1x128xf32>
    %194 = arith.truncf %193 : vector<1x128xf32> to vector<1x128xbf16>
    %195 = arith.extui %181 : vector<1x128xi1> to vector<1x128xi32>
    %196 = arith.sitofp %195 : vector<1x128xi32> to vector<1x128xf32>
    %197 = arith.truncf %196 : vector<1x128xf32> to vector<1x128xbf16>
    %198 = arith.extui %183 : vector<1x128xi1> to vector<1x128xi32>
    %199 = arith.sitofp %198 : vector<1x128xi32> to vector<1x128xf32>
    %200 = arith.truncf %199 : vector<1x128xf32> to vector<1x128xbf16>
    %201 = arith.andi %179, %181 : vector<1x128xi1>
    %202 = arith.extui %201 : vector<1x128xi1> to vector<1x128xi32>
    %203 = arith.sitofp %202 : vector<1x128xi32> to vector<1x128xf32>
    %204 = arith.truncf %203 : vector<1x128xf32> to vector<1x128xbf16>
    %205 = arith.extui %179 : vector<1x128xi1> to vector<1x128xi32>
    %206 = arith.sitofp %205 : vector<1x128xi32> to vector<1x128xf32>
    %207 = arith.truncf %206 : vector<1x128xf32> to vector<1x128xbf16>
    %208 = arith.andi %179, %183 : vector<1x128xi1>
    %209 = arith.extui %208 : vector<1x128xi1> to vector<1x128xi32>
    %210 = arith.sitofp %209 : vector<1x128xi32> to vector<1x128xf32>
    %211 = arith.truncf %210 : vector<1x128xf32> to vector<1x128xbf16>
    %cst_38 = arith.constant 0.000000e+00 : bf16
    %212 = vector.broadcast %cst_38 : bf16 to vector<16x9xbf16>
    %213 = vector.extract_strided_slice %167 {offsets = [0, 0], sizes = [16, 119], strides = [1, 1]} : vector<16x128xbf16> to vector<16x119xbf16>
    %214 = tpu.concatenate %212, %213 in 1 : vector<16x9xbf16>, vector<16x119xbf16> -> vector<16x128xbf16>
    %215 = vector.broadcast %187 : vector<1x128xbf16> to vector<16x128xbf16>
    %216 = arith.mulf %214, %215 : vector<16x128xbf16>
    %cst_39 = arith.constant 0.000000e+00 : bf16
    %217 = vector.broadcast %cst_39 : bf16 to vector<16x8xbf16>
    %218 = vector.extract_strided_slice %167 {offsets = [0, 0], sizes = [16, 120], strides = [1, 1]} : vector<16x128xbf16> to vector<16x120xbf16>
    %219 = tpu.concatenate %217, %218 in 1 : vector<16x8xbf16>, vector<16x120xbf16> -> vector<16x128xbf16>
    %220 = vector.broadcast %190 : vector<1x128xbf16> to vector<16x128xbf16>
    %221 = arith.mulf %219, %220 : vector<16x128xbf16>
    %cst_40 = arith.constant 0.000000e+00 : bf16
    %222 = vector.broadcast %cst_40 : bf16 to vector<16x7xbf16>
    %223 = vector.extract_strided_slice %167 {offsets = [0, 0], sizes = [16, 121], strides = [1, 1]} : vector<16x128xbf16> to vector<16x121xbf16>
    %224 = tpu.concatenate %222, %223 in 1 : vector<16x7xbf16>, vector<16x121xbf16> -> vector<16x128xbf16>
    %225 = vector.broadcast %194 : vector<1x128xbf16> to vector<16x128xbf16>
    %226 = arith.mulf %224, %225 : vector<16x128xbf16>
    %cst_41 = arith.constant 0.000000e+00 : bf16
    %227 = vector.broadcast %cst_41 : bf16 to vector<16x1xbf16>
    %228 = vector.extract_strided_slice %167 {offsets = [0, 0], sizes = [16, 127], strides = [1, 1]} : vector<16x128xbf16> to vector<16x127xbf16>
    %229 = tpu.concatenate %227, %228 in 1 : vector<16x1xbf16>, vector<16x127xbf16> -> vector<16x128xbf16>
    %230 = vector.broadcast %197 : vector<1x128xbf16> to vector<16x128xbf16>
    %231 = arith.mulf %229, %230 : vector<16x128xbf16>
    %cst_42 = arith.constant 0.000000e+00 : bf16
    %232 = vector.broadcast %cst_42 : bf16 to vector<16x1xbf16>
    %233 = vector.extract_strided_slice %167 {offsets = [0, 1], sizes = [16, 127], strides = [1, 1]} : vector<16x128xbf16> to vector<16x127xbf16>
    %234 = tpu.concatenate %233, %232 in 1 : vector<16x127xbf16>, vector<16x1xbf16> -> vector<16x128xbf16>
    %235 = vector.broadcast %200 : vector<1x128xbf16> to vector<16x128xbf16>
    %236 = arith.mulf %234, %235 : vector<16x128xbf16>
    %cst_43 = arith.constant 0.000000e+00 : bf16
    %237 = vector.broadcast %cst_43 : bf16 to vector<16x7xbf16>
    %238 = vector.extract_strided_slice %167 {offsets = [0, 7], sizes = [16, 121], strides = [1, 1]} : vector<16x128xbf16> to vector<16x121xbf16>
    %239 = tpu.concatenate %238, %237 in 1 : vector<16x121xbf16>, vector<16x7xbf16> -> vector<16x128xbf16>
    %240 = vector.broadcast %204 : vector<1x128xbf16> to vector<16x128xbf16>
    %241 = arith.mulf %239, %240 : vector<16x128xbf16>
    %cst_44 = arith.constant 0.000000e+00 : bf16
    %242 = vector.broadcast %cst_44 : bf16 to vector<16x8xbf16>
    %243 = vector.extract_strided_slice %167 {offsets = [0, 8], sizes = [16, 120], strides = [1, 1]} : vector<16x128xbf16> to vector<16x120xbf16>
    %244 = tpu.concatenate %243, %242 in 1 : vector<16x120xbf16>, vector<16x8xbf16> -> vector<16x128xbf16>
    %245 = vector.broadcast %207 : vector<1x128xbf16> to vector<16x128xbf16>
    %246 = arith.mulf %244, %245 : vector<16x128xbf16>
    %cst_45 = arith.constant 0.000000e+00 : bf16
    %247 = vector.broadcast %cst_45 : bf16 to vector<16x9xbf16>
    %248 = vector.extract_strided_slice %167 {offsets = [0, 9], sizes = [16, 119], strides = [1, 1]} : vector<16x128xbf16> to vector<16x119xbf16>
    %249 = tpu.concatenate %248, %247 in 1 : vector<16x119xbf16>, vector<16x9xbf16> -> vector<16x128xbf16>
    %250 = vector.broadcast %211 : vector<1x128xbf16> to vector<16x128xbf16>
    %251 = arith.mulf %249, %250 : vector<16x128xbf16>
    %252 = tpu.concatenate %216, %221, %226, %231, %167, %236, %241, %246, %251 in 0 : vector<16x128xbf16>, vector<16x128xbf16>, vector<16x128xbf16>, vector<16x128xbf16>, vector<16x128xbf16>, vector<16x128xbf16>, vector<16x128xbf16>, vector<16x128xbf16>, vector<16x128xbf16> -> vector<144x128xbf16>
    %c32 = arith.constant 32 : index
    %c0_46 = arith.constant 0 : index
    %253 = vector.load %arg1[%c32, %c0_46] : memref<256x144xbf16, #tpu.memory_space<vmem>>, vector<16x144xbf16>
    %cst_47 = arith.constant dense<0.000000e+00> : vector<16x128xf32>
    %254 = tpu.matmul %253, %252, %cst_47 {dimension_numbers = #tpu.dot_dimension_numbers<[1], [0], [0], [1], [0, 0, 1, 1], [], []>} : vector<16x144xbf16>, vector<144x128xbf16>, vector<16x128xf32> -> vector<16x128xf32>
    %255 = vector.broadcast %168 : vector<16x1xf32> to vector<16x128xf32>
    %256 = arith.addf %254, %255 : vector<16x128xf32>
    %cst_48 = arith.constant 0.000000e+00 : f32
    %257 = vector.broadcast %cst_48 : f32 to vector<16x128xf32>
    %258 = arith.maximumf %256, %257 : vector<16x128xf32>
    %259 = arith.truncf %258 : vector<16x128xf32> to vector<16x128xbf16>
    %260 = tpu.iota {dimensions = array<i32: 0>} : vector<128x32xi32>
    %261 = tpu.iota {dimensions = array<i32: 1>} : vector<128x32xi32>
    %c4_i32_49 = arith.constant 4 : i32
    %262 = vector.broadcast %c4_i32_49 : i32 to vector<128x32xi32>
    %263 = arith.shrsi %261, %262 : vector<128x32xi32>
    %c15_i32_50 = arith.constant 15 : i32
    %264 = vector.broadcast %c15_i32_50 : i32 to vector<128x32xi32>
    %265 = arith.andi %261, %264 : vector<128x32xi32>
    %c64_i32 = arith.constant 64 : i32
    %266 = vector.broadcast %c64_i32 : i32 to vector<128x32xi32>
    %267 = arith.muli %263, %266 : vector<128x32xi32>
    %c2_i32_51 = arith.constant 2 : i32
    %268 = vector.broadcast %c2_i32_51 : i32 to vector<128x32xi32>
    %269 = arith.shrsi %265, %268 : vector<128x32xi32>
    %c2_i32_52 = arith.constant 2 : i32
    %270 = vector.broadcast %c2_i32_52 : i32 to vector<128x32xi32>
    %271 = arith.muli %270, %269 : vector<128x32xi32>
    %c8_i32 = arith.constant 8 : i32
    %272 = vector.broadcast %c8_i32 : i32 to vector<128x32xi32>
    %273 = arith.muli %271, %272 : vector<128x32xi32>
    %274 = arith.addi %267, %273 : vector<128x32xi32>
    %c3_i32_53 = arith.constant 3 : i32
    %275 = vector.broadcast %c3_i32_53 : i32 to vector<128x32xi32>
    %276 = arith.andi %265, %275 : vector<128x32xi32>
    %c2_i32_54 = arith.constant 2 : i32
    %277 = vector.broadcast %c2_i32_54 : i32 to vector<128x32xi32>
    %278 = arith.muli %277, %276 : vector<128x32xi32>
    %279 = arith.addi %274, %278 : vector<128x32xi32>
    %280 = arith.cmpi eq, %260, %279 : vector<128x32xi32>
    %281 = arith.extui %280 : vector<128x32xi1> to vector<128x32xi32>
    %282 = arith.sitofp %281 : vector<128x32xi32> to vector<128x32xf32>
    %283 = arith.truncf %282 : vector<128x32xf32> to vector<128x32xbf16>
    %cst_55 = arith.constant dense<0.000000e+00> : vector<16x32xf32>
    %284 = tpu.matmul %259, %283, %cst_55 {dimension_numbers = #tpu.dot_dimension_numbers<[1], [0], [0], [1], [0, 0, 1, 1], [], []>} : vector<16x128xbf16>, vector<128x32xbf16>, vector<16x32xf32> -> vector<16x32xf32>
    %285 = arith.truncf %284 : vector<16x32xf32> to vector<16x32xbf16>
    %c0_56 = arith.constant 0 : index
    %c3 = arith.constant 3 : index
    %286 = vector.load %arg2[%c0_56, %c3] : memref<16x10xf32, #tpu.memory_space<vmem>>, vector<16x1xf32>
    %287 = tpu.iota {dimensions = array<i32: 1>} : vector<1x32xi32>
    %c15_i32_57 = arith.constant 15 : i32
    %288 = vector.broadcast %c15_i32_57 : i32 to vector<1x32xi32>
    %289 = arith.andi %287, %288 : vector<1x32xi32>
    %c3_i32_58 = arith.constant 3 : i32
    %290 = vector.broadcast %c3_i32_58 : i32 to vector<1x32xi32>
    %291 = arith.andi %289, %290 : vector<1x32xi32>
    %c2_i32_59 = arith.constant 2 : i32
    %292 = vector.broadcast %c2_i32_59 : i32 to vector<1x32xi32>
    %293 = arith.shrsi %289, %292 : vector<1x32xi32>
    %c1_i32_60 = arith.constant 1 : i32
    %294 = vector.broadcast %c1_i32_60 : i32 to vector<1x32xi32>
    %295 = arith.cmpi sge, %293, %294 : vector<1x32xi32>
    %c2_i32_61 = arith.constant 2 : i32
    %296 = vector.broadcast %c2_i32_61 : i32 to vector<1x32xi32>
    %297 = arith.cmpi sle, %293, %296 : vector<1x32xi32>
    %c1_i32_62 = arith.constant 1 : i32
    %298 = vector.broadcast %c1_i32_62 : i32 to vector<1x32xi32>
    %299 = arith.cmpi sge, %291, %298 : vector<1x32xi32>
    %c2_i32_63 = arith.constant 2 : i32
    %300 = vector.broadcast %c2_i32_63 : i32 to vector<1x32xi32>
    %301 = arith.cmpi sle, %291, %300 : vector<1x32xi32>
    %302 = arith.andi %295, %299 : vector<1x32xi1>
    %303 = arith.extui %302 : vector<1x32xi1> to vector<1x32xi32>
    %304 = arith.sitofp %303 : vector<1x32xi32> to vector<1x32xf32>
    %305 = arith.truncf %304 : vector<1x32xf32> to vector<1x32xbf16>
    %306 = arith.extui %295 : vector<1x32xi1> to vector<1x32xi32>
    %307 = arith.sitofp %306 : vector<1x32xi32> to vector<1x32xf32>
    %308 = arith.truncf %307 : vector<1x32xf32> to vector<1x32xbf16>
    %309 = arith.andi %295, %301 : vector<1x32xi1>
    %310 = arith.extui %309 : vector<1x32xi1> to vector<1x32xi32>
    %311 = arith.sitofp %310 : vector<1x32xi32> to vector<1x32xf32>
    %312 = arith.truncf %311 : vector<1x32xf32> to vector<1x32xbf16>
    %313 = arith.extui %299 : vector<1x32xi1> to vector<1x32xi32>
    %314 = arith.sitofp %313 : vector<1x32xi32> to vector<1x32xf32>
    %315 = arith.truncf %314 : vector<1x32xf32> to vector<1x32xbf16>
    %316 = arith.extui %301 : vector<1x32xi1> to vector<1x32xi32>
    %317 = arith.sitofp %316 : vector<1x32xi32> to vector<1x32xf32>
    %318 = arith.truncf %317 : vector<1x32xf32> to vector<1x32xbf16>
    %319 = arith.andi %297, %299 : vector<1x32xi1>
    %320 = arith.extui %319 : vector<1x32xi1> to vector<1x32xi32>
    %321 = arith.sitofp %320 : vector<1x32xi32> to vector<1x32xf32>
    %322 = arith.truncf %321 : vector<1x32xf32> to vector<1x32xbf16>
    %323 = arith.extui %297 : vector<1x32xi1> to vector<1x32xi32>
    %324 = arith.sitofp %323 : vector<1x32xi32> to vector<1x32xf32>
    %325 = arith.truncf %324 : vector<1x32xf32> to vector<1x32xbf16>
    %326 = arith.andi %297, %301 : vector<1x32xi1>
    %327 = arith.extui %326 : vector<1x32xi1> to vector<1x32xi32>
    %328 = arith.sitofp %327 : vector<1x32xi32> to vector<1x32xf32>
    %329 = arith.truncf %328 : vector<1x32xf32> to vector<1x32xbf16>
    %cst_64 = arith.constant 0.000000e+00 : bf16
    %330 = vector.broadcast %cst_64 : bf16 to vector<16x5xbf16>
    %331 = vector.extract_strided_slice %285 {offsets = [0, 0], sizes = [16, 27], strides = [1, 1]} : vector<16x32xbf16> to vector<16x27xbf16>
    %332 = tpu.concatenate %330, %331 in 1 : vector<16x5xbf16>, vector<16x27xbf16> -> vector<16x32xbf16>
    %333 = vector.broadcast %305 : vector<1x32xbf16> to vector<16x32xbf16>
    %334 = arith.mulf %332, %333 : vector<16x32xbf16>
    %cst_65 = arith.constant 0.000000e+00 : bf16
    %335 = vector.broadcast %cst_65 : bf16 to vector<16x4xbf16>
    %336 = vector.extract_strided_slice %285 {offsets = [0, 0], sizes = [16, 28], strides = [1, 1]} : vector<16x32xbf16> to vector<16x28xbf16>
    %337 = tpu.concatenate %335, %336 in 1 : vector<16x4xbf16>, vector<16x28xbf16> -> vector<16x32xbf16>
    %338 = vector.broadcast %308 : vector<1x32xbf16> to vector<16x32xbf16>
    %339 = arith.mulf %337, %338 : vector<16x32xbf16>
    %cst_66 = arith.constant 0.000000e+00 : bf16
    %340 = vector.broadcast %cst_66 : bf16 to vector<16x3xbf16>
    %341 = vector.extract_strided_slice %285 {offsets = [0, 0], sizes = [16, 29], strides = [1, 1]} : vector<16x32xbf16> to vector<16x29xbf16>
    %342 = tpu.concatenate %340, %341 in 1 : vector<16x3xbf16>, vector<16x29xbf16> -> vector<16x32xbf16>
    %343 = vector.broadcast %312 : vector<1x32xbf16> to vector<16x32xbf16>
    %344 = arith.mulf %342, %343 : vector<16x32xbf16>
    %cst_67 = arith.constant 0.000000e+00 : bf16
    %345 = vector.broadcast %cst_67 : bf16 to vector<16x1xbf16>
    %346 = vector.extract_strided_slice %285 {offsets = [0, 0], sizes = [16, 31], strides = [1, 1]} : vector<16x32xbf16> to vector<16x31xbf16>
    %347 = tpu.concatenate %345, %346 in 1 : vector<16x1xbf16>, vector<16x31xbf16> -> vector<16x32xbf16>
    %348 = vector.broadcast %315 : vector<1x32xbf16> to vector<16x32xbf16>
    %349 = arith.mulf %347, %348 : vector<16x32xbf16>
    %cst_68 = arith.constant 0.000000e+00 : bf16
    %350 = vector.broadcast %cst_68 : bf16 to vector<16x1xbf16>
    %351 = vector.extract_strided_slice %285 {offsets = [0, 1], sizes = [16, 31], strides = [1, 1]} : vector<16x32xbf16> to vector<16x31xbf16>
    %352 = tpu.concatenate %351, %350 in 1 : vector<16x31xbf16>, vector<16x1xbf16> -> vector<16x32xbf16>
    %353 = vector.broadcast %318 : vector<1x32xbf16> to vector<16x32xbf16>
    %354 = arith.mulf %352, %353 : vector<16x32xbf16>
    %cst_69 = arith.constant 0.000000e+00 : bf16
    %355 = vector.broadcast %cst_69 : bf16 to vector<16x3xbf16>
    %356 = vector.extract_strided_slice %285 {offsets = [0, 3], sizes = [16, 29], strides = [1, 1]} : vector<16x32xbf16> to vector<16x29xbf16>
    %357 = tpu.concatenate %356, %355 in 1 : vector<16x29xbf16>, vector<16x3xbf16> -> vector<16x32xbf16>
    %358 = vector.broadcast %322 : vector<1x32xbf16> to vector<16x32xbf16>
    %359 = arith.mulf %357, %358 : vector<16x32xbf16>
    %cst_70 = arith.constant 0.000000e+00 : bf16
    %360 = vector.broadcast %cst_70 : bf16 to vector<16x4xbf16>
    %361 = vector.extract_strided_slice %285 {offsets = [0, 4], sizes = [16, 28], strides = [1, 1]} : vector<16x32xbf16> to vector<16x28xbf16>
    %362 = tpu.concatenate %361, %360 in 1 : vector<16x28xbf16>, vector<16x4xbf16> -> vector<16x32xbf16>
    %363 = vector.broadcast %325 : vector<1x32xbf16> to vector<16x32xbf16>
    %364 = arith.mulf %362, %363 : vector<16x32xbf16>
    %cst_71 = arith.constant 0.000000e+00 : bf16
    %365 = vector.broadcast %cst_71 : bf16 to vector<16x5xbf16>
    %366 = vector.extract_strided_slice %285 {offsets = [0, 5], sizes = [16, 27], strides = [1, 1]} : vector<16x32xbf16> to vector<16x27xbf16>
    %367 = tpu.concatenate %366, %365 in 1 : vector<16x27xbf16>, vector<16x5xbf16> -> vector<16x32xbf16>
    %368 = vector.broadcast %329 : vector<1x32xbf16> to vector<16x32xbf16>
    %369 = arith.mulf %367, %368 : vector<16x32xbf16>
    %370 = tpu.concatenate %334, %339, %344, %349, %285, %354, %359, %364, %369 in 0 : vector<16x32xbf16>, vector<16x32xbf16>, vector<16x32xbf16>, vector<16x32xbf16>, vector<16x32xbf16>, vector<16x32xbf16>, vector<16x32xbf16>, vector<16x32xbf16>, vector<16x32xbf16> -> vector<144x32xbf16>
    %c48 = arith.constant 48 : index
    %c0_72 = arith.constant 0 : index
    %371 = vector.load %arg1[%c48, %c0_72] : memref<256x144xbf16, #tpu.memory_space<vmem>>, vector<16x144xbf16>
    %cst_73 = arith.constant dense<0.000000e+00> : vector<16x32xf32>
    %372 = tpu.matmul %371, %370, %cst_73 {dimension_numbers = #tpu.dot_dimension_numbers<[1], [0], [0], [1], [0, 0, 1, 1], [], []>} : vector<16x144xbf16>, vector<144x32xbf16>, vector<16x32xf32> -> vector<16x32xf32>
    %373 = vector.broadcast %286 : vector<16x1xf32> to vector<16x32xf32>
    %374 = arith.addf %372, %373 : vector<16x32xf32>
    %cst_74 = arith.constant 0.000000e+00 : f32
    %375 = vector.broadcast %cst_74 : f32 to vector<16x32xf32>
    %376 = arith.maximumf %374, %375 : vector<16x32xf32>
    %377 = arith.truncf %376 : vector<16x32xf32> to vector<16x32xbf16>
    %c0_75 = arith.constant 0 : index
    %c4 = arith.constant 4 : index
    %378 = vector.load %arg2[%c0_75, %c4] : memref<16x10xf32, #tpu.memory_space<vmem>>, vector<16x1xf32>
    %cst_76 = arith.constant 0.000000e+00 : bf16
    %379 = vector.broadcast %cst_76 : bf16 to vector<16x5xbf16>
    %380 = vector.extract_strided_slice %377 {offsets = [0, 0], sizes = [16, 27], strides = [1, 1]} : vector<16x32xbf16> to vector<16x27xbf16>
    %381 = tpu.concatenate %379, %380 in 1 : vector<16x5xbf16>, vector<16x27xbf16> -> vector<16x32xbf16>
    %382 = vector.broadcast %305 : vector<1x32xbf16> to vector<16x32xbf16>
    %383 = arith.mulf %381, %382 : vector<16x32xbf16>
    %cst_77 = arith.constant 0.000000e+00 : bf16
    %384 = vector.broadcast %cst_77 : bf16 to vector<16x4xbf16>
    %385 = vector.extract_strided_slice %377 {offsets = [0, 0], sizes = [16, 28], strides = [1, 1]} : vector<16x32xbf16> to vector<16x28xbf16>
    %386 = tpu.concatenate %384, %385 in 1 : vector<16x4xbf16>, vector<16x28xbf16> -> vector<16x32xbf16>
    %387 = vector.broadcast %308 : vector<1x32xbf16> to vector<16x32xbf16>
    %388 = arith.mulf %386, %387 : vector<16x32xbf16>
    %cst_78 = arith.constant 0.000000e+00 : bf16
    %389 = vector.broadcast %cst_78 : bf16 to vector<16x3xbf16>
    %390 = vector.extract_strided_slice %377 {offsets = [0, 0], sizes = [16, 29], strides = [1, 1]} : vector<16x32xbf16> to vector<16x29xbf16>
    %391 = tpu.concatenate %389, %390 in 1 : vector<16x3xbf16>, vector<16x29xbf16> -> vector<16x32xbf16>
    %392 = vector.broadcast %312 : vector<1x32xbf16> to vector<16x32xbf16>
    %393 = arith.mulf %391, %392 : vector<16x32xbf16>
    %cst_79 = arith.constant 0.000000e+00 : bf16
    %394 = vector.broadcast %cst_79 : bf16 to vector<16x1xbf16>
    %395 = vector.extract_strided_slice %377 {offsets = [0, 0], sizes = [16, 31], strides = [1, 1]} : vector<16x32xbf16> to vector<16x31xbf16>
    %396 = tpu.concatenate %394, %395 in 1 : vector<16x1xbf16>, vector<16x31xbf16> -> vector<16x32xbf16>
    %397 = vector.broadcast %315 : vector<1x32xbf16> to vector<16x32xbf16>
    %398 = arith.mulf %396, %397 : vector<16x32xbf16>
    %cst_80 = arith.constant 0.000000e+00 : bf16
    %399 = vector.broadcast %cst_80 : bf16 to vector<16x1xbf16>
    %400 = vector.extract_strided_slice %377 {offsets = [0, 1], sizes = [16, 31], strides = [1, 1]} : vector<16x32xbf16> to vector<16x31xbf16>
    %401 = tpu.concatenate %400, %399 in 1 : vector<16x31xbf16>, vector<16x1xbf16> -> vector<16x32xbf16>
    %402 = vector.broadcast %318 : vector<1x32xbf16> to vector<16x32xbf16>
    %403 = arith.mulf %401, %402 : vector<16x32xbf16>
    %cst_81 = arith.constant 0.000000e+00 : bf16
    %404 = vector.broadcast %cst_81 : bf16 to vector<16x3xbf16>
    %405 = vector.extract_strided_slice %377 {offsets = [0, 3], sizes = [16, 29], strides = [1, 1]} : vector<16x32xbf16> to vector<16x29xbf16>
    %406 = tpu.concatenate %405, %404 in 1 : vector<16x29xbf16>, vector<16x3xbf16> -> vector<16x32xbf16>
    %407 = vector.broadcast %322 : vector<1x32xbf16> to vector<16x32xbf16>
    %408 = arith.mulf %406, %407 : vector<16x32xbf16>
    %cst_82 = arith.constant 0.000000e+00 : bf16
    %409 = vector.broadcast %cst_82 : bf16 to vector<16x4xbf16>
    %410 = vector.extract_strided_slice %377 {offsets = [0, 4], sizes = [16, 28], strides = [1, 1]} : vector<16x32xbf16> to vector<16x28xbf16>
    %411 = tpu.concatenate %410, %409 in 1 : vector<16x28xbf16>, vector<16x4xbf16> -> vector<16x32xbf16>
    %412 = vector.broadcast %325 : vector<1x32xbf16> to vector<16x32xbf16>
    %413 = arith.mulf %411, %412 : vector<16x32xbf16>
    %cst_83 = arith.constant 0.000000e+00 : bf16
    %414 = vector.broadcast %cst_83 : bf16 to vector<16x5xbf16>
    %415 = vector.extract_strided_slice %377 {offsets = [0, 5], sizes = [16, 27], strides = [1, 1]} : vector<16x32xbf16> to vector<16x27xbf16>
    %416 = tpu.concatenate %415, %414 in 1 : vector<16x27xbf16>, vector<16x5xbf16> -> vector<16x32xbf16>
    %417 = vector.broadcast %329 : vector<1x32xbf16> to vector<16x32xbf16>
    %418 = arith.mulf %416, %417 : vector<16x32xbf16>
    %419 = tpu.concatenate %383, %388, %393, %398, %377, %403, %408, %413, %418 in 0 : vector<16x32xbf16>, vector<16x32xbf16>, vector<16x32xbf16>, vector<16x32xbf16>, vector<16x32xbf16>, vector<16x32xbf16>, vector<16x32xbf16>, vector<16x32xbf16>, vector<16x32xbf16> -> vector<144x32xbf16>
    %c64 = arith.constant 64 : index
    %c0_84 = arith.constant 0 : index
    %420 = vector.load %arg1[%c64, %c0_84] : memref<256x144xbf16, #tpu.memory_space<vmem>>, vector<16x144xbf16>
    %cst_85 = arith.constant dense<0.000000e+00> : vector<16x32xf32>
    %421 = tpu.matmul %420, %419, %cst_85 {dimension_numbers = #tpu.dot_dimension_numbers<[1], [0], [0], [1], [0, 0, 1, 1], [], []>} : vector<16x144xbf16>, vector<144x32xbf16>, vector<16x32xf32> -> vector<16x32xf32>
    %422 = vector.broadcast %378 : vector<16x1xf32> to vector<16x32xf32>
    %423 = arith.addf %421, %422 : vector<16x32xf32>
    %424 = arith.extf %285 : vector<16x32xbf16> to vector<16x32xf32>
    %425 = arith.addf %423, %424 : vector<16x32xf32>
    %426 = arith.truncf %425 : vector<16x32xf32> to vector<16x32xbf16>
    %c0_86 = arith.constant 0 : index
    %c5 = arith.constant 5 : index
    %427 = vector.load %arg2[%c0_86, %c5] : memref<16x10xf32, #tpu.memory_space<vmem>>, vector<16x1xf32>
    %cst_87 = arith.constant 0.000000e+00 : bf16
    %428 = vector.broadcast %cst_87 : bf16 to vector<16x5xbf16>
    %429 = vector.extract_strided_slice %426 {offsets = [0, 0], sizes = [16, 27], strides = [1, 1]} : vector<16x32xbf16> to vector<16x27xbf16>
    %430 = tpu.concatenate %428, %429 in 1 : vector<16x5xbf16>, vector<16x27xbf16> -> vector<16x32xbf16>
    %431 = vector.broadcast %305 : vector<1x32xbf16> to vector<16x32xbf16>
    %432 = arith.mulf %430, %431 : vector<16x32xbf16>
    %cst_88 = arith.constant 0.000000e+00 : bf16
    %433 = vector.broadcast %cst_88 : bf16 to vector<16x4xbf16>
    %434 = vector.extract_strided_slice %426 {offsets = [0, 0], sizes = [16, 28], strides = [1, 1]} : vector<16x32xbf16> to vector<16x28xbf16>
    %435 = tpu.concatenate %433, %434 in 1 : vector<16x4xbf16>, vector<16x28xbf16> -> vector<16x32xbf16>
    %436 = vector.broadcast %308 : vector<1x32xbf16> to vector<16x32xbf16>
    %437 = arith.mulf %435, %436 : vector<16x32xbf16>
    %cst_89 = arith.constant 0.000000e+00 : bf16
    %438 = vector.broadcast %cst_89 : bf16 to vector<16x3xbf16>
    %439 = vector.extract_strided_slice %426 {offsets = [0, 0], sizes = [16, 29], strides = [1, 1]} : vector<16x32xbf16> to vector<16x29xbf16>
    %440 = tpu.concatenate %438, %439 in 1 : vector<16x3xbf16>, vector<16x29xbf16> -> vector<16x32xbf16>
    %441 = vector.broadcast %312 : vector<1x32xbf16> to vector<16x32xbf16>
    %442 = arith.mulf %440, %441 : vector<16x32xbf16>
    %cst_90 = arith.constant 0.000000e+00 : bf16
    %443 = vector.broadcast %cst_90 : bf16 to vector<16x1xbf16>
    %444 = vector.extract_strided_slice %426 {offsets = [0, 0], sizes = [16, 31], strides = [1, 1]} : vector<16x32xbf16> to vector<16x31xbf16>
    %445 = tpu.concatenate %443, %444 in 1 : vector<16x1xbf16>, vector<16x31xbf16> -> vector<16x32xbf16>
    %446 = vector.broadcast %315 : vector<1x32xbf16> to vector<16x32xbf16>
    %447 = arith.mulf %445, %446 : vector<16x32xbf16>
    %cst_91 = arith.constant 0.000000e+00 : bf16
    %448 = vector.broadcast %cst_91 : bf16 to vector<16x1xbf16>
    %449 = vector.extract_strided_slice %426 {offsets = [0, 1], sizes = [16, 31], strides = [1, 1]} : vector<16x32xbf16> to vector<16x31xbf16>
    %450 = tpu.concatenate %449, %448 in 1 : vector<16x31xbf16>, vector<16x1xbf16> -> vector<16x32xbf16>
    %451 = vector.broadcast %318 : vector<1x32xbf16> to vector<16x32xbf16>
    %452 = arith.mulf %450, %451 : vector<16x32xbf16>
    %cst_92 = arith.constant 0.000000e+00 : bf16
    %453 = vector.broadcast %cst_92 : bf16 to vector<16x3xbf16>
    %454 = vector.extract_strided_slice %426 {offsets = [0, 3], sizes = [16, 29], strides = [1, 1]} : vector<16x32xbf16> to vector<16x29xbf16>
    %455 = tpu.concatenate %454, %453 in 1 : vector<16x29xbf16>, vector<16x3xbf16> -> vector<16x32xbf16>
    %456 = vector.broadcast %322 : vector<1x32xbf16> to vector<16x32xbf16>
    %457 = arith.mulf %455, %456 : vector<16x32xbf16>
    %cst_93 = arith.constant 0.000000e+00 : bf16
    %458 = vector.broadcast %cst_93 : bf16 to vector<16x4xbf16>
    %459 = vector.extract_strided_slice %426 {offsets = [0, 4], sizes = [16, 28], strides = [1, 1]} : vector<16x32xbf16> to vector<16x28xbf16>
    %460 = tpu.concatenate %459, %458 in 1 : vector<16x28xbf16>, vector<16x4xbf16> -> vector<16x32xbf16>
    %461 = vector.broadcast %325 : vector<1x32xbf16> to vector<16x32xbf16>
    %462 = arith.mulf %460, %461 : vector<16x32xbf16>
    %cst_94 = arith.constant 0.000000e+00 : bf16
    %463 = vector.broadcast %cst_94 : bf16 to vector<16x5xbf16>
    %464 = vector.extract_strided_slice %426 {offsets = [0, 5], sizes = [16, 27], strides = [1, 1]} : vector<16x32xbf16> to vector<16x27xbf16>
    %465 = tpu.concatenate %464, %463 in 1 : vector<16x27xbf16>, vector<16x5xbf16> -> vector<16x32xbf16>
    %466 = vector.broadcast %329 : vector<1x32xbf16> to vector<16x32xbf16>
    %467 = arith.mulf %465, %466 : vector<16x32xbf16>
    %468 = tpu.concatenate %432, %437, %442, %447, %426, %452, %457, %462, %467 in 0 : vector<16x32xbf16>, vector<16x32xbf16>, vector<16x32xbf16>, vector<16x32xbf16>, vector<16x32xbf16>, vector<16x32xbf16>, vector<16x32xbf16>, vector<16x32xbf16>, vector<16x32xbf16> -> vector<144x32xbf16>
    %c80 = arith.constant 80 : index
    %c0_95 = arith.constant 0 : index
    %469 = vector.load %arg1[%c80, %c0_95] : memref<256x144xbf16, #tpu.memory_space<vmem>>, vector<16x144xbf16>
    %cst_96 = arith.constant dense<0.000000e+00> : vector<16x32xf32>
    %470 = tpu.matmul %469, %468, %cst_96 {dimension_numbers = #tpu.dot_dimension_numbers<[1], [0], [0], [1], [0, 0, 1, 1], [], []>} : vector<16x144xbf16>, vector<144x32xbf16>, vector<16x32xf32> -> vector<16x32xf32>
    %471 = vector.broadcast %427 : vector<16x1xf32> to vector<16x32xf32>
    %472 = arith.addf %470, %471 : vector<16x32xf32>
    %cst_97 = arith.constant 0.000000e+00 : f32
    %473 = vector.broadcast %cst_97 : f32 to vector<16x32xf32>
    %474 = arith.maximumf %472, %473 : vector<16x32xf32>
    %475 = arith.truncf %474 : vector<16x32xf32> to vector<16x32xbf16>
    %c0_98 = arith.constant 0 : index
    %c6 = arith.constant 6 : index
    %476 = vector.load %arg2[%c0_98, %c6] : memref<16x10xf32, #tpu.memory_space<vmem>>, vector<16x1xf32>
    %cst_99 = arith.constant 0.000000e+00 : bf16
    %477 = vector.broadcast %cst_99 : bf16 to vector<16x5xbf16>
    %478 = vector.extract_strided_slice %475 {offsets = [0, 0], sizes = [16, 27], strides = [1, 1]} : vector<16x32xbf16> to vector<16x27xbf16>
    %479 = tpu.concatenate %477, %478 in 1 : vector<16x5xbf16>, vector<16x27xbf16> -> vector<16x32xbf16>
    %480 = vector.broadcast %305 : vector<1x32xbf16> to vector<16x32xbf16>
    %481 = arith.mulf %479, %480 : vector<16x32xbf16>
    %cst_100 = arith.constant 0.000000e+00 : bf16
    %482 = vector.broadcast %cst_100 : bf16 to vector<16x4xbf16>
    %483 = vector.extract_strided_slice %475 {offsets = [0, 0], sizes = [16, 28], strides = [1, 1]} : vector<16x32xbf16> to vector<16x28xbf16>
    %484 = tpu.concatenate %482, %483 in 1 : vector<16x4xbf16>, vector<16x28xbf16> -> vector<16x32xbf16>
    %485 = vector.broadcast %308 : vector<1x32xbf16> to vector<16x32xbf16>
    %486 = arith.mulf %484, %485 : vector<16x32xbf16>
    %cst_101 = arith.constant 0.000000e+00 : bf16
    %487 = vector.broadcast %cst_101 : bf16 to vector<16x3xbf16>
    %488 = vector.extract_strided_slice %475 {offsets = [0, 0], sizes = [16, 29], strides = [1, 1]} : vector<16x32xbf16> to vector<16x29xbf16>
    %489 = tpu.concatenate %487, %488 in 1 : vector<16x3xbf16>, vector<16x29xbf16> -> vector<16x32xbf16>
    %490 = vector.broadcast %312 : vector<1x32xbf16> to vector<16x32xbf16>
    %491 = arith.mulf %489, %490 : vector<16x32xbf16>
    %cst_102 = arith.constant 0.000000e+00 : bf16
    %492 = vector.broadcast %cst_102 : bf16 to vector<16x1xbf16>
    %493 = vector.extract_strided_slice %475 {offsets = [0, 0], sizes = [16, 31], strides = [1, 1]} : vector<16x32xbf16> to vector<16x31xbf16>
    %494 = tpu.concatenate %492, %493 in 1 : vector<16x1xbf16>, vector<16x31xbf16> -> vector<16x32xbf16>
    %495 = vector.broadcast %315 : vector<1x32xbf16> to vector<16x32xbf16>
    %496 = arith.mulf %494, %495 : vector<16x32xbf16>
    %cst_103 = arith.constant 0.000000e+00 : bf16
    %497 = vector.broadcast %cst_103 : bf16 to vector<16x1xbf16>
    %498 = vector.extract_strided_slice %475 {offsets = [0, 1], sizes = [16, 31], strides = [1, 1]} : vector<16x32xbf16> to vector<16x31xbf16>
    %499 = tpu.concatenate %498, %497 in 1 : vector<16x31xbf16>, vector<16x1xbf16> -> vector<16x32xbf16>
    %500 = vector.broadcast %318 : vector<1x32xbf16> to vector<16x32xbf16>
    %501 = arith.mulf %499, %500 : vector<16x32xbf16>
    %cst_104 = arith.constant 0.000000e+00 : bf16
    %502 = vector.broadcast %cst_104 : bf16 to vector<16x3xbf16>
    %503 = vector.extract_strided_slice %475 {offsets = [0, 3], sizes = [16, 29], strides = [1, 1]} : vector<16x32xbf16> to vector<16x29xbf16>
    %504 = tpu.concatenate %503, %502 in 1 : vector<16x29xbf16>, vector<16x3xbf16> -> vector<16x32xbf16>
    %505 = vector.broadcast %322 : vector<1x32xbf16> to vector<16x32xbf16>
    %506 = arith.mulf %504, %505 : vector<16x32xbf16>
    %cst_105 = arith.constant 0.000000e+00 : bf16
    %507 = vector.broadcast %cst_105 : bf16 to vector<16x4xbf16>
    %508 = vector.extract_strided_slice %475 {offsets = [0, 4], sizes = [16, 28], strides = [1, 1]} : vector<16x32xbf16> to vector<16x28xbf16>
    %509 = tpu.concatenate %508, %507 in 1 : vector<16x28xbf16>, vector<16x4xbf16> -> vector<16x32xbf16>
    %510 = vector.broadcast %325 : vector<1x32xbf16> to vector<16x32xbf16>
    %511 = arith.mulf %509, %510 : vector<16x32xbf16>
    %cst_106 = arith.constant 0.000000e+00 : bf16
    %512 = vector.broadcast %cst_106 : bf16 to vector<16x5xbf16>
    %513 = vector.extract_strided_slice %475 {offsets = [0, 5], sizes = [16, 27], strides = [1, 1]} : vector<16x32xbf16> to vector<16x27xbf16>
    %514 = tpu.concatenate %513, %512 in 1 : vector<16x27xbf16>, vector<16x5xbf16> -> vector<16x32xbf16>
    %515 = vector.broadcast %329 : vector<1x32xbf16> to vector<16x32xbf16>
    %516 = arith.mulf %514, %515 : vector<16x32xbf16>
    %517 = tpu.concatenate %481, %486, %491, %496, %475, %501, %506, %511, %516 in 0 : vector<16x32xbf16>, vector<16x32xbf16>, vector<16x32xbf16>, vector<16x32xbf16>, vector<16x32xbf16>, vector<16x32xbf16>, vector<16x32xbf16>, vector<16x32xbf16>, vector<16x32xbf16> -> vector<144x32xbf16>
    %c96 = arith.constant 96 : index
    %c0_107 = arith.constant 0 : index
    %518 = vector.load %arg1[%c96, %c0_107] : memref<256x144xbf16, #tpu.memory_space<vmem>>, vector<16x144xbf16>
    %cst_108 = arith.constant dense<0.000000e+00> : vector<16x32xf32>
    %519 = tpu.matmul %518, %517, %cst_108 {dimension_numbers = #tpu.dot_dimension_numbers<[1], [0], [0], [1], [0, 0, 1, 1], [], []>} : vector<16x144xbf16>, vector<144x32xbf16>, vector<16x32xf32> -> vector<16x32xf32>
    %520 = vector.broadcast %476 : vector<16x1xf32> to vector<16x32xf32>
    %521 = arith.addf %519, %520 : vector<16x32xf32>
    %522 = arith.extf %426 : vector<16x32xbf16> to vector<16x32xf32>
    %523 = arith.addf %521, %522 : vector<16x32xf32>
    %524 = arith.truncf %523 : vector<16x32xf32> to vector<16x32xbf16>
    %c0_109 = arith.constant 0 : index
    %c7 = arith.constant 7 : index
    %525 = vector.load %arg2[%c0_109, %c7] : memref<16x10xf32, #tpu.memory_space<vmem>>, vector<16x1xf32>
    %cst_110 = arith.constant 0.000000e+00 : bf16
    %526 = vector.broadcast %cst_110 : bf16 to vector<16x1xbf16>
    %527 = vector.extract_strided_slice %524 {offsets = [0, 1], sizes = [16, 31], strides = [1, 1]} : vector<16x32xbf16> to vector<16x31xbf16>
    %528 = tpu.concatenate %527, %526 in 1 : vector<16x31xbf16>, vector<16x1xbf16> -> vector<16x32xbf16>
    %529 = vector.broadcast %318 : vector<1x32xbf16> to vector<16x32xbf16>
    %530 = arith.mulf %528, %529 : vector<16x32xbf16>
    %cst_111 = arith.constant 0.000000e+00 : bf16
    %531 = vector.broadcast %cst_111 : bf16 to vector<16x4xbf16>
    %532 = vector.extract_strided_slice %524 {offsets = [0, 4], sizes = [16, 28], strides = [1, 1]} : vector<16x32xbf16> to vector<16x28xbf16>
    %533 = tpu.concatenate %532, %531 in 1 : vector<16x28xbf16>, vector<16x4xbf16> -> vector<16x32xbf16>
    %534 = vector.broadcast %325 : vector<1x32xbf16> to vector<16x32xbf16>
    %535 = arith.mulf %533, %534 : vector<16x32xbf16>
    %cst_112 = arith.constant 0.000000e+00 : bf16
    %536 = vector.broadcast %cst_112 : bf16 to vector<16x5xbf16>
    %537 = vector.extract_strided_slice %524 {offsets = [0, 5], sizes = [16, 27], strides = [1, 1]} : vector<16x32xbf16> to vector<16x27xbf16>
    %538 = tpu.concatenate %537, %536 in 1 : vector<16x27xbf16>, vector<16x5xbf16> -> vector<16x32xbf16>
    %539 = vector.broadcast %329 : vector<1x32xbf16> to vector<16x32xbf16>
    %540 = arith.mulf %538, %539 : vector<16x32xbf16>
    %541 = tpu.concatenate %524, %530 in 0 : vector<16x32xbf16>, vector<16x32xbf16> -> vector<32x32xbf16>
    %542 = tpu.concatenate %524, %535 in 0 : vector<16x32xbf16>, vector<16x32xbf16> -> vector<32x32xbf16>
    %543 = tpu.concatenate %524, %530, %535, %540 in 0 : vector<16x32xbf16>, vector<16x32xbf16>, vector<16x32xbf16>, vector<16x32xbf16> -> vector<64x32xbf16>
    %544 = tpu.iota {dimensions = array<i32: 0>} : vector<32x128xi32>
    %545 = tpu.iota {dimensions = array<i32: 1>} : vector<32x128xi32>
    %c4_i32_113 = arith.constant 4 : i32
    %546 = vector.broadcast %c4_i32_113 : i32 to vector<32x128xi32>
    %547 = arith.shrsi %544, %546 : vector<32x128xi32>
    %c15_i32_114 = arith.constant 15 : i32
    %548 = vector.broadcast %c15_i32_114 : i32 to vector<32x128xi32>
    %549 = arith.andi %544, %548 : vector<32x128xi32>
    %c64_i32_115 = arith.constant 64 : i32
    %550 = vector.broadcast %c64_i32_115 : i32 to vector<32x128xi32>
    %551 = arith.muli %547, %550 : vector<32x128xi32>
    %c2_i32_116 = arith.constant 2 : i32
    %552 = vector.broadcast %c2_i32_116 : i32 to vector<32x128xi32>
    %553 = arith.shrsi %549, %552 : vector<32x128xi32>
    %c2_i32_117 = arith.constant 2 : i32
    %554 = vector.broadcast %c2_i32_117 : i32 to vector<32x128xi32>
    %555 = arith.muli %554, %553 : vector<32x128xi32>
    %c8_i32_118 = arith.constant 8 : i32
    %556 = vector.broadcast %c8_i32_118 : i32 to vector<32x128xi32>
    %557 = arith.muli %555, %556 : vector<32x128xi32>
    %558 = arith.addi %551, %557 : vector<32x128xi32>
    %c3_i32_119 = arith.constant 3 : i32
    %559 = vector.broadcast %c3_i32_119 : i32 to vector<32x128xi32>
    %560 = arith.andi %549, %559 : vector<32x128xi32>
    %c2_i32_120 = arith.constant 2 : i32
    %561 = vector.broadcast %c2_i32_120 : i32 to vector<32x128xi32>
    %562 = arith.muli %561, %560 : vector<32x128xi32>
    %563 = arith.addi %558, %562 : vector<32x128xi32>
    %c0_i32 = arith.constant 0 : i32
    %564 = vector.broadcast %c0_i32 : i32 to vector<32x128xi32>
    %565 = arith.addi %563, %564 : vector<32x128xi32>
    %c0_i32_121 = arith.constant 0 : i32
    %566 = vector.broadcast %c0_i32_121 : i32 to vector<32x128xi32>
    %567 = arith.addi %565, %566 : vector<32x128xi32>
    %568 = arith.cmpi eq, %545, %567 : vector<32x128xi32>
    %569 = arith.extui %568 : vector<32x128xi1> to vector<32x128xi32>
    %570 = arith.sitofp %569 : vector<32x128xi32> to vector<32x128xf32>
    %571 = arith.truncf %570 : vector<32x128xf32> to vector<32x128xbf16>
    %c0_i32_122 = arith.constant 0 : i32
    %572 = vector.broadcast %c0_i32_122 : i32 to vector<32x128xi32>
    %573 = arith.addi %563, %572 : vector<32x128xi32>
    %c1_i32_123 = arith.constant 1 : i32
    %574 = vector.broadcast %c1_i32_123 : i32 to vector<32x128xi32>
    %575 = arith.addi %573, %574 : vector<32x128xi32>
    %576 = arith.cmpi eq, %545, %575 : vector<32x128xi32>
    %577 = arith.extui %576 : vector<32x128xi1> to vector<32x128xi32>
    %578 = arith.sitofp %577 : vector<32x128xi32> to vector<32x128xf32>
    %579 = arith.truncf %578 : vector<32x128xf32> to vector<32x128xbf16>
    %c8_i32_124 = arith.constant 8 : i32
    %580 = vector.broadcast %c8_i32_124 : i32 to vector<32x128xi32>
    %581 = arith.addi %563, %580 : vector<32x128xi32>
    %c0_i32_125 = arith.constant 0 : i32
    %582 = vector.broadcast %c0_i32_125 : i32 to vector<32x128xi32>
    %583 = arith.addi %581, %582 : vector<32x128xi32>
    %584 = arith.cmpi eq, %545, %583 : vector<32x128xi32>
    %585 = arith.extui %584 : vector<32x128xi1> to vector<32x128xi32>
    %586 = arith.sitofp %585 : vector<32x128xi32> to vector<32x128xf32>
    %587 = arith.truncf %586 : vector<32x128xf32> to vector<32x128xbf16>
    %c8_i32_126 = arith.constant 8 : i32
    %588 = vector.broadcast %c8_i32_126 : i32 to vector<32x128xi32>
    %589 = arith.addi %563, %588 : vector<32x128xi32>
    %c1_i32_127 = arith.constant 1 : i32
    %590 = vector.broadcast %c1_i32_127 : i32 to vector<32x128xi32>
    %591 = arith.addi %589, %590 : vector<32x128xi32>
    %592 = arith.cmpi eq, %545, %591 : vector<32x128xi32>
    %593 = arith.extui %592 : vector<32x128xi1> to vector<32x128xi32>
    %594 = arith.sitofp %593 : vector<32x128xi32> to vector<32x128xf32>
    %595 = arith.truncf %594 : vector<32x128xf32> to vector<32x128xbf16>
    %c112 = arith.constant 112 : index
    %c0_128 = arith.constant 0 : index
    %596 = vector.load %arg1[%c112, %c0_128] : memref<256x144xbf16, #tpu.memory_space<vmem>>, vector<16x16xbf16>
    %cst_129 = arith.constant dense<0.000000e+00> : vector<16x32xf32>
    %597 = tpu.matmul %596, %524, %cst_129 {dimension_numbers = #tpu.dot_dimension_numbers<[1], [0], [0], [1], [0, 0, 1, 1], [], []>} : vector<16x16xbf16>, vector<16x32xbf16>, vector<16x32xf32> -> vector<16x32xf32>
    %598 = vector.broadcast %525 : vector<16x1xf32> to vector<16x32xf32>
    %599 = arith.addf %597, %598 : vector<16x32xf32>
    %cst_130 = arith.constant 0.000000e+00 : f32
    %600 = vector.broadcast %cst_130 : f32 to vector<16x32xf32>
    %601 = arith.maximumf %599, %600 : vector<16x32xf32>
    %602 = arith.truncf %601 : vector<16x32xf32> to vector<16x32xbf16>
    %cst_131 = arith.constant dense<0.000000e+00> : vector<16x128xf32>
    %603 = tpu.matmul %602, %571, %cst_131 {dimension_numbers = #tpu.dot_dimension_numbers<[1], [0], [0], [1], [0, 0, 1, 1], [], []>} : vector<16x32xbf16>, vector<32x128xbf16>, vector<16x128xf32> -> vector<16x128xf32>
    %c128 = arith.constant 128 : index
    %c0_132 = arith.constant 0 : index
    %604 = vector.load %arg1[%c128, %c0_132] : memref<256x144xbf16, #tpu.memory_space<vmem>>, vector<16x32xbf16>
    %cst_133 = arith.constant dense<0.000000e+00> : vector<16x32xf32>
    %605 = tpu.matmul %604, %541, %cst_133 {dimension_numbers = #tpu.dot_dimension_numbers<[1], [0], [0], [1], [0, 0, 1, 1], [], []>} : vector<16x32xbf16>, vector<32x32xbf16>, vector<16x32xf32> -> vector<16x32xf32>
    %606 = vector.broadcast %525 : vector<16x1xf32> to vector<16x32xf32>
    %607 = arith.addf %605, %606 : vector<16x32xf32>
    %cst_134 = arith.constant 0.000000e+00 : f32
    %608 = vector.broadcast %cst_134 : f32 to vector<16x32xf32>
    %609 = arith.maximumf %607, %608 : vector<16x32xf32>
    %610 = arith.truncf %609 : vector<16x32xf32> to vector<16x32xbf16>
    %cst_135 = arith.constant dense<0.000000e+00> : vector<16x128xf32>
    %611 = tpu.matmul %610, %579, %cst_135 {dimension_numbers = #tpu.dot_dimension_numbers<[1], [0], [0], [1], [0, 0, 1, 1], [], []>} : vector<16x32xbf16>, vector<32x128xbf16>, vector<16x128xf32> -> vector<16x128xf32>
    %612 = arith.addf %603, %611 : vector<16x128xf32>
    %c144 = arith.constant 144 : index
    %c0_136 = arith.constant 0 : index
    %613 = vector.load %arg1[%c144, %c0_136] : memref<256x144xbf16, #tpu.memory_space<vmem>>, vector<16x32xbf16>
    %cst_137 = arith.constant dense<0.000000e+00> : vector<16x32xf32>
    %614 = tpu.matmul %613, %542, %cst_137 {dimension_numbers = #tpu.dot_dimension_numbers<[1], [0], [0], [1], [0, 0, 1, 1], [], []>} : vector<16x32xbf16>, vector<32x32xbf16>, vector<16x32xf32> -> vector<16x32xf32>
    %615 = vector.broadcast %525 : vector<16x1xf32> to vector<16x32xf32>
    %616 = arith.addf %614, %615 : vector<16x32xf32>
    %cst_138 = arith.constant 0.000000e+00 : f32
    %617 = vector.broadcast %cst_138 : f32 to vector<16x32xf32>
    %618 = arith.maximumf %616, %617 : vector<16x32xf32>
    %619 = arith.truncf %618 : vector<16x32xf32> to vector<16x32xbf16>
    %cst_139 = arith.constant dense<0.000000e+00> : vector<16x128xf32>
    %620 = tpu.matmul %619, %587, %cst_139 {dimension_numbers = #tpu.dot_dimension_numbers<[1], [0], [0], [1], [0, 0, 1, 1], [], []>} : vector<16x32xbf16>, vector<32x128xbf16>, vector<16x128xf32> -> vector<16x128xf32>
    %621 = arith.addf %612, %620 : vector<16x128xf32>
    %c160 = arith.constant 160 : index
    %c0_140 = arith.constant 0 : index
    %622 = vector.load %arg1[%c160, %c0_140] : memref<256x144xbf16, #tpu.memory_space<vmem>>, vector<16x64xbf16>
    %cst_141 = arith.constant dense<0.000000e+00> : vector<16x32xf32>
    %623 = tpu.matmul %622, %543, %cst_141 {dimension_numbers = #tpu.dot_dimension_numbers<[1], [0], [0], [1], [0, 0, 1, 1], [], []>} : vector<16x64xbf16>, vector<64x32xbf16>, vector<16x32xf32> -> vector<16x32xf32>
    %624 = vector.broadcast %525 : vector<16x1xf32> to vector<16x32xf32>
    %625 = arith.addf %623, %624 : vector<16x32xf32>
    %cst_142 = arith.constant 0.000000e+00 : f32
    %626 = vector.broadcast %cst_142 : f32 to vector<16x32xf32>
    %627 = arith.maximumf %625, %626 : vector<16x32xf32>
    %628 = arith.truncf %627 : vector<16x32xf32> to vector<16x32xbf16>
    %cst_143 = arith.constant dense<0.000000e+00> : vector<16x128xf32>
    %629 = tpu.matmul %628, %595, %cst_143 {dimension_numbers = #tpu.dot_dimension_numbers<[1], [0], [0], [1], [0, 0, 1, 1], [], []>} : vector<16x32xbf16>, vector<32x128xbf16>, vector<16x128xf32> -> vector<16x128xf32>
    %630 = arith.addf %621, %629 : vector<16x128xf32>
    %631 = arith.truncf %630 : vector<16x128xf32> to vector<16x128xbf16>
    %c0_144 = arith.constant 0 : index
    %c8 = arith.constant 8 : index
    %632 = vector.load %arg2[%c0_144, %c8] : memref<16x10xf32, #tpu.memory_space<vmem>>, vector<16x1xf32>
    %cst_145 = arith.constant 0.000000e+00 : bf16
    %633 = vector.broadcast %cst_145 : bf16 to vector<16x1xbf16>
    %634 = vector.extract_strided_slice %631 {offsets = [0, 1], sizes = [16, 127], strides = [1, 1]} : vector<16x128xbf16> to vector<16x127xbf16>
    %635 = tpu.concatenate %634, %633 in 1 : vector<16x127xbf16>, vector<16x1xbf16> -> vector<16x128xbf16>
    %636 = vector.broadcast %200 : vector<1x128xbf16> to vector<16x128xbf16>
    %637 = arith.mulf %635, %636 : vector<16x128xbf16>
    %cst_146 = arith.constant 0.000000e+00 : bf16
    %638 = vector.broadcast %cst_146 : bf16 to vector<16x8xbf16>
    %639 = vector.extract_strided_slice %631 {offsets = [0, 8], sizes = [16, 120], strides = [1, 1]} : vector<16x128xbf16> to vector<16x120xbf16>
    %640 = tpu.concatenate %639, %638 in 1 : vector<16x120xbf16>, vector<16x8xbf16> -> vector<16x128xbf16>
    %641 = vector.broadcast %207 : vector<1x128xbf16> to vector<16x128xbf16>
    %642 = arith.mulf %640, %641 : vector<16x128xbf16>
    %cst_147 = arith.constant 0.000000e+00 : bf16
    %643 = vector.broadcast %cst_147 : bf16 to vector<16x9xbf16>
    %644 = vector.extract_strided_slice %631 {offsets = [0, 9], sizes = [16, 119], strides = [1, 1]} : vector<16x128xbf16> to vector<16x119xbf16>
    %645 = tpu.concatenate %644, %643 in 1 : vector<16x119xbf16>, vector<16x9xbf16> -> vector<16x128xbf16>
    %646 = vector.broadcast %211 : vector<1x128xbf16> to vector<16x128xbf16>
    %647 = arith.mulf %645, %646 : vector<16x128xbf16>
    %648 = tpu.concatenate %631, %637 in 0 : vector<16x128xbf16>, vector<16x128xbf16> -> vector<32x128xbf16>
    %649 = tpu.concatenate %631, %642 in 0 : vector<16x128xbf16>, vector<16x128xbf16> -> vector<32x128xbf16>
    %650 = tpu.concatenate %631, %637, %642, %647 in 0 : vector<16x128xbf16>, vector<16x128xbf16>, vector<16x128xbf16>, vector<16x128xbf16> -> vector<64x128xbf16>
    %651 = tpu.iota {dimensions = array<i32: 0>} : vector<128x512xi32>
    %652 = tpu.iota {dimensions = array<i32: 1>} : vector<128x512xi32>
    %c6_i32_148 = arith.constant 6 : i32
    %653 = vector.broadcast %c6_i32_148 : i32 to vector<128x512xi32>
    %654 = arith.shrsi %651, %653 : vector<128x512xi32>
    %c63_i32_149 = arith.constant 63 : i32
    %655 = vector.broadcast %c63_i32_149 : i32 to vector<128x512xi32>
    %656 = arith.andi %651, %655 : vector<128x512xi32>
    %c256_i32_150 = arith.constant 256 : i32
    %657 = vector.broadcast %c256_i32_150 : i32 to vector<128x512xi32>
    %658 = arith.muli %654, %657 : vector<128x512xi32>
    %c3_i32_151 = arith.constant 3 : i32
    %659 = vector.broadcast %c3_i32_151 : i32 to vector<128x512xi32>
    %660 = arith.shrsi %656, %659 : vector<128x512xi32>
    %c2_i32_152 = arith.constant 2 : i32
    %661 = vector.broadcast %c2_i32_152 : i32 to vector<128x512xi32>
    %662 = arith.muli %661, %660 : vector<128x512xi32>
    %c16_i32_153 = arith.constant 16 : i32
    %663 = vector.broadcast %c16_i32_153 : i32 to vector<128x512xi32>
    %664 = arith.muli %662, %663 : vector<128x512xi32>
    %665 = arith.addi %658, %664 : vector<128x512xi32>
    %c7_i32_154 = arith.constant 7 : i32
    %666 = vector.broadcast %c7_i32_154 : i32 to vector<128x512xi32>
    %667 = arith.andi %656, %666 : vector<128x512xi32>
    %c2_i32_155 = arith.constant 2 : i32
    %668 = vector.broadcast %c2_i32_155 : i32 to vector<128x512xi32>
    %669 = arith.muli %668, %667 : vector<128x512xi32>
    %670 = arith.addi %665, %669 : vector<128x512xi32>
    %c0_i32_156 = arith.constant 0 : i32
    %671 = vector.broadcast %c0_i32_156 : i32 to vector<128x512xi32>
    %672 = arith.addi %670, %671 : vector<128x512xi32>
    %c0_i32_157 = arith.constant 0 : i32
    %673 = vector.broadcast %c0_i32_157 : i32 to vector<128x512xi32>
    %674 = arith.addi %672, %673 : vector<128x512xi32>
    %675 = arith.cmpi eq, %652, %674 : vector<128x512xi32>
    %676 = arith.extui %675 : vector<128x512xi1> to vector<128x512xi32>
    %677 = arith.sitofp %676 : vector<128x512xi32> to vector<128x512xf32>
    %678 = arith.truncf %677 : vector<128x512xf32> to vector<128x512xbf16>
    %c0_i32_158 = arith.constant 0 : i32
    %679 = vector.broadcast %c0_i32_158 : i32 to vector<128x512xi32>
    %680 = arith.addi %670, %679 : vector<128x512xi32>
    %c1_i32_159 = arith.constant 1 : i32
    %681 = vector.broadcast %c1_i32_159 : i32 to vector<128x512xi32>
    %682 = arith.addi %680, %681 : vector<128x512xi32>
    %683 = arith.cmpi eq, %652, %682 : vector<128x512xi32>
    %684 = arith.extui %683 : vector<128x512xi1> to vector<128x512xi32>
    %685 = arith.sitofp %684 : vector<128x512xi32> to vector<128x512xf32>
    %686 = arith.truncf %685 : vector<128x512xf32> to vector<128x512xbf16>
    %c16_i32_160 = arith.constant 16 : i32
    %687 = vector.broadcast %c16_i32_160 : i32 to vector<128x512xi32>
    %688 = arith.addi %670, %687 : vector<128x512xi32>
    %c0_i32_161 = arith.constant 0 : i32
    %689 = vector.broadcast %c0_i32_161 : i32 to vector<128x512xi32>
    %690 = arith.addi %688, %689 : vector<128x512xi32>
    %691 = arith.cmpi eq, %652, %690 : vector<128x512xi32>
    %692 = arith.extui %691 : vector<128x512xi1> to vector<128x512xi32>
    %693 = arith.sitofp %692 : vector<128x512xi32> to vector<128x512xf32>
    %694 = arith.truncf %693 : vector<128x512xf32> to vector<128x512xbf16>
    %c16_i32_162 = arith.constant 16 : i32
    %695 = vector.broadcast %c16_i32_162 : i32 to vector<128x512xi32>
    %696 = arith.addi %670, %695 : vector<128x512xi32>
    %c1_i32_163 = arith.constant 1 : i32
    %697 = vector.broadcast %c1_i32_163 : i32 to vector<128x512xi32>
    %698 = arith.addi %696, %697 : vector<128x512xi32>
    %699 = arith.cmpi eq, %652, %698 : vector<128x512xi32>
    %700 = arith.extui %699 : vector<128x512xi1> to vector<128x512xi32>
    %701 = arith.sitofp %700 : vector<128x512xi32> to vector<128x512xf32>
    %702 = arith.truncf %701 : vector<128x512xf32> to vector<128x512xbf16>
    %c176 = arith.constant 176 : index
    %c0_164 = arith.constant 0 : index
    %703 = vector.load %arg1[%c176, %c0_164] : memref<256x144xbf16, #tpu.memory_space<vmem>>, vector<16x16xbf16>
    %cst_165 = arith.constant dense<0.000000e+00> : vector<16x128xf32>
    %704 = tpu.matmul %703, %631, %cst_165 {dimension_numbers = #tpu.dot_dimension_numbers<[1], [0], [0], [1], [0, 0, 1, 1], [], []>} : vector<16x16xbf16>, vector<16x128xbf16>, vector<16x128xf32> -> vector<16x128xf32>
    %705 = vector.broadcast %632 : vector<16x1xf32> to vector<16x128xf32>
    %706 = arith.addf %704, %705 : vector<16x128xf32>
    %cst_166 = arith.constant 0.000000e+00 : f32
    %707 = vector.broadcast %cst_166 : f32 to vector<16x128xf32>
    %708 = arith.maximumf %706, %707 : vector<16x128xf32>
    %709 = arith.truncf %708 : vector<16x128xf32> to vector<16x128xbf16>
    %cst_167 = arith.constant dense<0.000000e+00> : vector<16x512xf32>
    %710 = tpu.matmul %709, %678, %cst_167 {dimension_numbers = #tpu.dot_dimension_numbers<[1], [0], [0], [1], [0, 0, 1, 1], [], []>} : vector<16x128xbf16>, vector<128x512xbf16>, vector<16x512xf32> -> vector<16x512xf32>
    %c192 = arith.constant 192 : index
    %c0_168 = arith.constant 0 : index
    %711 = vector.load %arg1[%c192, %c0_168] : memref<256x144xbf16, #tpu.memory_space<vmem>>, vector<16x32xbf16>
    %cst_169 = arith.constant dense<0.000000e+00> : vector<16x128xf32>
    %712 = tpu.matmul %711, %648, %cst_169 {dimension_numbers = #tpu.dot_dimension_numbers<[1], [0], [0], [1], [0, 0, 1, 1], [], []>} : vector<16x32xbf16>, vector<32x128xbf16>, vector<16x128xf32> -> vector<16x128xf32>
    %713 = vector.broadcast %632 : vector<16x1xf32> to vector<16x128xf32>
    %714 = arith.addf %712, %713 : vector<16x128xf32>
    %cst_170 = arith.constant 0.000000e+00 : f32
    %715 = vector.broadcast %cst_170 : f32 to vector<16x128xf32>
    %716 = arith.maximumf %714, %715 : vector<16x128xf32>
    %717 = arith.truncf %716 : vector<16x128xf32> to vector<16x128xbf16>
    %cst_171 = arith.constant dense<0.000000e+00> : vector<16x512xf32>
    %718 = tpu.matmul %717, %686, %cst_171 {dimension_numbers = #tpu.dot_dimension_numbers<[1], [0], [0], [1], [0, 0, 1, 1], [], []>} : vector<16x128xbf16>, vector<128x512xbf16>, vector<16x512xf32> -> vector<16x512xf32>
    %719 = arith.addf %710, %718 : vector<16x512xf32>
    %c208 = arith.constant 208 : index
    %c0_172 = arith.constant 0 : index
    %720 = vector.load %arg1[%c208, %c0_172] : memref<256x144xbf16, #tpu.memory_space<vmem>>, vector<16x32xbf16>
    %cst_173 = arith.constant dense<0.000000e+00> : vector<16x128xf32>
    %721 = tpu.matmul %720, %649, %cst_173 {dimension_numbers = #tpu.dot_dimension_numbers<[1], [0], [0], [1], [0, 0, 1, 1], [], []>} : vector<16x32xbf16>, vector<32x128xbf16>, vector<16x128xf32> -> vector<16x128xf32>
    %722 = vector.broadcast %632 : vector<16x1xf32> to vector<16x128xf32>
    %723 = arith.addf %721, %722 : vector<16x128xf32>
    %cst_174 = arith.constant 0.000000e+00 : f32
    %724 = vector.broadcast %cst_174 : f32 to vector<16x128xf32>
    %725 = arith.maximumf %723, %724 : vector<16x128xf32>
    %726 = arith.truncf %725 : vector<16x128xf32> to vector<16x128xbf16>
    %cst_175 = arith.constant dense<0.000000e+00> : vector<16x512xf32>
    %727 = tpu.matmul %726, %694, %cst_175 {dimension_numbers = #tpu.dot_dimension_numbers<[1], [0], [0], [1], [0, 0, 1, 1], [], []>} : vector<16x128xbf16>, vector<128x512xbf16>, vector<16x512xf32> -> vector<16x512xf32>
    %728 = arith.addf %719, %727 : vector<16x512xf32>
    %c224 = arith.constant 224 : index
    %c0_176 = arith.constant 0 : index
    %729 = vector.load %arg1[%c224, %c0_176] : memref<256x144xbf16, #tpu.memory_space<vmem>>, vector<16x64xbf16>
    %cst_177 = arith.constant dense<0.000000e+00> : vector<16x128xf32>
    %730 = tpu.matmul %729, %650, %cst_177 {dimension_numbers = #tpu.dot_dimension_numbers<[1], [0], [0], [1], [0, 0, 1, 1], [], []>} : vector<16x64xbf16>, vector<64x128xbf16>, vector<16x128xf32> -> vector<16x128xf32>
    %731 = vector.broadcast %632 : vector<16x1xf32> to vector<16x128xf32>
    %732 = arith.addf %730, %731 : vector<16x128xf32>
    %cst_178 = arith.constant 0.000000e+00 : f32
    %733 = vector.broadcast %cst_178 : f32 to vector<16x128xf32>
    %734 = arith.maximumf %732, %733 : vector<16x128xf32>
    %735 = arith.truncf %734 : vector<16x128xf32> to vector<16x128xbf16>
    %cst_179 = arith.constant dense<0.000000e+00> : vector<16x512xf32>
    %736 = tpu.matmul %735, %702, %cst_179 {dimension_numbers = #tpu.dot_dimension_numbers<[1], [0], [0], [1], [0, 0, 1, 1], [], []>} : vector<16x128xbf16>, vector<128x512xbf16>, vector<16x512xf32> -> vector<16x512xf32>
    %737 = arith.addf %728, %736 : vector<16x512xf32>
    %738 = arith.truncf %737 : vector<16x512xf32> to vector<16x512xbf16>
    %c0_180 = arith.constant 0 : index
    %c9 = arith.constant 9 : index
    %739 = vector.load %arg2[%c0_180, %c9] : memref<16x10xf32, #tpu.memory_space<vmem>>, vector<16x1xf32>
    %cst_181 = arith.constant 0.000000e+00 : bf16
    %740 = vector.broadcast %cst_181 : bf16 to vector<16x17xbf16>
    %741 = vector.extract_strided_slice %738 {offsets = [0, 0], sizes = [16, 495], strides = [1, 1]} : vector<16x512xbf16> to vector<16x495xbf16>
    %742 = tpu.concatenate %740, %741 in 1 : vector<16x17xbf16>, vector<16x495xbf16> -> vector<16x512xbf16>
    %743 = vector.broadcast %20 : vector<1x512xbf16> to vector<16x512xbf16>
    %744 = arith.mulf %742, %743 : vector<16x512xbf16>
    %cst_182 = arith.constant 0.000000e+00 : bf16
    %745 = vector.broadcast %cst_182 : bf16 to vector<16x16xbf16>
    %746 = vector.extract_strided_slice %738 {offsets = [0, 0], sizes = [16, 496], strides = [1, 1]} : vector<16x512xbf16> to vector<16x496xbf16>
    %747 = tpu.concatenate %745, %746 in 1 : vector<16x16xbf16>, vector<16x496xbf16> -> vector<16x512xbf16>
    %748 = vector.broadcast %23 : vector<1x512xbf16> to vector<16x512xbf16>
    %749 = arith.mulf %747, %748 : vector<16x512xbf16>
    %cst_183 = arith.constant 0.000000e+00 : bf16
    %750 = vector.broadcast %cst_183 : bf16 to vector<16x15xbf16>
    %751 = vector.extract_strided_slice %738 {offsets = [0, 0], sizes = [16, 497], strides = [1, 1]} : vector<16x512xbf16> to vector<16x497xbf16>
    %752 = tpu.concatenate %750, %751 in 1 : vector<16x15xbf16>, vector<16x497xbf16> -> vector<16x512xbf16>
    %753 = vector.broadcast %27 : vector<1x512xbf16> to vector<16x512xbf16>
    %754 = arith.mulf %752, %753 : vector<16x512xbf16>
    %cst_184 = arith.constant 0.000000e+00 : bf16
    %755 = vector.broadcast %cst_184 : bf16 to vector<16x1xbf16>
    %756 = vector.extract_strided_slice %738 {offsets = [0, 0], sizes = [16, 511], strides = [1, 1]} : vector<16x512xbf16> to vector<16x511xbf16>
    %757 = tpu.concatenate %755, %756 in 1 : vector<16x1xbf16>, vector<16x511xbf16> -> vector<16x512xbf16>
    %758 = vector.broadcast %30 : vector<1x512xbf16> to vector<16x512xbf16>
    %759 = arith.mulf %757, %758 : vector<16x512xbf16>
    %cst_185 = arith.constant 0.000000e+00 : bf16
    %760 = vector.broadcast %cst_185 : bf16 to vector<16x1xbf16>
    %761 = vector.extract_strided_slice %738 {offsets = [0, 1], sizes = [16, 511], strides = [1, 1]} : vector<16x512xbf16> to vector<16x511xbf16>
    %762 = tpu.concatenate %761, %760 in 1 : vector<16x511xbf16>, vector<16x1xbf16> -> vector<16x512xbf16>
    %763 = vector.broadcast %33 : vector<1x512xbf16> to vector<16x512xbf16>
    %764 = arith.mulf %762, %763 : vector<16x512xbf16>
    %cst_186 = arith.constant 0.000000e+00 : bf16
    %765 = vector.broadcast %cst_186 : bf16 to vector<16x15xbf16>
    %766 = vector.extract_strided_slice %738 {offsets = [0, 15], sizes = [16, 497], strides = [1, 1]} : vector<16x512xbf16> to vector<16x497xbf16>
    %767 = tpu.concatenate %766, %765 in 1 : vector<16x497xbf16>, vector<16x15xbf16> -> vector<16x512xbf16>
    %768 = vector.broadcast %37 : vector<1x512xbf16> to vector<16x512xbf16>
    %769 = arith.mulf %767, %768 : vector<16x512xbf16>
    %cst_187 = arith.constant 0.000000e+00 : bf16
    %770 = vector.broadcast %cst_187 : bf16 to vector<16x16xbf16>
    %771 = vector.extract_strided_slice %738 {offsets = [0, 16], sizes = [16, 496], strides = [1, 1]} : vector<16x512xbf16> to vector<16x496xbf16>
    %772 = tpu.concatenate %771, %770 in 1 : vector<16x496xbf16>, vector<16x16xbf16> -> vector<16x512xbf16>
    %773 = vector.broadcast %40 : vector<1x512xbf16> to vector<16x512xbf16>
    %774 = arith.mulf %772, %773 : vector<16x512xbf16>
    %cst_188 = arith.constant 0.000000e+00 : bf16
    %775 = vector.broadcast %cst_188 : bf16 to vector<16x17xbf16>
    %776 = vector.extract_strided_slice %738 {offsets = [0, 17], sizes = [16, 495], strides = [1, 1]} : vector<16x512xbf16> to vector<16x495xbf16>
    %777 = tpu.concatenate %776, %775 in 1 : vector<16x495xbf16>, vector<16x17xbf16> -> vector<16x512xbf16>
    %778 = vector.broadcast %44 : vector<1x512xbf16> to vector<16x512xbf16>
    %779 = arith.mulf %777, %778 : vector<16x512xbf16>
    %780 = tpu.concatenate %744, %749, %754, %759, %738, %764, %769, %774, %779 in 0 : vector<16x512xbf16>, vector<16x512xbf16>, vector<16x512xbf16>, vector<16x512xbf16>, vector<16x512xbf16>, vector<16x512xbf16>, vector<16x512xbf16>, vector<16x512xbf16>, vector<16x512xbf16> -> vector<144x512xbf16>
    %c240 = arith.constant 240 : index
    %c0_189 = arith.constant 0 : index
    %781 = vector.load %arg1[%c240, %c0_189] : memref<256x144xbf16, #tpu.memory_space<vmem>>, vector<16x144xbf16>
    %cst_190 = arith.constant dense<0.000000e+00> : vector<16x512xf32>
    %782 = tpu.matmul %781, %780, %cst_190 {dimension_numbers = #tpu.dot_dimension_numbers<[1], [0], [0], [1], [0, 0, 1, 1], [], []>} : vector<16x144xbf16>, vector<144x512xbf16>, vector<16x512xf32> -> vector<16x512xf32>
    %783 = vector.broadcast %739 : vector<16x1xf32> to vector<16x512xf32>
    %784 = arith.addf %782, %783 : vector<16x512xf32>
    %c0_191 = arith.constant 0 : index
    %c0_192 = arith.constant 0 : index
    %785 = vector.load %arg3[%c0_191, %c0_192] : memref<16x512xf32, #tpu.memory_space<vmem>>, vector<16x512xf32>
    tpu.vector_store %arg3[%c0_191, %c0_192], %784 {strides = array<i32>} : memref<16x512xf32, #tpu.memory_space<vmem>>, vector<16x512xf32>,
    return
  }
}

</mosaic_0001>

<llo_original>
// kernel: encoder_decoder_resnet_forward.1
$region0: #{encoder_decoder_resnet_forward.1}
  #allocation0 [shape = 'u32[]', space=smem, size = 0x4, offset = 0x4, fixed_abs, tag = 'smem constant byte address 0x4 - core index']
  #allocation1 [shape = 'u32[144,128]{1,0:T(1,128)}', space=vmem, size = 0x12000, scoped, tag = 'internal scratch']
  %s0 = inlined_call_operand.vmem [shape: bf16[16,512], index: 0, kind: input, shape index: {}]
  %s1 = inlined_call_operand.vmem [shape: bf16[256,144], index: 1, kind: input, shape index: {}]
  %s2 = inlined_call_operand.vmem [shape: f32[16,10], index: 2, kind: input, shape index: {}]
  %s3 = inlined_call_operand.vmem [shape: f32[16,512], index: 3, kind: output, shape index: {}]
  %s4 = sld [smem:[#allocation0]]
  $region22: #{encoder_decoder_resnet_forward.1} parent=0
    _
  %s6 = ssub.s32 1, %s4
  %s7 = scalar_select 0, %s6, %s4
  // Predicated region
  $region2: #{encoder_decoder_resnet_forward.1} parent=0 // pred_check
    _
  $region3: #{encoder_decoder_resnet_forward.1} parent=0 // pred_check_branch
    %9 = sbr.rel (0) target = $region5
  $region4: #{encoder_decoder_resnet_forward.1} parent=0 // pred_region
    _
  $region5: #{encoder_decoder_resnet_forward.1} parent=0 // pred_fallthru
    _
  // Predicated region
  $region6: #{encoder_decoder_resnet_forward.1} parent=0 // pred_check
    _
  $region7: #{encoder_decoder_resnet_forward.1} parent=0 // pred_check_branch
    %11 = sbr.rel (0) target = $region9
  $region8: #{encoder_decoder_resnet_forward.1} parent=0 // pred_region
    _
  $region9: #{encoder_decoder_resnet_forward.1} parent=0 // pred_fallthru
    _
  // Predicated region
  $region10: #{encoder_decoder_resnet_forward.1} parent=0 // pred_check
    _
  $region11: #{encoder_decoder_resnet_forward.1} parent=0 // pred_check_branch
    %13 = sbr.rel (0) target = $region13
  $region12: #{encoder_decoder_resnet_forward.1} parent=0 // pred_region
    _
  $region13: #{encoder_decoder_resnet_forward.1} parent=0 // pred_fallthru
    _
  %v15 = vld [vmem:[%s0] sm:$0xff]
  %v16 = vld [vmem:[%s0 + $0x8] sm:$0xff]
  %v17 = vld [vmem:[%s0 + $0x10] sm:$0xff]
  %v18 = vld [vmem:[%s0 + $0x18] sm:$0xff]
  %v19 = vld [vmem:[%s2] sm:$0xff]
  %v20 = vld [vmem:[%s2 + $0x8] sm:$0xff]
  %v21 = vlaneseq
  %v22 = vand.u32 %v21, 127
  %v23 = vadd.s32 %v22, 128
  %v24 = vadd.s32 %v22, 256
  %v25 = vadd.s32 %v22, 384
  %v26 = vand.u32 %v22, 255
  %v27 = vand.u32 %v23, 255
  %v28 = vand.u32 %v24, 255
  %v29 = vand.u32 %v25, 255
  %v30 = vand.u32 %v26, 15
  %v31 = vand.u32 %v27, 15
  %v32 = vand.u32 %v28, 15
  %v33 = vand.u32 %v29, 15
  %v34 = vshra.s32 %v26, 4
  %v35 = vshra.s32 %v27, 4
  %v36 = vshra.s32 %v28, 4
  %v37 = vshra.s32 %v29, 4
  %vm38 = vcmp.ge.s32.totalorder %v34, 1
  %vm39 = vcmp.ge.s32.totalorder %v35, 1
  %vm40 = vcmp.ge.s32.totalorder %v36, 1
  %vm41 = vcmp.ge.s32.totalorder %v37, 1
  %vm42 = vcmp.le.s32.totalorder %v34, 14
  %vm43 = vcmp.le.s32.totalorder %v35, 14
  %vm44 = vcmp.le.s32.totalorder %v36, 14
  %vm45 = vcmp.le.s32.totalorder %v37, 14
  %vm46 = vcmp.ge.s32.totalorder %v30, 1
  %vm47 = vcmp.ge.s32.totalorder %v31, 1
  %vm48 = vcmp.ge.s32.totalorder %v32, 1
  %vm49 = vcmp.ge.s32.totalorder %v33, 1
  %vm50 = vcmp.le.s32.totalorder %v30, 14
  %vm51 = vcmp.le.s32.totalorder %v31, 14
  %vm52 = vcmp.le.s32.totalorder %v32, 14
  %vm53 = vcmp.le.s32.totalorder %v33, 14
  %vm54 = vmand %vm38, %vm46
  %vm55 = vmand %vm39, %vm47
  %vm56 = vmand %vm40, %vm48
  %vm57 = vmand %vm41, %vm49
  %v58 = vsel %vm54, 1, 0
  %v59 = vsel %vm55, 1, 0
  %v60 = vsel %vm56, 1, 0
  %v61 = vsel %vm57, 1, 0
  %v62 = vcvt.s32.f32 %v58
  %v63 = vcvt.s32.f32 %v59
  %v64 = vcvt.s32.f32 %v60
  %v65 = vcvt.s32.f32 %v61
  %v66 = vpack.c.bf16 %v62, %v62
  %v67 = vpack.c.bf16 %v63, %v63
  %v68 = vpack.c.bf16 %v64, %v64
  %v69 = vpack.c.bf16 %v65, %v65
  %v70 = vsel %vm38, 1, 0
  %v71 = vsel %vm39, 1, 0
  %v72 = vsel %vm40, 1, 0
  %v73 = vsel %vm41, 1, 0
  %v74 = vcvt.s32.f32 %v70
  %v75 = vcvt.s32.f32 %v71
  %v76 = vcvt.s32.f32 %v72
  %v77 = vcvt.s32.f32 %v73
  %v78 = vpack.c.bf16 %v74, %v74
  %v79 = vpack.c.bf16 %v75, %v75
  %v80 = vpack.c.bf16 %v76, %v76
  %v81 = vpack.c.bf16 %v77, %v77
  %vm82 = vmand %vm38, %vm50
  %vm83 = vmand %vm39, %vm51
  %vm84 = vmand %vm40, %vm52
  %vm85 = vmand %vm41, %vm53
  %v86 = vsel %vm82, 1, 0
  %v87 = vsel %vm83, 1, 0
  %v88 = vsel %vm84, 1, 0
  %v89 = vsel %vm85, 1, 0
  %v90 = vcvt.s32.f32 %v86
  %v91 = vcvt.s32.f32 %v87
  %v92 = vcvt.s32.f32 %v88
  %v93 = vcvt.s32.f32 %v89
  %v94 = vpack.c.bf16 %v90, %v90
  %v95 = vpack.c.bf16 %v91, %v91
  %v96 = vpack.c.bf16 %v92, %v92
  %v97 = vpack.c.bf16 %v93, %v93
  %v98 = vsel %vm46, 1, 0
  %v99 = vsel %vm47, 1, 0
  %v100 = vsel %vm48, 1, 0
  %v101 = vsel %vm49, 1, 0
  %v102 = vcvt.s32.f32 %v98
  %v103 = vcvt.s32.f32 %v99
  %v104 = vcvt.s32.f32 %v100
  %v105 = vcvt.s32.f32 %v101
  %v106 = vpack.c.bf16 %v102, %v102
  %v107 = vpack.c.bf16 %v103, %v103
  %v108 = vpack.c.bf16 %v104, %v104
  %v109 = vpack.c.bf16 %v105, %v105
  %v110 = vsel %vm50, 1, 0
  %v111 = vsel %vm51, 1, 0
  %v112 = vsel %vm52, 1, 0
  %v113 = vsel %vm53, 1, 0
  %v114 = vcvt.s32.f32 %v110
  %v115 = vcvt.s32.f32 %v111
  %v116 = vcvt.s32.f32 %v112
  %v117 = vcvt.s32.f32 %v113
  %v118 = vpack.c.bf16 %v114, %v114
  %v119 = vpack.c.bf16 %v115, %v115
  %v120 = vpack.c.bf16 %v116, %v116
  %v121 = vpack.c.bf16 %v117, %v117
  %vm122 = vmand %vm42, %vm46
  %vm123 = vmand %vm43, %vm47
  %vm124 = vmand %vm44, %vm48
  %vm125 = vmand %vm45, %vm49
  %v126 = vsel %vm122, 1, 0
  %v127 = vsel %vm123, 1, 0
  %v128 = vsel %vm124, 1, 0
  %v129 = vsel %vm125, 1, 0
  %v130 = vcvt.s32.f32 %v126
  %v131 = vcvt.s32.f32 %v127
  %v132 = vcvt.s32.f32 %v128
  %v133 = vcvt.s32.f32 %v129
  %v134 = vpack.c.bf16 %v130, %v130
  %v135 = vpack.c.bf16 %v131, %v131
  %v136 = vpack.c.bf16 %v132, %v132
  %v137 = vpack.c.bf16 %v133, %v133
  %v138 = vsel %vm42, 1, 0
  %v139 = vsel %vm43, 1, 0
  %v140 = vsel %vm44, 1, 0
  %v141 = vsel %vm45, 1, 0
  %v142 = vcvt.s32.f32 %v138
  %v143 = vcvt.s32.f32 %v139
  %v144 = vcvt.s32.f32 %v140
  %v145 = vcvt.s32.f32 %v141
  %v146 = vpack.c.bf16 %v142, %v142
  %v147 = vpack.c.bf16 %v143, %v143
  %v148 = vpack.c.bf16 %v144, %v144
  %v149 = vpack.c.bf16 %v145, %v145
  %vm150 = vmand %vm42, %vm50
  %vm151 = vmand %vm43, %vm51
  %vm152 = vmand %vm44, %vm52
  %vm153 = vmand %vm45, %vm53
  %v154 = vsel %vm150, 1, 0
  %v155 = vsel %vm151, 1, 0
  %v156 = vsel %vm152, 1, 0
  %v157 = vsel %vm153, 1, 0
  %v158 = vcvt.s32.f32 %v154
  %v159 = vcvt.s32.f32 %v155
  %v160 = vcvt.s32.f32 %v156
  %v161 = vcvt.s32.f32 %v157
  %v162 = vpack.c.bf16 %v158, %v158
  %v163 = vpack.c.bf16 %v159, %v159
  %v164 = vpack.c.bf16 %v160, %v160
  %v165 = vpack.c.bf16 %v161, %v161
  %v170 = vunpack.c.l.b16 %v15
  %v171 = vunpack.c.h.b16 %v15
  %v172 = vunpack.c.l.b16 %v16
  %v173 = vunpack.c.h.b16 %v16
  %v174 = vunpack.c.l.b16 %v17
  %v175 = vunpack.c.h.b16 %v17
  %v176 = vunpack.c.l.b16 %v18
  %v177 = vunpack.c.h.b16 %v18
  %v178 = vpack.c.b16 %v174, %v170
  %v179 = vpack.c.b16 %v175, %v171
  %v180 = vpack.c.b16 %v176, %v172
  %v181 = vpack.c.b16 %v177, %v173
  %182 = vrot.lane.b32.xlu0 %v178, 17
  %v183 = vpop.permute.xlu0 %182
  %184 = vrot.lane.b32.xlu0 %v179, 17
  %v185 = vpop.permute.xlu0 %184
  %186 = vrot.lane.b32.xlu0 %v180, 17
  %v187 = vpop.permute.xlu0 %186
  %188 = vrot.lane.b32.xlu0 %v181, 17
  %v189 = vpop.permute.xlu0 %188
  %vm190 = vcmask 138240
  %v191 = vsel %vm190, %v183, %v185
  %v192 = vsel %vm190, %v185, %v187
  %v193 = vsel %vm190, %v187, %v189
  %vm197 = vcmask 138240
  %v200 = vsel %vm197, 0, %v183
  %v202 = vmul.bf16 %v200, %v66
  %v203 = vmul.bf16 %v191, %v67
  %v204 = vmul.bf16 %v192, %v68
  %v205 = vmul.bf16 %v193, %v69
  %206 = vrot.lane.b32.xlu0 %v178, 16
  %v207 = vpop.permute.xlu0 %206
  %208 = vrot.lane.b32.xlu0 %v179, 16
  %v209 = vpop.permute.xlu0 %208
  %210 = vrot.lane.b32.xlu0 %v180, 16
  %v211 = vpop.permute.xlu0 %210
  %212 = vrot.lane.b32.xlu0 %v181, 16
  %v213 = vpop.permute.xlu0 %212
  %vm214 = vcmask 130048
  %v215 = vsel %vm214, %v207, %v209
  %v216 = vsel %vm214, %v209, %v211
  %v217 = vsel %vm214, %v211, %v213
  %vm221 = vcmask 130048
  %v223 = vsel %vm221, 0, %v207
  %v225 = vmul.bf16 %v223, %v78
  %v226 = vmul.bf16 %v215, %v79
  %v227 = vmul.bf16 %v216, %v80
  %v228 = vmul.bf16 %v217, %v81
  %229 = vrot.lane.b32.xlu0 %v178, 15
  %v230 = vpop.permute.xlu0 %229
  %231 = vrot.lane.b32.xlu0 %v179, 15
  %v232 = vpop.permute.xlu0 %231
  %233 = vrot.lane.b32.xlu0 %v180, 15
  %v234 = vpop.permute.xlu0 %233
  %235 = vrot.lane.b32.xlu0 %v181, 15
  %v236 = vpop.permute.xlu0 %235
  %vm237 = vcmask 121856
  %v238 = vsel %vm237, %v230, %v232
  %v239 = vsel %vm237, %v232, %v234
  %v240 = vsel %vm237, %v234, %v236
  %vm244 = vcmask 121856
  %v246 = vsel %vm244, 0, %v230
  %v248 = vmul.bf16 %v246, %v94
  %v249 = vmul.bf16 %v238, %v95
  %v250 = vmul.bf16 %v239, %v96
  %v251 = vmul.bf16 %v240, %v97
  %252 = vrot.lane.b32.xlu0 %v178, 1
  %v253 = vpop.permute.xlu0 %252
  %254 = vrot.lane.b32.xlu0 %v179, 1
  %v255 = vpop.permute.xlu0 %254
  %256 = vrot.lane.b32.xlu0 %v180, 1
  %v257 = vpop.permute.xlu0 %256
  %258 = vrot.lane.b32.xlu0 %v181, 1
  %v259 = vpop.permute.xlu0 %258
  %vm260 = vcmask 7168
  %v261 = vsel %vm260, %v253, %v255
  %v262 = vsel %vm260, %v255, %v257
  %v263 = vsel %vm260, %v257, %v259
  %vm267 = vcmask 7168
  %v269 = vsel %vm267, 0, %v253
  %v271 = vmul.bf16 %v269, %v106
  %v272 = vmul.bf16 %v261, %v107
  %v273 = vmul.bf16 %v262, %v108
  %v274 = vmul.bf16 %v263, %v109
  %275 = vrot.lane.b32.xlu0 %v178, 127
  %v276 = vpop.permute.xlu0 %275
  %277 = vrot.lane.b32.xlu0 %v179, 127
  %v278 = vpop.permute.xlu0 %277
  %279 = vrot.lane.b32.xlu0 %v180, 127
  %v280 = vpop.permute.xlu0 %279
  %281 = vrot.lane.b32.xlu0 %v181, 127
  %v282 = vpop.permute.xlu0 %281
  %vm283 = vcmask 1039360
  %v284 = vsel %vm283, %v276, %v278
  %v285 = vsel %vm283, %v278, %v280
  %v286 = vsel %vm283, %v280, %v282
  %vm290 = vcmask 1039360
  %v292 = vsel %vm290, %v282, 0
  %v294 = vmul.bf16 %v284, %v118
  %v295 = vmul.bf16 %v285, %v119
  %v296 = vmul.bf16 %v286, %v120
  %v297 = vmul.bf16 %v292, %v121
  %298 = vrot.lane.b32.xlu0 %v178, 113
  %v299 = vpop.permute.xlu0 %298
  %300 = vrot.lane.b32.xlu0 %v179, 113
  %v301 = vpop.permute.xlu0 %300
  %302 = vrot.lane.b32.xlu0 %v180, 113
  %v303 = vpop.permute.xlu0 %302
  %304 = vrot.lane.b32.xlu0 %v181, 113
  %v305 = vpop.permute.xlu0 %304
  %vm306 = vcmask 924672
  %v307 = vsel %vm306, %v299, %v301
  %v308 = vsel %vm306, %v301, %v303
  %v309 = vsel %vm306, %v303, %v305
  %vm313 = vcmask 924672
  %v315 = vsel %vm313, %v305, 0
  %v317 = vmul.bf16 %v307, %v134
  %v318 = vmul.bf16 %v308, %v135
  %v319 = vmul.bf16 %v309, %v136
  %v320 = vmul.bf16 %v315, %v137
  %321 = vrot.lane.b32.xlu0 %v178, 112
  %v322 = vpop.permute.xlu0 %321
  %323 = vrot.lane.b32.xlu0 %v179, 112
  %v324 = vpop.permute.xlu0 %323
  %325 = vrot.lane.b32.xlu0 %v180, 112
  %v326 = vpop.permute.xlu0 %325
  %327 = vrot.lane.b32.xlu0 %v181, 112
  %v328 = vpop.permute.xlu0 %327
  %vm329 = vcmask 916480
  %v330 = vsel %vm329, %v322, %v324
  %v331 = vsel %vm329, %v324, %v326
  %v332 = vsel %vm329, %v326, %v328
  %vm336 = vcmask 916480
  %v338 = vsel %vm336, %v328, 0
  %v340 = vmul.bf16 %v330, %v146
  %v341 = vmul.bf16 %v331, %v147
  %v342 = vmul.bf16 %v332, %v148
  %v343 = vmul.bf16 %v338, %v149
  %344 = vrot.lane.b32.xlu0 %v178, 111
  %v345 = vpop.permute.xlu0 %344
  %346 = vrot.lane.b32.xlu0 %v179, 111
  %v347 = vpop.permute.xlu0 %346
  %348 = vrot.lane.b32.xlu0 %v180, 111
  %v349 = vpop.permute.xlu0 %348
  %350 = vrot.lane.b32.xlu0 %v181, 111
  %v351 = vpop.permute.xlu0 %350
  %vm352 = vcmask 908288
  %v353 = vsel %vm352, %v345, %v347
  %v354 = vsel %vm352, %v347, %v349
  %v355 = vsel %vm352, %v349, %v351
  %vm359 = vcmask 908288
  %v361 = vsel %vm359, %v351, 0
  %v363 = vmul.bf16 %v353, %v162
  %v364 = vmul.bf16 %v354, %v163
  %v365 = vmul.bf16 %v355, %v164
  %v366 = vmul.bf16 %v361, %v165
  %v371 = vld [vmem:[%s1] sm:$0xff]
  %v372 = vld [vmem:[%s1 + $0x8] sm:$0xff]
  %374 = vset.pattern.permute.xlu0 0
  %375 = vperm.xlu0 %374, %v19
  %v376 = vpop.permute.xlu0 %375
  %379 = vset.pattern.permute.xlu0 0
  %380 = vperm.xlu0 %379, %v20
  %v381 = vpop.permute.xlu0 %380
  %v385 = vunpack.c.l.b16 %v371
  %v386 = vunpack.c.h.b16 %v371
  %v387 = vunpack.c.l.b16 %v372
  %v388 = vunpack.c.h.b16 %v372
  %v389 = vpack.c.b16 %v387, %v385
  %v390 = vpack.c.b16 %v388, %v386
  %v393 = vsel %vm221, %v390, 0
  %395 = vmatprep.subr.bf16.mxu0 %v203
  %396 = vmatpush1.bf16.msra.mxu0 %v202
  %397 = vmatprep.subr.bf16.mxu0 %v226
  %398 = vmatpush1.bf16.msra.mxu0 %v225
  %399 = vmatprep.subr.bf16.mxu0 %v249
  %400 = vmatpush1.bf16.msra.mxu0 %v248
  %401 = vmatprep.subr.bf16.mxu0 %v272
  %402 = vmatpush1.bf16.msra.mxu0 %v271
  %403 = vmatprep.subr.bf16.mxu0 %v179
  %404 = vmatpush1.bf16.msra.mxu0 %v178
  %405 = vmatprep.subr.bf16.mxu0 %v295
  %406 = vmatpush1.bf16.msra.mxu0 %v294
  %407 = vmatprep.subr.bf16.mxu0 %v318
  %408 = vmatpush1.bf16.msra.mxu0 %v317
  %409 = vmatprep.subr.bf16.mxu0 %v341
  %410 = vmatpush1.bf16.msra.mxu0 %v340
  %411 = vmatprep.subr.bf16.mxu0 %v364
  %412 = vmatpush1.bf16.msra.mxu0 %v363
  %413 = vmatprep.subr.bf16.mxu0 0
  %414 = vmatpush1.bf16.msra.mxu0 0
  %415 = vmatprep.subr.bf16.mxu0 0
  %416 = vmatpush1.bf16.msra.mxu0 0
  %417 = vmatprep.subr.bf16.mxu0 0
  %418 = vmatpush1.bf16.msra.mxu0 0
  %419 = vmatprep.subr.bf16.mxu0 0
  %420 = vmatpush1.bf16.msra.mxu0 0
  %421 = vmatprep.subr.bf16.mxu0 0
  %422 = vmatpush1.bf16.msra.mxu0 0
  %423 = vmatprep.subr.bf16.mxu0 0
  %424 = vmatpush1.bf16.msra.mxu0 0
  %425 = vmatprep.subr.bf16.mxu0 0
  %426 = vmatpush1.bf16.msra.mxu0 0
  %427 = vmatprep.mubr.bf16.mxu0 %v393
  %428 = vmatmul.mubr.bf16.gmra.mrb[0].mxu0 %v389
  %v429 = vpop.f32.mrb[0].mxu0
  %v430 = vadd.f32 %v376, %v429
  %v431 = vpop.f32.mrb[0].mxu0
  %v432 = vadd.f32 %v376, %v431
  %v433 = vpop.f32.mrb[0].mxu0
  %v434 = vadd.f32 %v381, %v433
  %v435 = vpop.f32.mrb[0].mxu0
  %v436 = vadd.f32 %v381, %v435
  %437 = vdwg.mxu0
  %438 = vmatprep.subr.bf16.mxu0 %v205
  %439 = vmatpush1.bf16.msra.mxu0 %v204
  %440 = vmatprep.subr.bf16.mxu0 %v228
  %441 = vmatpush1.bf16.msra.mxu0 %v227
  %442 = vmatprep.subr.bf16.mxu0 %v251
  %443 = vmatpush1.bf16.msra.mxu0 %v250
  %444 = vmatprep.subr.bf16.mxu0 %v274
  %445 = vmatpush1.bf16.msra.mxu0 %v273
  %446 = vmatprep.subr.bf16.mxu0 %v181
  %447 = vmatpush1.bf16.msra.mxu0 %v180
  %448 = vmatprep.subr.bf16.mxu0 %v297
  %449 = vmatpush1.bf16.msra.mxu0 %v296
  %450 = vmatprep.subr.bf16.mxu0 %v320
  %451 = vmatpush1.bf16.msra.mxu0 %v319
  %452 = vmatprep.subr.bf16.mxu0 %v343
  %453 = vmatpush1.bf16.msra.mxu0 %v342
  %454 = vmatprep.subr.bf16.mxu0 %v366
  %455 = vmatpush1.bf16.msra.mxu0 %v365
  %456 = vmatprep.subr.bf16.mxu0 0
  %457 = vmatpush1.bf16.msra.mxu0 0
  %458 = vmatprep.subr.bf16.mxu0 0
  %459 = vmatpush1.bf16.msra.mxu0 0
  %460 = vmatprep.subr.bf16.mxu0 0
  %461 = vmatpush1.bf16.msra.mxu0 0
  %462 = vmatprep.subr.bf16.mxu0 0
  %463 = vmatpush1.bf16.msra.mxu0 0
  %464 = vmatprep.subr.bf16.mxu0 0
  %465 = vmatpush1.bf16.msra.mxu0 0
  %466 = vmatprep.subr.bf16.mxu0 0
  %467 = vmatpush1.bf16.msra.mxu0 0
  %468 = vmatprep.subr.bf16.mxu0 0
  %469 = vmatpush1.bf16.msra.mxu0 0
  %470 = vmatprep.mubr.bf16.mxu0 %v393
  %471 = vmatmul.mubr.bf16.gmra.mrb[0].mxu0 %v389
  %v472 = vpop.f32.mrb[0].mxu0
  %v473 = vadd.f32 %v376, %v472
  %v474 = vpop.f32.mrb[0].mxu0
  %v475 = vadd.f32 %v376, %v474
  %v476 = vpop.f32.mrb[0].mxu0
  %v477 = vadd.f32 %v381, %v476
  %v478 = vpop.f32.mrb[0].mxu0
  %v479 = vadd.f32 %v381, %v478
  %480 = vdwg.mxu0
  %v481 = vmax.f32 %v430, 0.0
  %v482 = vmax.f32 %v432, 0.0
  %v483 = vmax.f32 %v473, 0.0
  %v484 = vmax.f32 %v475, 0.0
  %v485 = vmax.f32 %v434, 0.0
  %v486 = vmax.f32 %v436, 0.0
  %v487 = vmax.f32 %v477, 0.0
  %v488 = vmax.f32 %v479, 0.0
  %v489 = vpack.c.bf16 %v485, %v481
  %v490 = vpack.c.bf16 %v486, %v482
  %v491 = vpack.c.bf16 %v487, %v483
  %v492 = vpack.c.bf16 %v488, %v484
  %497 = vrot.lane.b32.xlu0 %v489, 17
  %v498 = vpop.permute.xlu0 %497
  %499 = vrot.lane.b32.xlu0 %v490, 17
  %v500 = vpop.permute.xlu0 %499
  %501 = vrot.lane.b32.xlu0 %v491, 17
  %v502 = vpop.permute.xlu0 %501
  %503 = vrot.lane.b32.xlu0 %v492, 17
  %v504 = vpop.permute.xlu0 %503
  %v505 = vsel %vm190, %v498, %v500
  %v506 = vsel %vm190, %v500, %v502
  %v507 = vsel %vm190, %v502, %v504
  %v512 = vsel %vm197, 0, %v498
  %v514 = vmul.bf16 %v512, %v66
  %v515 = vmul.bf16 %v505, %v67
  %v516 = vmul.bf16 %v506, %v68
  %v517 = vmul.bf16 %v507, %v69
  %518 = vrot.lane.b32.xlu0 %v489, 16
  %v519 = vpop.permute.xlu0 %518
  %520 = vrot.lane.b32.xlu0 %v490, 16
  %v521 = vpop.permute.xlu0 %520
  %522 = vrot.lane.b32.xlu0 %v491, 16
  %v523 = vpop.permute.xlu0 %522
  %524 = vrot.lane.b32.xlu0 %v492, 16
  %v525 = vpop.permute.xlu0 %524
  %v526 = vsel %vm214, %v519, %v521
  %v527 = vsel %vm214, %v521, %v523
  %v528 = vsel %vm214, %v523, %v525
  %v533 = vsel %vm221, 0, %v519
  %v535 = vmul.bf16 %v533, %v78
  %v536 = vmul.bf16 %v526, %v79
  %v537 = vmul.bf16 %v527, %v80
  %v538 = vmul.bf16 %v528, %v81
  %539 = vrot.lane.b32.xlu0 %v489, 15
  %v540 = vpop.permute.xlu0 %539
  %541 = vrot.lane.b32.xlu0 %v490, 15
  %v542 = vpop.permute.xlu0 %541
  %543 = vrot.lane.b32.xlu0 %v491, 15
  %v544 = vpop.permute.xlu0 %543
  %545 = vrot.lane.b32.xlu0 %v492, 15
  %v546 = vpop.permute.xlu0 %545
  %v547 = vsel %vm237, %v540, %v542
  %v548 = vsel %vm237, %v542, %v544
  %v549 = vsel %vm237, %v544, %v546
  %v554 = vsel %vm244, 0, %v540
  %v556 = vmul.bf16 %v554, %v94
  %v557 = vmul.bf16 %v547, %v95
  %v558 = vmul.bf16 %v548, %v96
  %v559 = vmul.bf16 %v549, %v97
  %560 = vrot.lane.b32.xlu0 %v489, 1
  %v561 = vpop.permute.xlu0 %560
  %562 = vrot.lane.b32.xlu0 %v490, 1
  %v563 = vpop.permute.xlu0 %562
  %564 = vrot.lane.b32.xlu0 %v491, 1
  %v565 = vpop.permute.xlu0 %564
  %566 = vrot.lane.b32.xlu0 %v492, 1
  %v567 = vpop.permute.xlu0 %566
  %v568 = vsel %vm260, %v561, %v563
  %v569 = vsel %vm260, %v563, %v565
  %v570 = vsel %vm260, %v565, %v567
  %v575 = vsel %vm267, 0, %v561
  %v577 = vmul.bf16 %v575, %v106
  %v578 = vmul.bf16 %v568, %v107
  %v579 = vmul.bf16 %v569, %v108
  %v580 = vmul.bf16 %v570, %v109
  %581 = vrot.lane.b32.xlu0 %v489, 127
  %v582 = vpop.permute.xlu0 %581
  %583 = vrot.lane.b32.xlu0 %v490, 127
  %v584 = vpop.permute.xlu0 %583
  %585 = vrot.lane.b32.xlu0 %v491, 127
  %v586 = vpop.permute.xlu0 %585
  %587 = vrot.lane.b32.xlu0 %v492, 127
  %v588 = vpop.permute.xlu0 %587
  %v589 = vsel %vm283, %v582, %v584
  %v590 = vsel %vm283, %v584, %v586
  %v591 = vsel %vm283, %v586, %v588
  %v596 = vsel %vm290, %v588, 0
  %v598 = vmul.bf16 %v589, %v118
  %v599 = vmul.bf16 %v590, %v119
  %v600 = vmul.bf16 %v591, %v120
  %v601 = vmul.bf16 %v596, %v121
  %602 = vrot.lane.b32.xlu0 %v489, 113
  %v603 = vpop.permute.xlu0 %602
  %604 = vrot.lane.b32.xlu0 %v490, 113
  %v605 = vpop.permute.xlu0 %604
  %606 = vrot.lane.b32.xlu0 %v491, 113
  %v607 = vpop.permute.xlu0 %606
  %608 = vrot.lane.b32.xlu0 %v492, 113
  %v609 = vpop.permute.xlu0 %608
  %v610 = vsel %vm306, %v603, %v605
  %v611 = vsel %vm306, %v605, %v607
  %v612 = vsel %vm306, %v607, %v609
  %v617 = vsel %vm313, %v609, 0
  %v619 = vmul.bf16 %v610, %v134
  %v620 = vmul.bf16 %v611, %v135
  %v621 = vmul.bf16 %v612, %v136
  %v622 = vmul.bf16 %v617, %v137
  %623 = vrot.lane.b32.xlu0 %v489, 112
  %v624 = vpop.permute.xlu0 %623
  %625 = vrot.lane.b32.xlu0 %v490, 112
  %v626 = vpop.permute.xlu0 %625
  %627 = vrot.lane.b32.xlu0 %v491, 112
  %v628 = vpop.permute.xlu0 %627
  %629 = vrot.lane.b32.xlu0 %v492, 112
  %v630 = vpop.permute.xlu0 %629
  %v631 = vsel %vm329, %v624, %v626
  %v632 = vsel %vm329, %v626, %v628
  %v633 = vsel %vm329, %v628, %v630
  %v638 = vsel %vm336, %v630, 0
  %v640 = vmul.bf16 %v631, %v146
  %v641 = vmul.bf16 %v632, %v147
  %v642 = vmul.bf16 %v633, %v148
  %v643 = vmul.bf16 %v638, %v149
  %644 = vrot.lane.b32.xlu0 %v489, 111
  %v645 = vpop.permute.xlu0 %644
  %646 = vrot.lane.b32.xlu0 %v490, 111
  %v647 = vpop.permute.xlu0 %646
  %648 = vrot.lane.b32.xlu0 %v491, 111
  %v649 = vpop.permute.xlu0 %648
  %650 = vrot.lane.b32.xlu0 %v492, 111
  %v651 = vpop.permute.xlu0 %650
  %v652 = vsel %vm352, %v645, %v647
  %v653 = vsel %vm352, %v647, %v649
  %v654 = vsel %vm352, %v649, %v651
  %v659 = vsel %vm359, %v651, 0
  %v661 = vmul.bf16 %v652, %v162
  %v662 = vmul.bf16 %v653, %v163
  %v663 = vmul.bf16 %v654, %v164
  %v664 = vmul.bf16 %v659, %v165
  %v665 = vld [vmem:[%s1 + $0x10] sm:$0xff]
  %v666 = vld [vmem:[%s1 + $0x18] sm:$0xff]
  %667 = vset.pattern.permute.xlu0 1
  %668 = vperm.xlu0 %667, %v19
  %v669 = vpop.permute.xlu0 %668
  %671 = vset.pattern.permute.xlu0 1
  %672 = vperm.xlu0 %671, %v20
  %v673 = vpop.permute.xlu0 %672
  %v677 = vunpack.c.l.b16 %v665
  %v678 = vunpack.c.h.b16 %v665
  %v679 = vunpack.c.l.b16 %v666
  %v680 = vunpack.c.h.b16 %v666
  %v681 = vpack.c.b16 %v679, %v677
  %v682 = vpack.c.b16 %v680, %v678
  %v685 = vsel %vm221, %v682, 0
  %687 = vmatprep.subr.bf16.mxu0 %v515
  %688 = vmatpush1.bf16.msra.mxu0 %v514
  %689 = vmatprep.subr.bf16.mxu0 %v536
  %690 = vmatpush1.bf16.msra.mxu0 %v535
  %691 = vmatprep.subr.bf16.mxu0 %v557
  %692 = vmatpush1.bf16.msra.mxu0 %v556
  %693 = vmatprep.subr.bf16.mxu0 %v578
  %694 = vmatpush1.bf16.msra.mxu0 %v577
  %695 = vmatprep.subr.bf16.mxu0 %v490
  %696 = vmatpush1.bf16.msra.mxu0 %v489
  %697 = vmatprep.subr.bf16.mxu0 %v599
  %698 = vmatpush1.bf16.msra.mxu0 %v598
  %699 = vmatprep.subr.bf16.mxu0 %v620
  %700 = vmatpush1.bf16.msra.mxu0 %v619
  %701 = vmatprep.subr.bf16.mxu0 %v641
  %702 = vmatpush1.bf16.msra.mxu0 %v640
  %703 = vmatprep.subr.bf16.mxu0 %v662
  %704 = vmatpush1.bf16.msra.mxu0 %v661
  %705 = vmatprep.subr.bf16.mxu0 0
  %706 = vmatpush1.bf16.msra.mxu0 0
  %707 = vmatprep.subr.bf16.mxu0 0
  %708 = vmatpush1.bf16.msra.mxu0 0
  %709 = vmatprep.subr.bf16.mxu0 0
  %710 = vmatpush1.bf16.msra.mxu0 0
  %711 = vmatprep.subr.bf16.mxu0 0
  %712 = vmatpush1.bf16.msra.mxu0 0
  %713 = vmatprep.subr.bf16.mxu0 0
  %714 = vmatpush1.bf16.msra.mxu0 0
  %715 = vmatprep.subr.bf16.mxu0 0
  %716 = vmatpush1.bf16.msra.mxu0 0
  %717 = vmatprep.subr.bf16.mxu0 0
  %718 = vmatpush1.bf16.msra.mxu0 0
  %719 = vmatprep.mubr.bf16.mxu0 %v685
  %720 = vmatmul.mubr.bf16.gmra.mrb[0].mxu0 %v681
  %v721 = vpop.f32.mrb[0].mxu0
  %v722 = vadd.f32 %v669, %v721
  %v723 = vpop.f32.mrb[0].mxu0
  %v724 = vadd.f32 %v669, %v723
  %v725 = vpop.f32.mrb[0].mxu0
  %v726 = vadd.f32 %v673, %v725
  %v727 = vpop.f32.mrb[0].mxu0
  %v728 = vadd.f32 %v673, %v727
  %729 = vdwg.mxu0
  %730 = vmatprep.subr.bf16.mxu0 %v517
  %731 = vmatpush1.bf16.msra.mxu0 %v516
  %732 = vmatprep.subr.bf16.mxu0 %v538
  %733 = vmatpush1.bf16.msra.mxu0 %v537
  %734 = vmatprep.subr.bf16.mxu0 %v559
  %735 = vmatpush1.bf16.msra.mxu0 %v558
  %736 = vmatprep.subr.bf16.mxu0 %v580
  %737 = vmatpush1.bf16.msra.mxu0 %v579
  %738 = vmatprep.subr.bf16.mxu0 %v492
  %739 = vmatpush1.bf16.msra.mxu0 %v491
  %740 = vmatprep.subr.bf16.mxu0 %v601
  %741 = vmatpush1.bf16.msra.mxu0 %v600
  %742 = vmatprep.subr.bf16.mxu0 %v622
  %743 = vmatpush1.bf16.msra.mxu0 %v621
  %744 = vmatprep.subr.bf16.mxu0 %v643
  %745 = vmatpush1.bf16.msra.mxu0 %v642
  %746 = vmatprep.subr.bf16.mxu0 %v664
  %747 = vmatpush1.bf16.msra.mxu0 %v663
  %748 = vmatprep.subr.bf16.mxu0 0
  %749 = vmatpush1.bf16.msra.mxu0 0
  %750 = vmatprep.subr.bf16.mxu0 0
  %751 = vmatpush1.bf16.msra.mxu0 0
  %752 = vmatprep.subr.bf16.mxu0 0
  %753 = vmatpush1.bf16.msra.mxu0 0
  %754 = vmatprep.subr.bf16.mxu0 0
  %755 = vmatpush1.bf16.msra.mxu0 0
  %756 = vmatprep.subr.bf16.mxu0 0
  %757 = vmatpush1.bf16.msra.mxu0 0
  %758 = vmatprep.subr.bf16.mxu0 0
  %759 = vmatpush1.bf16.msra.mxu0 0
  %760 = vmatprep.subr.bf16.mxu0 0
  %761 = vmatpush1.bf16.msra.mxu0 0
  %762 = vmatprep.mubr.bf16.mxu0 %v685
  %763 = vmatmul.mubr.bf16.gmra.mrb[0].mxu0 %v681
  %v764 = vpop.f32.mrb[0].mxu0
  %v765 = vadd.f32 %v669, %v764
  %v766 = vpop.f32.mrb[0].mxu0
  %v767 = vadd.f32 %v669, %v766
  %v768 = vpop.f32.mrb[0].mxu0
  %v769 = vadd.f32 %v673, %v768
  %v770 = vpop.f32.mrb[0].mxu0
  %v771 = vadd.f32 %v673, %v770
  %772 = vdwg.mxu0
  %v773 = vmax.f32 %v722, 0.0
  %v774 = vmax.f32 %v724, 0.0
  %v775 = vmax.f32 %v765, 0.0
  %v776 = vmax.f32 %v767, 0.0
  %v777 = vmax.f32 %v726, 0.0
  %v778 = vmax.f32 %v728, 0.0
  %v779 = vmax.f32 %v769, 0.0
  %v780 = vmax.f32 %v771, 0.0
  %v781 = vpack.c.bf16 %v777, %v773
  %v782 = vpack.c.bf16 %v778, %v774
  %v783 = vpack.c.bf16 %v779, %v775
  %v784 = vpack.c.bf16 %v780, %v776
  %v785 = vlaneseq
  %v786 = vshrl.u32 %v785, 7
  %v787 = vadd.s32 %v786, 8
  %v788 = vadd.s32 %v786, 16
  %v789 = vadd.s32 %v786, 24
  %v790 = vadd.s32 %v786, 32
  %v791 = vadd.s32 %v786, 40
  %v792 = vadd.s32 %v786, 48
  %v793 = vadd.s32 %v786, 56
  %v794 = vadd.s32 %v786, 64
  %v795 = vadd.s32 %v786, 72
  %v796 = vadd.s32 %v786, 80
  %v797 = vadd.s32 %v786, 88
  %v798 = vadd.s32 %v786, 96
  %v799 = vadd.s32 %v786, 104
  %v800 = vadd.s32 %v786, 112
  %v801 = vadd.s32 %v786, 120
  %v802 = vadd.s32 %v786, 128
  %v803 = vadd.s32 %v786, 136
  %v804 = vadd.s32 %v786, 144
  %v805 = vadd.s32 %v786, 152
  %v806 = vadd.s32 %v786, 160
  %v807 = vadd.s32 %v786, 168
  %v808 = vadd.s32 %v786, 176
  %v809 = vadd.s32 %v786, 184
  %v810 = vadd.s32 %v786, 192
  %v811 = vadd.s32 %v786, 200
  %v812 = vadd.s32 %v786, 208
  %v813 = vadd.s32 %v786, 216
  %v814 = vadd.s32 %v786, 224
  %v815 = vadd.s32 %v786, 232
  %v816 = vadd.s32 %v786, 240
  %v817 = vadd.s32 %v786, 248
  %v818 = vadd.s32 %v786, 256
  %v819 = vadd.s32 %v786, 264
  %v820 = vadd.s32 %v786, 272
  %v821 = vadd.s32 %v786, 280
  %v822 = vadd.s32 %v786, 288
  %v823 = vadd.s32 %v786, 296
  %v824 = vadd.s32 %v786, 304
  %v825 = vadd.s32 %v786, 312
  %v826 = vadd.s32 %v786, 320
  %v827 = vadd.s32 %v786, 328
  %v828 = vadd.s32 %v786, 336
  %v829 = vadd.s32 %v786, 344
  %v830 = vadd.s32 %v786, 352
  %v831 = vadd.s32 %v786, 360
  %v832 = vadd.s32 %v786, 368
  %v833 = vadd.s32 %v786, 376
  %v834 = vadd.s32 %v786, 384
  %v835 = vadd.s32 %v786, 392
  %v836 = vadd.s32 %v786, 400
  %v837 = vadd.s32 %v786, 408
  %v838 = vadd.s32 %v786, 416
  %v839 = vadd.s32 %v786, 424
  %v840 = vadd.s32 %v786, 432
  %v841 = vadd.s32 %v786, 440
  %v842 = vadd.s32 %v786, 448
  %v843 = vadd.s32 %v786, 456
  %v844 = vadd.s32 %v786, 464
  %v845 = vadd.s32 %v786, 472
  %v846 = vadd.s32 %v786, 480
  %v847 = vadd.s32 %v786, 488
  %v848 = vadd.s32 %v786, 496
  %v849 = vadd.s32 %v786, 504
  %v850 = vshra.s32 %v22, 6
  %v851 = vand.u32 %v22, 63
  %v852 = vmul.u32 %v850, 256
  %v853 = vshra.s32 %v851, 3
  %v854 = vmul.u32 %v853, 2
  %v855 = vmul.u32 %v854, 16
  %v856 = vadd.s32 %v852, %v855
  %v857 = vand.u32 %v851, 7
  %v858 = vmul.u32 %v857, 2
  %v859 = vadd.s32 %v856, %v858
  %vm860 = vcmp.eq.s32.totalorder %v786, %v859
  %vm861 = vcmp.eq.s32.totalorder %v787, %v859
  %vm862 = vcmp.eq.s32.totalorder %v788, %v859
  %vm863 = vcmp.eq.s32.totalorder %v789, %v859
  %vm864 = vcmp.eq.s32.totalorder %v790, %v859
  %vm865 = vcmp.eq.s32.totalorder %v791, %v859
  %vm866 = vcmp.eq.s32.totalorder %v792, %v859
  %vm867 = vcmp.eq.s32.totalorder %v793, %v859
  %vm868 = vcmp.eq.s32.totalorder %v794, %v859
  %vm869 = vcmp.eq.s32.totalorder %v795, %v859
  %vm870 = vcmp.eq.s32.totalorder %v796, %v859
  %vm871 = vcmp.eq.s32.totalorder %v797, %v859
  %vm872 = vcmp.eq.s32.totalorder %v798, %v859
  %vm873 = vcmp.eq.s32.totalorder %v799, %v859
  %vm874 = vcmp.eq.s32.totalorder %v800, %v859
  %vm875 = vcmp.eq.s32.totalorder %v801, %v859
  %vm876 = vcmp.eq.s32.totalorder %v802, %v859
  %vm877 = vcmp.eq.s32.totalorder %v803, %v859
  %vm878 = vcmp.eq.s32.totalorder %v804, %v859
  %vm879 = vcmp.eq.s32.totalorder %v805, %v859
  %vm880 = vcmp.eq.s32.totalorder %v806, %v859
  %vm881 = vcmp.eq.s32.totalorder %v807, %v859
  %vm882 = vcmp.eq.s32.totalorder %v808, %v859
  %vm883 = vcmp.eq.s32.totalorder %v809, %v859
  %vm884 = vcmp.eq.s32.totalorder %v810, %v859
  %vm885 = vcmp.eq.s32.totalorder %v811, %v859
  %vm886 = vcmp.eq.s32.totalorder %v812, %v859
  %vm887 = vcmp.eq.s32.totalorder %v813, %v859
  %vm888 = vcmp.eq.s32.totalorder %v814, %v859
  %vm889 = vcmp.eq.s32.totalorder %v815, %v859
  %vm890 = vcmp.eq.s32.totalorder %v816, %v859
  %vm891 = vcmp.eq.s32.totalorder %v817, %v859
  %vm892 = vcmp.eq.s32.totalorder %v818, %v859
  %vm893 = vcmp.eq.s32.totalorder %v819, %v859
  %vm894 = vcmp.eq.s32.totalorder %v820, %v859
  %vm895 = vcmp.eq.s32.totalorder %v821, %v859
  %vm896 = vcmp.eq.s32.totalorder %v822, %v859
  %vm897 = vcmp.eq.s32.totalorder %v823, %v859
  %vm898 = vcmp.eq.s32.totalorder %v824, %v859
  %vm899 = vcmp.eq.s32.totalorder %v825, %v859
  %vm900 = vcmp.eq.s32.totalorder %v826, %v859
  %vm901 = vcmp.eq.s32.totalorder %v827, %v859
  %vm902 = vcmp.eq.s32.totalorder %v828, %v859
  %vm903 = vcmp.eq.s32.totalorder %v829, %v859
  %vm904 = vcmp.eq.s32.totalorder %v830, %v859
  %vm905 = vcmp.eq.s32.totalorder %v831, %v859
  %vm906 = vcmp.eq.s32.totalorder %v832, %v859
  %vm907 = vcmp.eq.s32.totalorder %v833, %v859
  %vm908 = vcmp.eq.s32.totalorder %v834, %v859
  %vm909 = vcmp.eq.s32.totalorder %v835, %v859
  %vm910 = vcmp.eq.s32.totalorder %v836, %v859
  %vm911 = vcmp.eq.s32.totalorder %v837, %v859
  %vm912 = vcmp.eq.s32.totalorder %v838, %v859
  %vm913 = vcmp.eq.s32.totalorder %v839, %v859
  %vm914 = vcmp.eq.s32.totalorder %v840, %v859
  %vm915 = vcmp.eq.s32.totalorder %v841, %v859
  %vm916 = vcmp.eq.s32.totalorder %v842, %v859
  %vm917 = vcmp.eq.s32.totalorder %v843, %v859
  %vm918 = vcmp.eq.s32.totalorder %v844, %v859
  %vm919 = vcmp.eq.s32.totalorder %v845, %v859
  %vm920 = vcmp.eq.s32.totalorder %v846, %v859
  %vm921 = vcmp.eq.s32.totalorder %v847, %v859
  %vm922 = vcmp.eq.s32.totalorder %v848, %v859
  %vm923 = vcmp.eq.s32.totalorder %v849, %v859
  %v924 = vsel %vm860, 1, 0
  %v925 = vsel %vm861, 1, 0
  %v926 = vsel %vm862, 1, 0
  %v927 = vsel %vm863, 1, 0
  %v928 = vsel %vm864, 1, 0
  %v929 = vsel %vm865, 1, 0
  %v930 = vsel %vm866, 1, 0
  %v931 = vsel %vm867, 1, 0
  %v932 = vsel %vm868, 1, 0
  %v933 = vsel %vm869, 1, 0
  %v934 = vsel %vm870, 1, 0
  %v935 = vsel %vm871, 1, 0
  %v936 = vsel %vm872, 1, 0
  %v937 = vsel %vm873, 1, 0
  %v938 = vsel %vm874, 1, 0
  %v939 = vsel %vm875, 1, 0
  %v940 = vsel %vm876, 1, 0
  %v941 = vsel %vm877, 1, 0
  %v942 = vsel %vm878, 1, 0
  %v943 = vsel %vm879, 1, 0
  %v944 = vsel %vm880, 1, 0
  %v945 = vsel %vm881, 1, 0
  %v946 = vsel %vm882, 1, 0
  %v947 = vsel %vm883, 1, 0
  %v948 = vsel %vm884, 1, 0
  %v949 = vsel %vm885, 1, 0
  %v950 = vsel %vm886, 1, 0
  %v951 = vsel %vm887, 1, 0
  %v952 = vsel %vm888, 1, 0
  %v953 = vsel %vm889, 1, 0
  %v954 = vsel %vm890, 1, 0
  %v955 = vsel %vm891, 1, 0
  %v956 = vsel %vm892, 1, 0
  %v957 = vsel %vm893, 1, 0
  %v958 = vsel %vm894, 1, 0
  %v959 = vsel %vm895, 1, 0
  %v960 = vsel %vm896, 1, 0
  %v961 = vsel %vm897, 1, 0
  %v962 = vsel %vm898, 1, 0
  %v963 = vsel %vm899, 1, 0
  %v964 = vsel %vm900, 1, 0
  %v965 = vsel %vm901, 1, 0
  %v966 = vsel %vm902, 1, 0
  %v967 = vsel %vm903, 1, 0
  %v968 = vsel %vm904, 1, 0
  %v969 = vsel %vm905, 1, 0
  %v970 = vsel %vm906, 1, 0
  %v971 = vsel %vm907, 1, 0
  %v972 = vsel %vm908, 1, 0
  %v973 = vsel %vm909, 1, 0
  %v974 = vsel %vm910, 1, 0
  %v975 = vsel %vm911, 1, 0
  %v976 = vsel %vm912, 1, 0
  %v977 = vsel %vm913, 1, 0
  %v978 = vsel %vm914, 1, 0
  %v979 = vsel %vm915, 1, 0
  %v980 = vsel %vm916, 1, 0
  %v981 = vsel %vm917, 1, 0
  %v982 = vsel %vm918, 1, 0
  %v983 = vsel %vm919, 1, 0
  %v984 = vsel %vm920, 1, 0
  %v985 = vsel %vm921, 1, 0
  %v986 = vsel %vm922, 1, 0
  %v987 = vsel %vm923, 1, 0
  %v988 = vcvt.s32.f32 %v924
  %v989 = vcvt.s32.f32 %v925
  %v990 = vcvt.s32.f32 %v926
  %v991 = vcvt.s32.f32 %v927
  %v992 = vcvt.s32.f32 %v928
  %v993 = vcvt.s32.f32 %v929
  %v994 = vcvt.s32.f32 %v930
  %v995 = vcvt.s32.f32 %v931
  %v996 = vcvt.s32.f32 %v932
  %v997 = vcvt.s32.f32 %v933
  %v998 = vcvt.s32.f32 %v934
  %v999 = vcvt.s32.f32 %v935
  %v1000 = vcvt.s32.f32 %v936
  %v1001 = vcvt.s32.f32 %v937
  %v1002 = vcvt.s32.f32 %v938
  %v1003 = vcvt.s32.f32 %v939
  %v1004 = vcvt.s32.f32 %v940
  %v1005 = vcvt.s32.f32 %v941
  %v1006 = vcvt.s32.f32 %v942
  %v1007 = vcvt.s32.f32 %v943
  %v1008 = vcvt.s32.f32 %v944
  %v1009 = vcvt.s32.f32 %v945
  %v1010 = vcvt.s32.f32 %v946
  %v1011 = vcvt.s32.f32 %v947
  %v1012 = vcvt.s32.f32 %v948
  %v1013 = vcvt.s32.f32 %v949
  %v1014 = vcvt.s32.f32 %v950
  %v1015 = vcvt.s32.f32 %v951
  %v1016 = vcvt.s32.f32 %v952
  %v1017 = vcvt.s32.f32 %v953
  %v1018 = vcvt.s32.f32 %v954
  %v1019 = vcvt.s32.f32 %v955
  %v1020 = vcvt.s32.f32 %v956
  %v1021 = vcvt.s32.f32 %v957
  %v1022 = vcvt.s32.f32 %v958
  %v1023 = vcvt.s32.f32 %v959
  %v1024 = vcvt.s32.f32 %v960
  %v1025 = vcvt.s32.f32 %v961
  %v1026 = vcvt.s32.f32 %v962
  %v1027 = vcvt.s32.f32 %v963
  %v1028 = vcvt.s32.f32 %v964
  %v1029 = vcvt.s32.f32 %v965
  %v1030 = vcvt.s32.f32 %v966
  %v1031 = vcvt.s32.f32 %v967
  %v1032 = vcvt.s32.f32 %v968
  %v1033 = vcvt.s32.f32 %v969
  %v1034 = vcvt.s32.f32 %v970
  %v1035 = vcvt.s32.f32 %v971
  %v1036 = vcvt.s32.f32 %v972
  %v1037 = vcvt.s32.f32 %v973
  %v1038 = vcvt.s32.f32 %v974
  %v1039 = vcvt.s32.f32 %v975
  %v1040 = vcvt.s32.f32 %v976
  %v1041 = vcvt.s32.f32 %v977
  %v1042 = vcvt.s32.f32 %v978
  %v1043 = vcvt.s32.f32 %v979
  %v1044 = vcvt.s32.f32 %v980
  %v1045 = vcvt.s32.f32 %v981
  %v1046 = vcvt.s32.f32 %v982
  %v1047 = vcvt.s32.f32 %v983
  %v1048 = vcvt.s32.f32 %v984
  %v1049 = vcvt.s32.f32 %v985
  %v1050 = vcvt.s32.f32 %v986
  %v1051 = vcvt.s32.f32 %v987
  %v1052 = vpack.c.bf16 %v989, %v988
  %v1053 = vpack.c.bf16 %v991, %v990
  %v1054 = vpack.c.bf16 %v993, %v992
  %v1055 = vpack.c.bf16 %v995, %v994
  %v1056 = vpack.c.bf16 %v997, %v996
  %v1057 = vpack.c.bf16 %v999, %v998
  %v1058 = vpack.c.bf16 %v1001, %v1000
  %v1059 = vpack.c.bf16 %v1003, %v1002
  %v1060 = vpack.c.bf16 %v1005, %v1004
  %v1061 = vpack.c.bf16 %v1007, %v1006
  %v1062 = vpack.c.bf16 %v1009, %v1008
  %v1063 = vpack.c.bf16 %v1011, %v1010
  %v1064 = vpack.c.bf16 %v1013, %v1012
  %v1065 = vpack.c.bf16 %v1015, %v1014
  %v1066 = vpack.c.bf16 %v1017, %v1016
  %v1067 = vpack.c.bf16 %v1019, %v1018
  %v1068 = vpack.c.bf16 %v1021, %v1020
  %v1069 = vpack.c.bf16 %v1023, %v1022
  %v1070 = vpack.c.bf16 %v1025, %v1024
  %v1071 = vpack.c.bf16 %v1027, %v1026
  %v1072 = vpack.c.bf16 %v1029, %v1028
  %v1073 = vpack.c.bf16 %v1031, %v1030
  %v1074 = vpack.c.bf16 %v1033, %v1032
  %v1075 = vpack.c.bf16 %v1035, %v1034
  %v1076 = vpack.c.bf16 %v1037, %v1036
  %v1077 = vpack.c.bf16 %v1039, %v1038
  %v1078 = vpack.c.bf16 %v1041, %v1040
  %v1079 = vpack.c.bf16 %v1043, %v1042
  %v1080 = vpack.c.bf16 %v1045, %v1044
  %v1081 = vpack.c.bf16 %v1047, %v1046
  %v1082 = vpack.c.bf16 %v1049, %v1048
  %v1083 = vpack.c.bf16 %v1051, %v1050
  %1084 = vmatprep.subr.bf16.mxu0 0
  %1085 = vmatpush1.bf16.msra.mxu0 %v1052
  %1086 = vmatprep.subr.bf16.mxu0 0
  %1087 = vmatpush1.bf16.msra.mxu0 %v1053
  %1088 = vmatprep.subr.bf16.mxu0 0
  %1089 = vmatpush1.bf16.msra.mxu0 %v1054
  %1090 = vmatprep.subr.bf16.mxu0 0
  %1091 = vmatpush1.bf16.msra.mxu0 %v1055
  %1092 = vmatprep.subr.bf16.mxu0 0
  %1093 = vmatpush1.bf16.msra.mxu0 %v1056
  %1094 = vmatprep.subr.bf16.mxu0 0
  %1095 = vmatpush1.bf16.msra.mxu0 %v1057
  %1096 = vmatprep.subr.bf16.mxu0 0
  %1097 = vmatpush1.bf16.msra.mxu0 %v1058
  %1098 = vmatprep.subr.bf16.mxu0 0
  %1099 = vmatpush1.bf16.msra.mxu0 %v1059
  %1100 = vmatprep.subr.bf16.mxu0 0
  %1101 = vmatpush1.bf16.msra.mxu0 %v1060
  %1102 = vmatprep.subr.bf16.mxu0 0
  %1103 = vmatpush1.bf16.msra.mxu0 %v1061
  %1104 = vmatprep.subr.bf16.mxu0 0
  %1105 = vmatpush1.bf16.msra.mxu0 %v1062
  %1106 = vmatprep.subr.bf16.mxu0 0
  %1107 = vmatpush1.bf16.msra.mxu0 %v1063
  %1108 = vmatprep.subr.bf16.mxu0 0
  %1109 = vmatpush1.bf16.msra.mxu0 %v1064
  %1110 = vmatprep.subr.bf16.mxu0 0
  %1111 = vmatpush1.bf16.msra.mxu0 %v1065
  %1112 = vmatprep.subr.bf16.mxu0 0
  %1113 = vmatpush1.bf16.msra.mxu0 %v1066
  %1114 = vmatprep.subr.bf16.mxu0 0
  %1115 = vmatpush1.bf16.msra.mxu0 %v1067
  %1116 = vmatprep.mubr.bf16.mxu0 %v782
  %1117 = vmatmul.mubr.bf16.gmra.mrb[0].mxu0 %v781
  %v1118 = vpop.f32.mrb[0].mxu0
  %v1119 = vadd.f32 0.0, %v1118
  %v1120 = vpop.f32.mrb[0].mxu0
  %v1121 = vpop.f32.mrb[0].mxu0
  %v1122 = vadd.f32 0.0, %v1121
  %v1123 = vpop.f32.mrb[0].mxu0
  %1124 = vdwg.mxu0
  %1125 = vmatprep.subr.bf16.mxu0 0
  %1126 = vmatpush1.bf16.msra.mxu0 %v1068
  %1127 = vmatprep.subr.bf16.mxu0 0
  %1128 = vmatpush1.bf16.msra.mxu0 %v1069
  %1129 = vmatprep.subr.bf16.mxu0 0
  %1130 = vmatpush1.bf16.msra.mxu0 %v1070
  %1131 = vmatprep.subr.bf16.mxu0 0
  %1132 = vmatpush1.bf16.msra.mxu0 %v1071
  %1133 = vmatprep.subr.bf16.mxu0 0
  %1134 = vmatpush1.bf16.msra.mxu0 %v1072
  %1135 = vmatprep.subr.bf16.mxu0 0
  %1136 = vmatpush1.bf16.msra.mxu0 %v1073
  %1137 = vmatprep.subr.bf16.mxu0 0
  %1138 = vmatpush1.bf16.msra.mxu0 %v1074
  %1139 = vmatprep.subr.bf16.mxu0 0
  %1140 = vmatpush1.bf16.msra.mxu0 %v1075
  %1141 = vmatprep.subr.bf16.mxu0 0
  %1142 = vmatpush1.bf16.msra.mxu0 %v1076
  %1143 = vmatprep.subr.bf16.mxu0 0
  %1144 = vmatpush1.bf16.msra.mxu0 %v1077
  %1145 = vmatprep.subr.bf16.mxu0 0
  %1146 = vmatpush1.bf16.msra.mxu0 %v1078
  %1147 = vmatprep.subr.bf16.mxu0 0
  %1148 = vmatpush1.bf16.msra.mxu0 %v1079
  %1149 = vmatprep.subr.bf16.mxu0 0
  %1150 = vmatpush1.bf16.msra.mxu0 %v1080
  %1151 = vmatprep.subr.bf16.mxu0 0
  %1152 = vmatpush1.bf16.msra.mxu0 %v1081
  %1153 = vmatprep.subr.bf16.mxu0 0
  %1154 = vmatpush1.bf16.msra.mxu0 %v1082
  %1155 = vmatprep.subr.bf16.mxu0 0
  %1156 = vmatpush1.bf16.msra.mxu0 %v1083
  %1157 = vmatprep.mubr.bf16.mxu0 %v784
  %1158 = vmatmul.mubr.bf16.gmra.mrb[0].mxu0 %v783
  %v1159 = vpop.f32.mrb[0].mxu0
  %v1160 = vadd.f32 %v1119, %v1159
  %v1161 = vpop.f32.mrb[0].mxu0
  %v1162 = vpop.f32.mrb[0].mxu0
  %v1163 = vadd.f32 %v1122, %v1162
  %v1164 = vpop.f32.mrb[0].mxu0
  %1165 = vdwg.mxu0
  %v1166 = vpack.c.bf16 %v1163, %v1160
  %vm1167 = vcmp.ge.s32.totalorder %v853, 1
  %vm1168 = vcmp.le.s32.totalorder %v853, 6
  %vm1169 = vcmp.ge.s32.totalorder %v857, 1
  %vm1170 = vcmp.le.s32.totalorder %v857, 6
  %vm1171 = vmand %vm1167, %vm1169
  %v1172 = vsel %vm1171, 1, 0
  %v1173 = vcvt.s32.f32 %v1172
  %v1174 = vpack.c.bf16 %v1173, %v1173
  %v1175 = vsel %vm1167, 1, 0
  %v1176 = vcvt.s32.f32 %v1175
  %v1177 = vpack.c.bf16 %v1176, %v1176
  %vm1178 = vmand %vm1167, %vm1170
  %v1179 = vsel %vm1178, 1, 0
  %v1180 = vcvt.s32.f32 %v1179
  %v1181 = vpack.c.bf16 %v1180, %v1180
  %v1182 = vsel %vm1169, 1, 0
  %v1183 = vcvt.s32.f32 %v1182
  %v1184 = vpack.c.bf16 %v1183, %v1183
  %v1185 = vsel %vm1170, 1, 0
  %v1186 = vcvt.s32.f32 %v1185
  %v1187 = vpack.c.bf16 %v1186, %v1186
  %vm1188 = vmand %vm1168, %vm1169
  %v1189 = vsel %vm1188, 1, 0
  %v1190 = vcvt.s32.f32 %v1189
  %v1191 = vpack.c.bf16 %v1190, %v1190
  %v1192 = vsel %vm1168, 1, 0
  %v1193 = vcvt.s32.f32 %v1192
  %v1194 = vpack.c.bf16 %v1193, %v1193
  %vm1195 = vmand %vm1168, %vm1170
  %v1196 = vsel %vm1195, 1, 0
  %v1197 = vcvt.s32.f32 %v1196
  %v1198 = vpack.c.bf16 %v1197, %v1197
  %1200 = vrot.lane.b32.xlu0 %v1166, 9
  %v1201 = vpop.permute.xlu0 %1200
  %vm1202 = vcmask 72704
  %v1204 = vsel %vm1202, 0, %v1201
  %v1206 = vmul.bf16 %v1204, %v1174
  %1207 = vrot.lane.b32.xlu0 %v1166, 8
  %v1208 = vpop.permute.xlu0 %1207
  %vm1209 = vcmask 64512
  %v1211 = vsel %vm1209, 0, %v1208
  %v1213 = vmul.bf16 %v1211, %v1177
  %1214 = vrot.lane.b32.xlu0 %v1166, 7
  %v1215 = vpop.permute.xlu0 %1214
  %vm1216 = vcmask 56320
  %v1218 = vsel %vm1216, 0, %v1215
  %v1220 = vmul.bf16 %v1218, %v1181
  %1221 = vrot.lane.b32.xlu0 %v1166, 1
  %v1222 = vpop.permute.xlu0 %1221
  %v1224 = vsel %vm267, 0, %v1222
  %v1226 = vmul.bf16 %v1224, %v1184
  %1227 = vrot.lane.b32.xlu0 %v1166, 127
  %v1228 = vpop.permute.xlu0 %1227
  %v1230 = vsel %vm290, %v1228, 0
  %v1232 = vmul.bf16 %v1230, %v1187
  %1233 = vrot.lane.b32.xlu0 %v1166, 121
  %v1234 = vpop.permute.xlu0 %1233
  %vm1235 = vcmask 990208
  %v1237 = vsel %vm1235, %v1234, 0
  %v1239 = vmul.bf16 %v1237, %v1191
  %1240 = vrot.lane.b32.xlu0 %v1166, 120
  %v1241 = vpop.permute.xlu0 %1240
  %vm1242 = vcmask 982016
  %v1244 = vsel %vm1242, %v1241, 0
  %v1246 = vmul.bf16 %v1244, %v1194
  %1247 = vrot.lane.b32.xlu0 %v1166, 119
  %v1248 = vpop.permute.xlu0 %1247
  %vm1249 = vcmask 973824
  %v1251 = vsel %vm1249, %v1248, 0
  %v1253 = vmul.bf16 %v1251, %v1198
  %v1254 = vld [vmem:[%s1 + $0x20] sm:$0xff]
  %v1255 = vld [vmem:[%s1 + $0x28] sm:$0xff]
  %1256 = vset.pattern.permute.xlu0 2
  %1257 = vperm.xlu0 %1256, %v19
  %v1258 = vpop.permute.xlu0 %1257
  %1260 = vset.pattern.permute.xlu0 2
  %1261 = vperm.xlu0 %1260, %v20
  %v1262 = vpop.permute.xlu0 %1261
  %v1266 = vunpack.c.l.b16 %v1254
  %v1267 = vunpack.c.h.b16 %v1254
  %v1268 = vunpack.c.l.b16 %v1255
  %v1269 = vunpack.c.h.b16 %v1255
  %v1270 = vpack.c.b16 %v1268, %v1266
  %v1271 = vpack.c.b16 %v1269, %v1267
  %v1274 = vsel %vm221, %v1271, 0
  %1276 = vmatprep.subr.bf16.mxu0 0
  %1277 = vmatpush1.bf16.msra.mxu0 %v1206
  %1278 = vmatprep.subr.bf16.mxu0 0
  %1279 = vmatpush1.bf16.msra.mxu0 %v1213
  %1280 = vmatprep.subr.bf16.mxu0 0
  %1281 = vmatpush1.bf16.msra.mxu0 %v1220
  %1282 = vmatprep.subr.bf16.mxu0 0
  %1283 = vmatpush1.bf16.msra.mxu0 %v1226
  %1284 = vmatprep.subr.bf16.mxu0 0
  %1285 = vmatpush1.bf16.msra.mxu0 %v1166
  %1286 = vmatprep.subr.bf16.mxu0 0
  %1287 = vmatpush1.bf16.msra.mxu0 %v1232
  %1288 = vmatprep.subr.bf16.mxu0 0
  %1289 = vmatpush1.bf16.msra.mxu0 %v1239
  %1290 = vmatprep.subr.bf16.mxu0 0
  %1291 = vmatpush1.bf16.msra.mxu0 %v1246
  %1292 = vmatprep.subr.bf16.mxu0 0
  %1293 = vmatpush1.bf16.msra.mxu0 %v1253
  %1294 = vmatprep.subr.bf16.mxu0 0
  %1295 = vmatpush1.bf16.msra.mxu0 0
  %1296 = vmatprep.subr.bf16.mxu0 0
  %1297 = vmatpush1.bf16.msra.mxu0 0
  %1298 = vmatprep.subr.bf16.mxu0 0
  %1299 = vmatpush1.bf16.msra.mxu0 0
  %1300 = vmatprep.subr.bf16.mxu0 0
  %1301 = vmatpush1.bf16.msra.mxu0 0
  %1302 = vmatprep.subr.bf16.mxu0 0
  %1303 = vmatpush1.bf16.msra.mxu0 0
  %1304 = vmatprep.subr.bf16.mxu0 0
  %1305 = vmatpush1.bf16.msra.mxu0 0
  %1306 = vmatprep.subr.bf16.mxu0 0
  %1307 = vmatpush1.bf16.msra.mxu0 0
  %1308 = vmatprep.mubr.bf16.mxu0 %v1274
  %1309 = vmatmul.mubr.bf16.gmra.mrb[0].mxu0 %v1270
  %v1310 = vpop.f32.mrb[0].mxu0
  %v1311 = vadd.f32 %v1258, %v1310
  %v1312 = vpop.f32.mrb[0].mxu0
  %v1313 = vpop.f32.mrb[0].mxu0
  %v1314 = vadd.f32 %v1262, %v1313
  %v1315 = vpop.f32.mrb[0].mxu0
  %1316 = vdwg.mxu0
  %v1317 = vmax.f32 %v1311, 0.0
  %v1318 = vmax.f32 %v1314, 0.0
  %v1319 = vpack.c.bf16 %v1318, %v1317
  %v1320 = vshra.s32 %v22, 4
  %v1321 = vand.u32 %v22, 15
  %v1322 = vmul.u32 %v1320, 64
  %v1323 = vshra.s32 %v1321, 2
  %v1324 = vmul.u32 %v1323, 2
  %v1325 = vmul.u32 %v1324, 8
  %v1326 = vadd.s32 %v1322, %v1325
  %v1327 = vand.u32 %v1321, 3
  %v1328 = vmul.u32 %v1327, 2
  %v1329 = vadd.s32 %v1326, %v1328
  %vm1330 = vcmp.eq.s32.totalorder %v786, %v1329
  %vm1331 = vcmp.eq.s32.totalorder %v787, %v1329
  %vm1332 = vcmp.eq.s32.totalorder %v788, %v1329
  %vm1333 = vcmp.eq.s32.totalorder %v789, %v1329
  %vm1334 = vcmp.eq.s32.totalorder %v790, %v1329
  %vm1335 = vcmp.eq.s32.totalorder %v791, %v1329
  %vm1336 = vcmp.eq.s32.totalorder %v792, %v1329
  %vm1337 = vcmp.eq.s32.totalorder %v793, %v1329
  %vm1338 = vcmp.eq.s32.totalorder %v794, %v1329
  %vm1339 = vcmp.eq.s32.totalorder %v795, %v1329
  %vm1340 = vcmp.eq.s32.totalorder %v796, %v1329
  %vm1341 = vcmp.eq.s32.totalorder %v797, %v1329
  %vm1342 = vcmp.eq.s32.totalorder %v798, %v1329
  %vm1343 = vcmp.eq.s32.totalorder %v799, %v1329
  %vm1344 = vcmp.eq.s32.totalorder %v800, %v1329
  %vm1345 = vcmp.eq.s32.totalorder %v801, %v1329
  %v1346 = vsel %vm1330, 1, 0
  %v1347 = vsel %vm1331, 1, 0
  %v1348 = vsel %vm1332, 1, 0
  %v1349 = vsel %vm1333, 1, 0
  %v1350 = vsel %vm1334, 1, 0
  %v1351 = vsel %vm1335, 1, 0
  %v1352 = vsel %vm1336, 1, 0
  %v1353 = vsel %vm1337, 1, 0
  %v1354 = vsel %vm1338, 1, 0
  %v1355 = vsel %vm1339, 1, 0
  %v1356 = vsel %vm1340, 1, 0
  %v1357 = vsel %vm1341, 1, 0
  %v1358 = vsel %vm1342, 1, 0
  %v1359 = vsel %vm1343, 1, 0
  %v1360 = vsel %vm1344, 1, 0
  %v1361 = vsel %vm1345, 1, 0
  %v1362 = vcvt.s32.f32 %v1346
  %v1363 = vcvt.s32.f32 %v1347
  %v1364 = vcvt.s32.f32 %v1348
  %v1365 = vcvt.s32.f32 %v1349
  %v1366 = vcvt.s32.f32 %v1350
  %v1367 = vcvt.s32.f32 %v1351
  %v1368 = vcvt.s32.f32 %v1352
  %v1369 = vcvt.s32.f32 %v1353
  %v1370 = vcvt.s32.f32 %v1354
  %v1371 = vcvt.s32.f32 %v1355
  %v1372 = vcvt.s32.f32 %v1356
  %v1373 = vcvt.s32.f32 %v1357
  %v1374 = vcvt.s32.f32 %v1358
  %v1375 = vcvt.s32.f32 %v1359
  %v1376 = vcvt.s32.f32 %v1360
  %v1377 = vcvt.s32.f32 %v1361
  %v1378 = vpack.c.bf16 %v1363, %v1362
  %v1379 = vpack.c.bf16 %v1365, %v1364
  %v1380 = vpack.c.bf16 %v1367, %v1366
  %v1381 = vpack.c.bf16 %v1369, %v1368
  %v1382 = vpack.c.bf16 %v1371, %v1370
  %v1383 = vpack.c.bf16 %v1373, %v1372
  %v1384 = vpack.c.bf16 %v1375, %v1374
  %v1385 = vpack.c.bf16 %v1377, %v1376
  %1386 = vmatprep.subr.bf16.mxu0 0
  %1387 = vmatpush1.bf16.msra.mxu0 %v1378
  %1388 = vmatprep.subr.bf16.mxu0 0
  %1389 = vmatpush1.bf16.msra.mxu0 %v1379
  %1390 = vmatprep.subr.bf16.mxu0 0
  %1391 = vmatpush1.bf16.msra.mxu0 %v1380
  %1392 = vmatprep.subr.bf16.mxu0 0
  %1393 = vmatpush1.bf16.msra.mxu0 %v1381
  %1394 = vmatprep.subr.bf16.mxu0 0
  %1395 = vmatpush1.bf16.msra.mxu0 %v1382
  %1396 = vmatprep.subr.bf16.mxu0 0
  %1397 = vmatpush1.bf16.msra.mxu0 %v1383
  %1398 = vmatprep.subr.bf16.mxu0 0
  %1399 = vmatpush1.bf16.msra.mxu0 %v1384
  %1400 = vmatprep.subr.bf16.mxu0 0
  %1401 = vmatpush1.bf16.msra.mxu0 %v1385
  %1402 = vmatprep.subr.bf16.mxu0 0
  %1403 = vmatpush1.bf16.msra.mxu0 0
  %1404 = vmatprep.subr.bf16.mxu0 0
  %1405 = vmatpush1.bf16.msra.mxu0 0
  %1406 = vmatprep.subr.bf16.mxu0 0
  %1407 = vmatpush1.bf16.msra.mxu0 0
  %1408 = vmatprep.subr.bf16.mxu0 0
  %1409 = vmatpush1.bf16.msra.mxu0 0
  %1410 = vmatprep.subr.bf16.mxu0 0
  %1411 = vmatpush1.bf16.msra.mxu0 0
  %1412 = vmatprep.subr.bf16.mxu0 0
  %1413 = vmatpush1.bf16.msra.mxu0 0
  %1414 = vmatprep.subr.bf16.mxu0 0
  %1415 = vmatpush1.bf16.msra.mxu0 0
  %1416 = vmatprep.subr.bf16.mxu0 0
  %1417 = vmatpush1.bf16.msra.mxu0 0
  %1418 = vmatprep.mubr.bf16.mxu0 0
  %1419 = vmatmul.mubr.bf16.gmra.mrb[0].mxu0 %v1319
  %v1420 = vpop.f32.mrb[0].mxu0
  %v1421 = vadd.f32 0.0, %v1420
  %v1422 = vpop.f32.mrb[0].mxu0
  %v1423 = vpop.f32.mrb[0].mxu0
  %v1424 = vadd.f32 0.0, %v1423
  %v1425 = vpop.f32.mrb[0].mxu0
  %1426 = vdwg.mxu0
  %v1427 = vpack.c.bf16 %v1424, %v1421
  %vm1428 = vcmp.ge.s32.totalorder %v1323, 1
  %vm1429 = vcmp.le.s32.totalorder %v1323, 2
  %vm1430 = vcmp.ge.s32.totalorder %v1327, 1
  %vm1431 = vcmp.le.s32.totalorder %v1327, 2
  %vm1432 = vmand %vm1428, %vm1430
  %v1433 = vsel %vm1432, 1, 0
  %v1434 = vcvt.s32.f32 %v1433
  %v1435 = vpack.c.bf16 %v1434, %v1434
  %v1436 = vsel %vm1428, 1, 0
  %v1437 = vcvt.s32.f32 %v1436
  %v1438 = vpack.c.bf16 %v1437, %v1437
  %vm1439 = vmand %vm1428, %vm1431
  %v1440 = vsel %vm1439, 1, 0
  %v1441 = vcvt.s32.f32 %v1440
  %v1442 = vpack.c.bf16 %v1441, %v1441
  %v1443 = vsel %vm1430, 1, 0
  %v1444 = vcvt.s32.f32 %v1443
  %v1445 = vpack.c.bf16 %v1444, %v1444
  %v1446 = vsel %vm1431, 1, 0
  %v1447 = vcvt.s32.f32 %v1446
  %v1448 = vpack.c.bf16 %v1447, %v1447
  %vm1449 = vmand %vm1429, %vm1430
  %v1450 = vsel %vm1449, 1, 0
  %v1451 = vcvt.s32.f32 %v1450
  %v1452 = vpack.c.bf16 %v1451, %v1451
  %v1453 = vsel %vm1429, 1, 0
  %v1454 = vcvt.s32.f32 %v1453
  %v1455 = vpack.c.bf16 %v1454, %v1454
  %vm1456 = vmand %vm1429, %vm1431
  %v1457 = vsel %vm1456, 1, 0
  %v1458 = vcvt.s32.f32 %v1457
  %v1459 = vpack.c.bf16 %v1458, %v1458
  %1461 = vrot.lane.b32.xlu0 %v1427, 5
  %v1462 = vpop.permute.xlu0 %1461
  %vm1463 = vcmask 39936
  %v1465 = vsel %vm1463, 0, %v1462
  %v1467 = vmul.bf16 %v1465, %v1435
  %1468 = vrot.lane.b32.xlu0 %v1427, 4
  %v1469 = vpop.permute.xlu0 %1468
  %vm1470 = vcmask 31744
  %v1472 = vsel %vm1470, 0, %v1469
  %v1474 = vmul.bf16 %v1472, %v1438
  %1475 = vrot.lane.b32.xlu0 %v1427, 3
  %v1476 = vpop.permute.xlu0 %1475
  %vm1477 = vcmask 23552
  %v1479 = vsel %vm1477, 0, %v1476
  %v1481 = vmul.bf16 %v1479, %v1442
  %1482 = vrot.lane.b32.xlu0 %v1427, 1
  %v1483 = vpop.permute.xlu0 %1482
  %v1485 = vsel %vm267, 0, %v1483
  %v1487 = vmul.bf16 %v1485, %v1445
  %1488 = vrot.lane.b32.xlu0 %v1427, 127
  %v1489 = vpop.permute.xlu0 %1488
  %vm1490 = vcmask 252928
  %v1492 = vsel %vm1490, %v1489, 0
  %v1494 = vmul.bf16 %v1492, %v1448
  %1495 = vrot.lane.b32.xlu0 %v1427, 125
  %v1496 = vpop.permute.xlu0 %1495
  %vm1497 = vcmask 236544
  %v1499 = vsel %vm1497, %v1496, 0
  %v1501 = vmul.bf16 %v1499, %v1452
  %1502 = vrot.lane.b32.xlu0 %v1427, 124
  %v1503 = vpop.permute.xlu0 %1502
  %vm1504 = vcmask 228352
  %v1506 = vsel %vm1504, %v1503, 0
  %v1508 = vmul.bf16 %v1506, %v1455
  %1509 = vrot.lane.b32.xlu0 %v1427, 123
  %v1510 = vpop.permute.xlu0 %1509
  %vm1511 = vcmask 220160
  %v1513 = vsel %vm1511, %v1510, 0
  %v1515 = vmul.bf16 %v1513, %v1459
  %v1516 = vld [vmem:[%s1 + $0x30] sm:$0xff]
  %v1517 = vld [vmem:[%s1 + $0x38] sm:$0xff]
  %1518 = vset.pattern.permute.xlu0 3
  %1519 = vperm.xlu0 %1518, %v19
  %v1520 = vpop.permute.xlu0 %1519
  %1522 = vset.pattern.permute.xlu0 3
  %1523 = vperm.xlu0 %1522, %v20
  %v1524 = vpop.permute.xlu0 %1523
  %v1528 = vunpack.c.l.b16 %v1516
  %v1529 = vunpack.c.h.b16 %v1516
  %v1530 = vunpack.c.l.b16 %v1517
  %v1531 = vunpack.c.h.b16 %v1517
  %v1532 = vpack.c.b16 %v1530, %v1528
  %v1533 = vpack.c.b16 %v1531, %v1529
  %v1536 = vsel %vm221, %v1533, 0
  %1538 = vmatprep.subr.bf16.mxu0 0
  %1539 = vmatpush1.bf16.msra.mxu0 %v1467
  %1540 = vmatprep.subr.bf16.mxu0 0
  %1541 = vmatpush1.bf16.msra.mxu0 %v1474
  %1542 = vmatprep.subr.bf16.mxu0 0
  %1543 = vmatpush1.bf16.msra.mxu0 %v1481
  %1544 = vmatprep.subr.bf16.mxu0 0
  %1545 = vmatpush1.bf16.msra.mxu0 %v1487
  %1546 = vmatprep.subr.bf16.mxu0 0
  %1547 = vmatpush1.bf16.msra.mxu0 %v1427
  %1548 = vmatprep.subr.bf16.mxu0 0
  %1549 = vmatpush1.bf16.msra.mxu0 %v1494
  %1550 = vmatprep.subr.bf16.mxu0 0
  %1551 = vmatpush1.bf16.msra.mxu0 %v1501
  %1552 = vmatprep.subr.bf16.mxu0 0
  %1553 = vmatpush1.bf16.msra.mxu0 %v1508
  %1554 = vmatprep.subr.bf16.mxu0 0
  %1555 = vmatpush1.bf16.msra.mxu0 %v1515
  %1556 = vmatprep.subr.bf16.mxu0 0
  %1557 = vmatpush1.bf16.msra.mxu0 0
  %1558 = vmatprep.subr.bf16.mxu0 0
  %1559 = vmatpush1.bf16.msra.mxu0 0
  %1560 = vmatprep.subr.bf16.mxu0 0
  %1561 = vmatpush1.bf16.msra.mxu0 0
  %1562 = vmatprep.subr.bf16.mxu0 0
  %1563 = vmatpush1.bf16.msra.mxu0 0
  %1564 = vmatprep.subr.bf16.mxu0 0
  %1565 = vmatpush1.bf16.msra.mxu0 0
  %1566 = vmatprep.subr.bf16.mxu0 0
  %1567 = vmatpush1.bf16.msra.mxu0 0
  %1568 = vmatprep.subr.bf16.mxu0 0
  %1569 = vmatpush1.bf16.msra.mxu0 0
  %1570 = vmatprep.mubr.bf16.mxu0 %v1536
  %1571 = vmatmul.mubr.bf16.gmra.mrb[0].mxu0 %v1532
  %v1572 = vpop.f32.mrb[0].mxu0
  %v1573 = vadd.f32 %v1520, %v1572
  %v1574 = vpop.f32.mrb[0].mxu0
  %v1575 = vpop.f32.mrb[0].mxu0
  %v1576 = vadd.f32 %v1524, %v1575
  %v1577 = vpop.f32.mrb[0].mxu0
  %1578 = vdwg.mxu0
  %v1579 = vmax.f32 %v1573, 0.0
  %v1580 = vmax.f32 %v1576, 0.0
  %v1581 = vpack.c.bf16 %v1580, %v1579
  %1583 = vrot.lane.b32.xlu0 %v1581, 5
  %v1584 = vpop.permute.xlu0 %1583
  %v1586 = vsel %vm1463, 0, %v1584
  %v1588 = vmul.bf16 %v1586, %v1435
  %1589 = vrot.lane.b32.xlu0 %v1581, 4
  %v1590 = vpop.permute.xlu0 %1589
  %v1592 = vsel %vm1470, 0, %v1590
  %v1594 = vmul.bf16 %v1592, %v1438
  %1595 = vrot.lane.b32.xlu0 %v1581, 3
  %v1596 = vpop.permute.xlu0 %1595
  %v1598 = vsel %vm1477, 0, %v1596
  %v1600 = vmul.bf16 %v1598, %v1442
  %1601 = vrot.lane.b32.xlu0 %v1581, 1
  %v1602 = vpop.permute.xlu0 %1601
  %v1604 = vsel %vm267, 0, %v1602
  %v1606 = vmul.bf16 %v1604, %v1445
  %1607 = vrot.lane.b32.xlu0 %v1581, 127
  %v1608 = vpop.permute.xlu0 %1607
  %v1610 = vsel %vm1490, %v1608, 0
  %v1612 = vmul.bf16 %v1610, %v1448
  %1613 = vrot.lane.b32.xlu0 %v1581, 125
  %v1614 = vpop.permute.xlu0 %1613
  %v1616 = vsel %vm1497, %v1614, 0
  %v1618 = vmul.bf16 %v1616, %v1452
  %1619 = vrot.lane.b32.xlu0 %v1581, 124
  %v1620 = vpop.permute.xlu0 %1619
  %v1622 = vsel %vm1504, %v1620, 0
  %v1624 = vmul.bf16 %v1622, %v1455
  %1625 = vrot.lane.b32.xlu0 %v1581, 123
  %v1626 = vpop.permute.xlu0 %1625
  %v1628 = vsel %vm1511, %v1626, 0
  %v1630 = vmul.bf16 %v1628, %v1459
  %v1631 = vld [vmem:[%s1 + $0x40] sm:$0xff]
  %v1632 = vld [vmem:[%s1 + $0x48] sm:$0xff]
  %1633 = vset.pattern.permute.xlu0 4
  %1634 = vperm.xlu0 %1633, %v19
  %v1635 = vpop.permute.xlu0 %1634
  %1637 = vset.pattern.permute.xlu0 4
  %1638 = vperm.xlu0 %1637, %v20
  %v1639 = vpop.permute.xlu0 %1638
  %v1643 = vunpack.c.l.b16 %v1631
  %v1644 = vunpack.c.h.b16 %v1631
  %v1645 = vunpack.c.l.b16 %v1632
  %v1646 = vunpack.c.h.b16 %v1632
  %v1647 = vpack.c.b16 %v1645, %v1643
  %v1648 = vpack.c.b16 %v1646, %v1644
  %v1651 = vsel %vm221, %v1648, 0
  %1653 = vmatprep.subr.bf16.mxu0 0
  %1654 = vmatpush1.bf16.msra.mxu0 %v1588
  %1655 = vmatprep.subr.bf16.mxu0 0
  %1656 = vmatpush1.bf16.msra.mxu0 %v1594
  %1657 = vmatprep.subr.bf16.mxu0 0
  %1658 = vmatpush1.bf16.msra.mxu0 %v1600
  %1659 = vmatprep.subr.bf16.mxu0 0
  %1660 = vmatpush1.bf16.msra.mxu0 %v1606
  %1661 = vmatprep.subr.bf16.mxu0 0
  %1662 = vmatpush1.bf16.msra.mxu0 %v1581
  %1663 = vmatprep.subr.bf16.mxu0 0
  %1664 = vmatpush1.bf16.msra.mxu0 %v1612
  %1665 = vmatprep.subr.bf16.mxu0 0
  %1666 = vmatpush1.bf16.msra.mxu0 %v1618
  %1667 = vmatprep.subr.bf16.mxu0 0
  %1668 = vmatpush1.bf16.msra.mxu0 %v1624
  %1669 = vmatprep.subr.bf16.mxu0 0
  %1670 = vmatpush1.bf16.msra.mxu0 %v1630
  %1671 = vmatprep.subr.bf16.mxu0 0
  %1672 = vmatpush1.bf16.msra.mxu0 0
  %1673 = vmatprep.subr.bf16.mxu0 0
  %1674 = vmatpush1.bf16.msra.mxu0 0
  %1675 = vmatprep.subr.bf16.mxu0 0
  %1676 = vmatpush1.bf16.msra.mxu0 0
  %1677 = vmatprep.subr.bf16.mxu0 0
  %1678 = vmatpush1.bf16.msra.mxu0 0
  %1679 = vmatprep.subr.bf16.mxu0 0
  %1680 = vmatpush1.bf16.msra.mxu0 0
  %1681 = vmatprep.subr.bf16.mxu0 0
  %1682 = vmatpush1.bf16.msra.mxu0 0
  %1683 = vmatprep.subr.bf16.mxu0 0
  %1684 = vmatpush1.bf16.msra.mxu0 0
  %1685 = vmatprep.mubr.bf16.mxu0 %v1651
  %1686 = vmatmul.mubr.bf16.gmra.mrb[0].mxu0 %v1647
  %v1687 = vpop.f32.mrb[0].mxu0
  %v1688 = vadd.f32 %v1635, %v1687
  %v1689 = vpop.f32.mrb[0].mxu0
  %v1690 = vpop.f32.mrb[0].mxu0
  %v1691 = vadd.f32 %v1639, %v1690
  %v1692 = vpop.f32.mrb[0].mxu0
  %1693 = vdwg.mxu0
  %v1694 = vunpack.c.l.bf16 %v1427
  %v1695 = vunpack.c.h.bf16 %v1427
  %v1696 = vadd.f32 %v1688, %v1694
  %v1697 = vadd.f32 %v1691, %v1695
  %v1698 = vpack.c.bf16 %v1697, %v1696
  %1700 = vrot.lane.b32.xlu0 %v1698, 5
  %v1701 = vpop.permute.xlu0 %1700
  %v1703 = vsel %vm1463, 0, %v1701
  %v1705 = vmul.bf16 %v1703, %v1435
  %1706 = vrot.lane.b32.xlu0 %v1698, 4
  %v1707 = vpop.permute.xlu0 %1706
  %v1709 = vsel %vm1470, 0, %v1707
  %v1711 = vmul.bf16 %v1709, %v1438
  %1712 = vrot.lane.b32.xlu0 %v1698, 3
  %v1713 = vpop.permute.xlu0 %1712
  %v1715 = vsel %vm1477, 0, %v1713
  %v1717 = vmul.bf16 %v1715, %v1442
  %1718 = vrot.lane.b32.xlu0 %v1698, 1
  %v1719 = vpop.permute.xlu0 %1718
  %v1721 = vsel %vm267, 0, %v1719
  %v1723 = vmul.bf16 %v1721, %v1445
  %1724 = vrot.lane.b32.xlu0 %v1698, 127
  %v1725 = vpop.permute.xlu0 %1724
  %v1727 = vsel %vm1490, %v1725, 0
  %v1729 = vmul.bf16 %v1727, %v1448
  %1730 = vrot.lane.b32.xlu0 %v1698, 125
  %v1731 = vpop.permute.xlu0 %1730
  %v1733 = vsel %vm1497, %v1731, 0
  %v1735 = vmul.bf16 %v1733, %v1452
  %1736 = vrot.lane.b32.xlu0 %v1698, 124
  %v1737 = vpop.permute.xlu0 %1736
  %v1739 = vsel %vm1504, %v1737, 0
  %v1741 = vmul.bf16 %v1739, %v1455
  %1742 = vrot.lane.b32.xlu0 %v1698, 123
  %v1743 = vpop.permute.xlu0 %1742
  %v1745 = vsel %vm1511, %v1743, 0
  %v1747 = vmul.bf16 %v1745, %v1459
  %v1748 = vld [vmem:[%s1 + $0x50] sm:$0xff]
  %v1749 = vld [vmem:[%s1 + $0x58] sm:$0xff]
  %1750 = vset.pattern.permute.xlu0 5
  %1751 = vperm.xlu0 %1750, %v19
  %v1752 = vpop.permute.xlu0 %1751
  %1754 = vset.pattern.permute.xlu0 5
  %1755 = vperm.xlu0 %1754, %v20
  %v1756 = vpop.permute.xlu0 %1755
  %v1760 = vunpack.c.l.b16 %v1748
  %v1761 = vunpack.c.h.b16 %v1748
  %v1762 = vunpack.c.l.b16 %v1749
  %v1763 = vunpack.c.h.b16 %v1749
  %v1764 = vpack.c.b16 %v1762, %v1760
  %v1765 = vpack.c.b16 %v1763, %v1761
  %v1768 = vsel %vm221, %v1765, 0
  %1770 = vmatprep.subr.bf16.mxu0 0
  %1771 = vmatpush1.bf16.msra.mxu0 %v1705
  %1772 = vmatprep.subr.bf16.mxu0 0
  %1773 = vmatpush1.bf16.msra.mxu0 %v1711
  %1774 = vmatprep.subr.bf16.mxu0 0
  %1775 = vmatpush1.bf16.msra.mxu0 %v1717
  %1776 = vmatprep.subr.bf16.mxu0 0
  %1777 = vmatpush1.bf16.msra.mxu0 %v1723
  %1778 = vmatprep.subr.bf16.mxu0 0
  %1779 = vmatpush1.bf16.msra.mxu0 %v1698
  %1780 = vmatprep.subr.bf16.mxu0 0
  %1781 = vmatpush1.bf16.msra.mxu0 %v1729
  %1782 = vmatprep.subr.bf16.mxu0 0
  %1783 = vmatpush1.bf16.msra.mxu0 %v1735
  %1784 = vmatprep.subr.bf16.mxu0 0
  %1785 = vmatpush1.bf16.msra.mxu0 %v1741
  %1786 = vmatprep.subr.bf16.mxu0 0
  %1787 = vmatpush1.bf16.msra.mxu0 %v1747
  %1788 = vmatprep.subr.bf16.mxu0 0
  %1789 = vmatpush1.bf16.msra.mxu0 0
  %1790 = vmatprep.subr.bf16.mxu0 0
  %1791 = vmatpush1.bf16.msra.mxu0 0
  %1792 = vmatprep.subr.bf16.mxu0 0
  %1793 = vmatpush1.bf16.msra.mxu0 0
  %1794 = vmatprep.subr.bf16.mxu0 0
  %1795 = vmatpush1.bf16.msra.mxu0 0
  %1796 = vmatprep.subr.bf16.mxu0 0
  %1797 = vmatpush1.bf16.msra.mxu0 0
  %1798 = vmatprep.subr.bf16.mxu0 0
  %1799 = vmatpush1.bf16.msra.mxu0 0
  %1800 = vmatprep.subr.bf16.mxu0 0
  %1801 = vmatpush1.bf16.msra.mxu0 0
  %1802 = vmatprep.mubr.bf16.mxu0 %v1768
  %1803 = vmatmul.mubr.bf16.gmra.mrb[0].mxu0 %v1764
  %v1804 = vpop.f32.mrb[0].mxu0
  %v1805 = vadd.f32 %v1752, %v1804
  %v1806 = vpop.f32.mrb[0].mxu0
  %v1807 = vpop.f32.mrb[0].mxu0
  %v1808 = vadd.f32 %v1756, %v1807
  %v1809 = vpop.f32.mrb[0].mxu0
  %1810 = vdwg.mxu0
  %v1811 = vmax.f32 %v1805, 0.0
  %v1812 = vmax.f32 %v1808, 0.0
  %v1813 = vpack.c.bf16 %v1812, %v1811
  %1815 = vrot.lane.b32.xlu0 %v1813, 5
  %v1816 = vpop.permute.xlu0 %1815
  %v1818 = vsel %vm1463, 0, %v1816
  %v1820 = vmul.bf16 %v1818, %v1435
  %1821 = vrot.lane.b32.xlu0 %v1813, 4
  %v1822 = vpop.permute.xlu0 %1821
  %v1824 = vsel %vm1470, 0, %v1822
  %v1826 = vmul.bf16 %v1824, %v1438
  %1827 = vrot.lane.b32.xlu0 %v1813, 3
  %v1828 = vpop.permute.xlu0 %1827
  %v1830 = vsel %vm1477, 0, %v1828
  %v1832 = vmul.bf16 %v1830, %v1442
  %1833 = vrot.lane.b32.xlu0 %v1813, 1
  %v1834 = vpop.permute.xlu0 %1833
  %v1836 = vsel %vm267, 0, %v1834
  %v1838 = vmul.bf16 %v1836, %v1445
  %1839 = vrot.lane.b32.xlu0 %v1813, 127
  %v1840 = vpop.permute.xlu0 %1839
  %v1842 = vsel %vm1490, %v1840, 0
  %v1844 = vmul.bf16 %v1842, %v1448
  %1845 = vrot.lane.b32.xlu0 %v1813, 125
  %v1846 = vpop.permute.xlu0 %1845
  %v1848 = vsel %vm1497, %v1846, 0
  %v1850 = vmul.bf16 %v1848, %v1452
  %1851 = vrot.lane.b32.xlu0 %v1813, 124
  %v1852 = vpop.permute.xlu0 %1851
  %v1854 = vsel %vm1504, %v1852, 0
  %v1856 = vmul.bf16 %v1854, %v1455
  %1857 = vrot.lane.b32.xlu0 %v1813, 123
  %v1858 = vpop.permute.xlu0 %1857
  %v1860 = vsel %vm1511, %v1858, 0
  %v1862 = vmul.bf16 %v1860, %v1459
  %v1863 = vld [vmem:[%s1 + $0x60] sm:$0xff]
  %v1864 = vld [vmem:[%s1 + $0x68] sm:$0xff]
  %1865 = vset.pattern.permute.xlu0 6
  %1866 = vperm.xlu0 %1865, %v19
  %v1867 = vpop.permute.xlu0 %1866
  %1869 = vset.pattern.permute.xlu0 6
  %1870 = vperm.xlu0 %1869, %v20
  %v1871 = vpop.permute.xlu0 %1870
  %v1875 = vunpack.c.l.b16 %v1863
  %v1876 = vunpack.c.h.b16 %v1863
  %v1877 = vunpack.c.l.b16 %v1864
  %v1878 = vunpack.c.h.b16 %v1864
  %v1879 = vpack.c.b16 %v1877, %v1875
  %v1880 = vpack.c.b16 %v1878, %v1876
  %v1883 = vsel %vm221, %v1880, 0
  %1885 = vmatprep.subr.bf16.mxu0 0
  %1886 = vmatpush1.bf16.msra.mxu0 %v1820
  %1887 = vmatprep.subr.bf16.mxu0 0
  %1888 = vmatpush1.bf16.msra.mxu0 %v1826
  %1889 = vmatprep.subr.bf16.mxu0 0
  %1890 = vmatpush1.bf16.msra.mxu0 %v1832
  %1891 = vmatprep.subr.bf16.mxu0 0
  %1892 = vmatpush1.bf16.msra.mxu0 %v1838
  %1893 = vmatprep.subr.bf16.mxu0 0
  %1894 = vmatpush1.bf16.msra.mxu0 %v1813
  %1895 = vmatprep.subr.bf16.mxu0 0
  %1896 = vmatpush1.bf16.msra.mxu0 %v1844
  %1897 = vmatprep.subr.bf16.mxu0 0
  %1898 = vmatpush1.bf16.msra.mxu0 %v1850
  %1899 = vmatprep.subr.bf16.mxu0 0
  %1900 = vmatpush1.bf16.msra.mxu0 %v1856
  %1901 = vmatprep.subr.bf16.mxu0 0
  %1902 = vmatpush1.bf16.msra.mxu0 %v1862
  %1903 = vmatprep.subr.bf16.mxu0 0
  %1904 = vmatpush1.bf16.msra.mxu0 0
  %1905 = vmatprep.subr.bf16.mxu0 0
  %1906 = vmatpush1.bf16.msra.mxu0 0
  %1907 = vmatprep.subr.bf16.mxu0 0
  %1908 = vmatpush1.bf16.msra.mxu0 0
  %1909 = vmatprep.subr.bf16.mxu0 0
  %1910 = vmatpush1.bf16.msra.mxu0 0
  %1911 = vmatprep.subr.bf16.mxu0 0
  %1912 = vmatpush1.bf16.msra.mxu0 0
  %1913 = vmatprep.subr.bf16.mxu0 0
  %1914 = vmatpush1.bf16.msra.mxu0 0
  %1915 = vmatprep.subr.bf16.mxu0 0
  %1916 = vmatpush1.bf16.msra.mxu0 0
  %1917 = vmatprep.mubr.bf16.mxu0 %v1883
  %1918 = vmatmul.mubr.bf16.gmra.mrb[0].mxu0 %v1879
  %v1919 = vpop.f32.mrb[0].mxu0
  %v1920 = vadd.f32 %v1867, %v1919
  %v1921 = vpop.f32.mrb[0].mxu0
  %v1922 = vpop.f32.mrb[0].mxu0
  %v1923 = vadd.f32 %v1871, %v1922
  %v1924 = vpop.f32.mrb[0].mxu0
  %1925 = vdwg.mxu0
  %v1926 = vunpack.c.l.bf16 %v1698
  %v1927 = vunpack.c.h.bf16 %v1698
  %v1928 = vadd.f32 %v1920, %v1926
  %v1929 = vadd.f32 %v1923, %v1927
  %v1930 = vpack.c.bf16 %v1929, %v1928
  %1932 = vrot.lane.b32.xlu0 %v1930, 127
  %v1933 = vpop.permute.xlu0 %1932
  %v1935 = vsel %vm1490, %v1933, 0
  %v1937 = vmul.bf16 %v1935, %v1448
  %1938 = vrot.lane.b32.xlu0 %v1930, 124
  %v1939 = vpop.permute.xlu0 %1938
  %v1941 = vsel %vm1504, %v1939, 0
  %v1943 = vmul.bf16 %v1941, %v1455
  %1944 = vrot.lane.b32.xlu0 %v1930, 123
  %v1945 = vpop.permute.xlu0 %1944
  %v1947 = vsel %vm1511, %v1945, 0
  %v1949 = vmul.bf16 %v1947, %v1459
  %v1950 = vshra.s32 %v786, 4
  %v1951 = vshra.s32 %v787, 4
  %v1952 = vshra.s32 %v788, 4
  %v1953 = vshra.s32 %v789, 4
  %v1954 = vand.u32 %v786, 15
  %v1955 = vand.u32 %v787, 15
  %v1956 = vand.u32 %v788, 15
  %v1957 = vand.u32 %v789, 15
  %v1958 = vmul.u32 %v1950, 64
  %v1959 = vmul.u32 %v1951, 64
  %v1960 = vmul.u32 %v1952, 64
  %v1961 = vmul.u32 %v1953, 64
  %v1962 = vshra.s32 %v1954, 2
  %v1963 = vshra.s32 %v1955, 2
  %v1964 = vshra.s32 %v1956, 2
  %v1965 = vshra.s32 %v1957, 2
  %v1966 = vmul.u32 %v1962, 2
  %v1967 = vmul.u32 %v1963, 2
  %v1968 = vmul.u32 %v1964, 2
  %v1969 = vmul.u32 %v1965, 2
  %v1970 = vmul.u32 %v1966, 8
  %v1971 = vmul.u32 %v1967, 8
  %v1972 = vmul.u32 %v1968, 8
  %v1973 = vmul.u32 %v1969, 8
  %v1974 = vadd.s32 %v1958, %v1970
  %v1975 = vadd.s32 %v1959, %v1971
  %v1976 = vadd.s32 %v1960, %v1972
  %v1977 = vadd.s32 %v1961, %v1973
  %v1978 = vand.u32 %v1954, 3
  %v1979 = vand.u32 %v1955, 3
  %v1980 = vand.u32 %v1956, 3
  %v1981 = vand.u32 %v1957, 3
  %v1982 = vmul.u32 %v1978, 2
  %v1983 = vmul.u32 %v1979, 2
  %v1984 = vmul.u32 %v1980, 2
  %v1985 = vmul.u32 %v1981, 2
  %v1986 = vadd.s32 %v1974, %v1982
  %v1987 = vadd.s32 %v1975, %v1983
  %v1988 = vadd.s32 %v1976, %v1984
  %v1989 = vadd.s32 %v1977, %v1985
  %vm1990 = vcmp.eq.s32.totalorder %v22, %v1986
  %vm1991 = vcmp.eq.s32.totalorder %v22, %v1987
  %vm1992 = vcmp.eq.s32.totalorder %v22, %v1988
  %vm1993 = vcmp.eq.s32.totalorder %v22, %v1989
  %v1994 = vsel %vm1990, 1, 0
  %v1995 = vsel %vm1991, 1, 0
  %v1996 = vsel %vm1992, 1, 0
  %v1997 = vsel %vm1993, 1, 0
  %v1998 = vcvt.s32.f32 %v1994
  %v1999 = vcvt.s32.f32 %v1995
  %v2000 = vcvt.s32.f32 %v1996
  %v2001 = vcvt.s32.f32 %v1997
  %v2002 = vpack.c.bf16 %v1999, %v1998
  %v2003 = vpack.c.bf16 %v2001, %v2000
  %v2004 = vadd.s32 %v1986, 1
  %v2005 = vadd.s32 %v1987, 1
  %v2006 = vadd.s32 %v1988, 1
  %v2007 = vadd.s32 %v1989, 1
  %vm2008 = vcmp.eq.s32.totalorder %v22, %v2004
  %vm2009 = vcmp.eq.s32.totalorder %v22, %v2005
  %vm2010 = vcmp.eq.s32.totalorder %v22, %v2006
  %vm2011 = vcmp.eq.s32.totalorder %v22, %v2007
  %v2012 = vsel %vm2008, 1, 0
  %v2013 = vsel %vm2009, 1, 0
  %v2014 = vsel %vm2010, 1, 0
  %v2015 = vsel %vm2011, 1, 0
  %v2016 = vcvt.s32.f32 %v2012
  %v2017 = vcvt.s32.f32 %v2013
  %v2018 = vcvt.s32.f32 %v2014
  %v2019 = vcvt.s32.f32 %v2015
  %v2020 = vpack.c.bf16 %v2017, %v2016
  %v2021 = vpack.c.bf16 %v2019, %v2018
  %v2022 = vadd.s32 %v1986, 8
  %v2023 = vadd.s32 %v1987, 8
  %v2024 = vadd.s32 %v1988, 8
  %v2025 = vadd.s32 %v1989, 8
  %vm2026 = vcmp.eq.s32.totalorder %v22, %v2022
  %vm2027 = vcmp.eq.s32.totalorder %v22, %v2023
  %vm2028 = vcmp.eq.s32.totalorder %v22, %v2024
  %vm2029 = vcmp.eq.s32.totalorder %v22, %v2025
  %v2030 = vsel %vm2026, 1, 0
  %v2031 = vsel %vm2027, 1, 0
  %v2032 = vsel %vm2028, 1, 0
  %v2033 = vsel %vm2029, 1, 0
  %v2034 = vcvt.s32.f32 %v2030
  %v2035 = vcvt.s32.f32 %v2031
  %v2036 = vcvt.s32.f32 %v2032
  %v2037 = vcvt.s32.f32 %v2033
  %v2038 = vpack.c.bf16 %v2035, %v2034
  %v2039 = vpack.c.bf16 %v2037, %v2036
  %v2040 = vadd.s32 %v2022, 1
  %v2041 = vadd.s32 %v2023, 1
  %v2042 = vadd.s32 %v2024, 1
  %v2043 = vadd.s32 %v2025, 1
  %vm2044 = vcmp.eq.s32.totalorder %v22, %v2040
  %vm2045 = vcmp.eq.s32.totalorder %v22, %v2041
  %vm2046 = vcmp.eq.s32.totalorder %v22, %v2042
  %vm2047 = vcmp.eq.s32.totalorder %v22, %v2043
  %v2048 = vsel %vm2044, 1, 0
  %v2049 = vsel %vm2045, 1, 0
  %v2050 = vsel %vm2046, 1, 0
  %v2051 = vsel %vm2047, 1, 0
  %v2052 = vcvt.s32.f32 %v2048
  %v2053 = vcvt.s32.f32 %v2049
  %v2054 = vcvt.s32.f32 %v2050
  %v2055 = vcvt.s32.f32 %v2051
  %v2056 = vpack.c.bf16 %v2053, %v2052
  %v2057 = vpack.c.bf16 %v2055, %v2054
  %v2058 = vld [vmem:[%s1 + $0x70] sm:$0xf]
  %v2059 = vld [vmem:[%s1 + $0x78] sm:$0xf]
  %2060 = vset.pattern.permute.xlu0 7
  %2061 = vperm.xlu0 %2060, %v19
  %v2062 = vpop.permute.xlu0 %2061
  %2064 = vset.pattern.permute.xlu0 7
  %2065 = vperm.xlu0 %2064, %v20
  %v2066 = vpop.permute.xlu0 %2065
  %v2070 = vunpack.c.l.b16 %v2058
  %v2071 = vunpack.c.l.b16 %v2059
  %v2072 = vpack.c.b16 %v2071, %v2070
  %v2074 = vsel %vm221, %v2072, 0
  %2076 = vmatprep.subr.bf16.mxu0 0
  %2077 = vmatpush1.bf16.msra.mxu0 %v1930
  %2078 = vmatprep.subr.bf16.mxu0 0
  %2079 = vmatpush1.bf16.msra.mxu0 0
  %2080 = vmatprep.subr.bf16.mxu0 0
  %2081 = vmatpush1.bf16.msra.mxu0 0
  %2082 = vmatprep.subr.bf16.mxu0 0
  %2083 = vmatpush1.bf16.msra.mxu0 0
  %2084 = vmatprep.subr.bf16.mxu0 0
  %2085 = vmatpush1.bf16.msra.mxu0 0
  %2086 = vmatprep.subr.bf16.mxu0 0
  %2087 = vmatpush1.bf16.msra.mxu0 0
  %2088 = vmatprep.subr.bf16.mxu0 0
  %2089 = vmatpush1.bf16.msra.mxu0 0
  %2090 = vmatprep.subr.bf16.mxu0 0
  %2091 = vmatpush1.bf16.msra.mxu0 0
  %2092 = vmatprep.subr.bf16.mxu0 0
  %2093 = vmatpush1.bf16.msra.mxu0 0
  %2094 = vmatprep.subr.bf16.mxu0 0
  %2095 = vmatpush1.bf16.msra.mxu0 0
  %2096 = vmatprep.subr.bf16.mxu0 0
  %2097 = vmatpush1.bf16.msra.mxu0 0
  %2098 = vmatprep.subr.bf16.mxu0 0
  %2099 = vmatpush1.bf16.msra.mxu0 0
  %2100 = vmatprep.subr.bf16.mxu0 0
  %2101 = vmatpush1.bf16.msra.mxu0 0
  %2102 = vmatprep.subr.bf16.mxu0 0
  %2103 = vmatpush1.bf16.msra.mxu0 0
  %2104 = vmatprep.subr.bf16.mxu0 0
  %2105 = vmatpush1.bf16.msra.mxu0 0
  %2106 = vmatprep.subr.bf16.mxu0 0
  %2107 = vmatpush1.bf16.msra.mxu0 0
  %2108 = vmatprep.mubr.bf16.mxu0 0
  %2109 = vmatmul.mubr.bf16.gmra.mrb[0].mxu0 %v2074
  %v2110 = vpop.f32.mrb[0].mxu0
  %v2111 = vadd.f32 %v2062, %v2110
  %v2112 = vpop.f32.mrb[0].mxu0
  %v2113 = vpop.f32.mrb[0].mxu0
  %v2114 = vadd.f32 %v2066, %v2113
  %v2115 = vpop.f32.mrb[0].mxu0
  %2116 = vdwg.mxu0
  %v2117 = vmax.f32 %v2111, 0.0
  %v2118 = vmax.f32 %v2114, 0.0
  %v2119 = vpack.c.bf16 %v2118, %v2117
  %v2120 = vld [vmem:[%s1 + $0x80] sm:$0xf]
  %v2121 = vld [vmem:[%s1 + $0x88] sm:$0xf]
  %v2124 = vunpack.c.l.b16 %v2120
  %v2125 = vunpack.c.l.b16 %v2121
  %v2126 = vpack.c.b16 %v2125, %v2124
  %vm2127 = vcmask 261120
  %v2129 = vsel %vm2127, %v2126, 0
  %2131 = vmatprep.subr.bf16.mxu0 0
  %2132 = vmatpush1.bf16.msra.mxu0 %v1930
  %2133 = vmatprep.subr.bf16.mxu0 0
  %2134 = vmatpush1.bf16.msra.mxu0 %v1937
  %2135 = vmatprep.subr.bf16.mxu0 0
  %2136 = vmatpush1.bf16.msra.mxu0 0
  %2137 = vmatprep.subr.bf16.mxu0 0
  %2138 = vmatpush1.bf16.msra.mxu0 0
  %2139 = vmatprep.subr.bf16.mxu0 0
  %2140 = vmatpush1.bf16.msra.mxu0 0
  %2141 = vmatprep.subr.bf16.mxu0 0
  %2142 = vmatpush1.bf16.msra.mxu0 0
  %2143 = vmatprep.subr.bf16.mxu0 0
  %2144 = vmatpush1.bf16.msra.mxu0 0
  %2145 = vmatprep.subr.bf16.mxu0 0
  %2146 = vmatpush1.bf16.msra.mxu0 0
  %2147 = vmatprep.subr.bf16.mxu0 0
  %2148 = vmatpush1.bf16.msra.mxu0 0
  %2149 = vmatprep.subr.bf16.mxu0 0
  %2150 = vmatpush1.bf16.msra.mxu0 0
  %2151 = vmatprep.subr.bf16.mxu0 0
  %2152 = vmatpush1.bf16.msra.mxu0 0
  %2153 = vmatprep.subr.bf16.mxu0 0
  %2154 = vmatpush1.bf16.msra.mxu0 0
  %2155 = vmatprep.subr.bf16.mxu0 0
  %2156 = vmatpush1.bf16.msra.mxu0 0
  %2157 = vmatprep.subr.bf16.mxu0 0
  %2158 = vmatpush1.bf16.msra.mxu0 0
  %2159 = vmatprep.subr.bf16.mxu0 0
  %2160 = vmatpush1.bf16.msra.mxu0 0
  %2161 = vmatprep.subr.bf16.mxu0 0
  %2162 = vmatpush1.bf16.msra.mxu0 0
  %2163 = vmatprep.mubr.bf16.mxu0 0
  %2164 = vmatmul.mubr.bf16.gmra.mrb[0].mxu0 %v2129
  %v2165 = vpop.f32.mrb[0].mxu0
  %v2166 = vadd.f32 %v2062, %v2165
  %v2167 = vpop.f32.mrb[0].mxu0
  %v2168 = vpop.f32.mrb[0].mxu0
  %v2169 = vadd.f32 %v2066, %v2168
  %v2170 = vpop.f32.mrb[0].mxu0
  %2171 = vdwg.mxu0
  %v2172 = vmax.f32 %v2166, 0.0
  %v2173 = vmax.f32 %v2169, 0.0
  %v2174 = vpack.c.bf16 %v2173, %v2172
  %v2176 = vsel %vm2127, %v2174, 0
  %2178 = vmatprep.subr.bf16.mxu0 0
  %2179 = vmatpush1.bf16.msra.mxu0 %v2020
  %2180 = vmatprep.subr.bf16.mxu0 0
  %2181 = vmatpush1.bf16.msra.mxu0 %v2021
  %2182 = vmatprep.subr.bf16.mxu0 0
  %2183 = vmatpush1.bf16.msra.mxu0 0
  %2184 = vmatprep.subr.bf16.mxu0 0
  %2185 = vmatpush1.bf16.msra.mxu0 0
  %2186 = vmatprep.subr.bf16.mxu0 0
  %2187 = vmatpush1.bf16.msra.mxu0 0
  %2188 = vmatprep.subr.bf16.mxu0 0
  %2189 = vmatpush1.bf16.msra.mxu0 0
  %2190 = vmatprep.subr.bf16.mxu0 0
  %2191 = vmatpush1.bf16.msra.mxu0 0
  %2192 = vmatprep.subr.bf16.mxu0 0
  %2193 = vmatpush1.bf16.msra.mxu0 0
  %2194 = vmatprep.subr.bf16.mxu0 0
  %2195 = vmatpush1.bf16.msra.mxu0 0
  %2196 = vmatprep.subr.bf16.mxu0 0
  %2197 = vmatpush1.bf16.msra.mxu0 0
  %2198 = vmatprep.subr.bf16.mxu0 0
  %2199 = vmatpush1.bf16.msra.mxu0 0
  %2200 = vmatprep.subr.bf16.mxu0 0
  %2201 = vmatpush1.bf16.msra.mxu0 0
  %2202 = vmatprep.subr.bf16.mxu0 0
  %2203 = vmatpush1.bf16.msra.mxu0 0
  %2204 = vmatprep.subr.bf16.mxu0 0
  %2205 = vmatpush1.bf16.msra.mxu0 0
  %2206 = vmatprep.subr.bf16.mxu0 0
  %2207 = vmatpush1.bf16.msra.mxu0 0
  %2208 = vmatprep.subr.bf16.mxu0 0
  %2209 = vmatpush1.bf16.msra.mxu0 0
  %2210 = vmatprep.mubr.bf16.mxu0 0
  %2211 = vmatmul.mubr.bf16.gmra.mrb[0].mxu0 %v2176
  %v2212 = vpop.f32.mrb[0].mxu0
  %v2213 = vadd.f32 0.0, %v2212
  %v2214 = vpop.f32.mrb[0].mxu0
  %v2215 = vpop.f32.mrb[0].mxu0
  %v2216 = vadd.f32 0.0, %v2215
  %v2217 = vpop.f32.mrb[0].mxu0
  %2218 = vdwg.mxu0
  %v2220 = vsel %vm2127, %v2119, 0
  %2222 = vmatprep.subr.bf16.mxu0 0
  %2223 = vmatpush1.bf16.msra.mxu0 %v2002
  %2224 = vmatprep.subr.bf16.mxu0 0
  %2225 = vmatpush1.bf16.msra.mxu0 %v2003
  %2226 = vmatprep.subr.bf16.mxu0 0
  %2227 = vmatpush1.bf16.msra.mxu0 0
  %2228 = vmatprep.subr.bf16.mxu0 0
  %2229 = vmatpush1.bf16.msra.mxu0 0
  %2230 = vmatprep.subr.bf16.mxu0 0
  %2231 = vmatpush1.bf16.msra.mxu0 0
  %2232 = vmatprep.subr.bf16.mxu0 0
  %2233 = vmatpush1.bf16.msra.mxu0 0
  %2234 = vmatprep.subr.bf16.mxu0 0
  %2235 = vmatpush1.bf16.msra.mxu0 0
  %2236 = vmatprep.subr.bf16.mxu0 0
  %2237 = vmatpush1.bf16.msra.mxu0 0
  %2238 = vmatprep.subr.bf16.mxu0 0
  %2239 = vmatpush1.bf16.msra.mxu0 0
  %2240 = vmatprep.subr.bf16.mxu0 0
  %2241 = vmatpush1.bf16.msra.mxu0 0
  %2242 = vmatprep.subr.bf16.mxu0 0
  %2243 = vmatpush1.bf16.msra.mxu0 0
  %2244 = vmatprep.subr.bf16.mxu0 0
  %2245 = vmatpush1.bf16.msra.mxu0 0
  %2246 = vmatprep.subr.bf16.mxu0 0
  %2247 = vmatpush1.bf16.msra.mxu0 0
  %2248 = vmatprep.subr.bf16.mxu0 0
  %2249 = vmatpush1.bf16.msra.mxu0 0
  %2250 = vmatprep.subr.bf16.mxu0 0
  %2251 = vmatpush1.bf16.msra.mxu0 0
  %2252 = vmatprep.subr.bf16.mxu0 0
  %2253 = vmatpush1.bf16.msra.mxu0 0
  %2254 = vmatprep.mubr.bf16.mxu0 0
  %2255 = vmatmul.mubr.bf16.gmra.mrb[0].mxu0 %v2220
  %v2256 = vpop.f32.mrb[0].mxu0
  %v2257 = vadd.f32 %v2213, %v2256
  %v2258 = vpop.f32.mrb[0].mxu0
  %v2259 = vpop.f32.mrb[0].mxu0
  %v2260 = vadd.f32 %v2216, %v2259
  %v2261 = vpop.f32.mrb[0].mxu0
  %2262 = vdwg.mxu0
  %v2263 = vld [vmem:[%s1 + $0x90] sm:$0xf]
  %v2264 = vld [vmem:[%s1 + $0x98] sm:$0xf]
  %v2267 = vunpack.c.l.b16 %v2263
  %v2268 = vunpack.c.l.b16 %v2264
  %v2269 = vpack.c.b16 %v2268, %v2267
  %v2271 = vsel %vm2127, %v2269, 0
  %2273 = vmatprep.subr.bf16.mxu0 0
  %2274 = vmatpush1.bf16.msra.mxu0 %v1930
  %2275 = vmatprep.subr.bf16.mxu0 0
  %2276 = vmatpush1.bf16.msra.mxu0 %v1943
  %2277 = vmatprep.subr.bf16.mxu0 0
  %2278 = vmatpush1.bf16.msra.mxu0 0
  %2279 = vmatprep.subr.bf16.mxu0 0
  %2280 = vmatpush1.bf16.msra.mxu0 0
  %2281 = vmatprep.subr.bf16.mxu0 0
  %2282 = vmatpush1.bf16.msra.mxu0 0
  %2283 = vmatprep.subr.bf16.mxu0 0
  %2284 = vmatpush1.bf16.msra.mxu0 0
  %2285 = vmatprep.subr.bf16.mxu0 0
  %2286 = vmatpush1.bf16.msra.mxu0 0
  %2287 = vmatprep.subr.bf16.mxu0 0
  %2288 = vmatpush1.bf16.msra.mxu0 0
  %2289 = vmatprep.subr.bf16.mxu0 0
  %2290 = vmatpush1.bf16.msra.mxu0 0
  %2291 = vmatprep.subr.bf16.mxu0 0
  %2292 = vmatpush1.bf16.msra.mxu0 0
  %2293 = vmatprep.subr.bf16.mxu0 0
  %2294 = vmatpush1.bf16.msra.mxu0 0
  %2295 = vmatprep.subr.bf16.mxu0 0
  %2296 = vmatpush1.bf16.msra.mxu0 0
  %2297 = vmatprep.subr.bf16.mxu0 0
  %2298 = vmatpush1.bf16.msra.mxu0 0
  %2299 = vmatprep.subr.bf16.mxu0 0
  %2300 = vmatpush1.bf16.msra.mxu0 0
  %2301 = vmatprep.subr.bf16.mxu0 0
  %2302 = vmatpush1.bf16.msra.mxu0 0
  %2303 = vmatprep.subr.bf16.mxu0 0
  %2304 = vmatpush1.bf16.msra.mxu0 0
  %2305 = vmatprep.mubr.bf16.mxu0 0
  %2306 = vmatmul.mubr.bf16.gmra.mrb[0].mxu0 %v2271
  %v2307 = vpop.f32.mrb[0].mxu0
  %v2308 = vadd.f32 %v2062, %v2307
  %v2309 = vpop.f32.mrb[0].mxu0
  %v2310 = vpop.f32.mrb[0].mxu0
  %v2311 = vadd.f32 %v2066, %v2310
  %v2312 = vpop.f32.mrb[0].mxu0
  %2313 = vdwg.mxu0
  %v2314 = vmax.f32 %v2308, 0.0
  %v2315 = vmax.f32 %v2311, 0.0
  %v2316 = vpack.c.bf16 %v2315, %v2314
  %v2318 = vsel %vm2127, %v2316, 0
  %2320 = vmatprep.subr.bf16.mxu0 0
  %2321 = vmatpush1.bf16.msra.mxu0 %v2038
  %2322 = vmatprep.subr.bf16.mxu0 0
  %2323 = vmatpush1.bf16.msra.mxu0 %v2039
  %2324 = vmatprep.subr.bf16.mxu0 0
  %2325 = vmatpush1.bf16.msra.mxu0 0
  %2326 = vmatprep.subr.bf16.mxu0 0
  %2327 = vmatpush1.bf16.msra.mxu0 0
  %2328 = vmatprep.subr.bf16.mxu0 0
  %2329 = vmatpush1.bf16.msra.mxu0 0
  %2330 = vmatprep.subr.bf16.mxu0 0
  %2331 = vmatpush1.bf16.msra.mxu0 0
  %2332 = vmatprep.subr.bf16.mxu0 0
  %2333 = vmatpush1.bf16.msra.mxu0 0
  %2334 = vmatprep.subr.bf16.mxu0 0
  %2335 = vmatpush1.bf16.msra.mxu0 0
  %2336 = vmatprep.subr.bf16.mxu0 0
  %2337 = vmatpush1.bf16.msra.mxu0 0
  %2338 = vmatprep.subr.bf16.mxu0 0
  %2339 = vmatpush1.bf16.msra.mxu0 0
  %2340 = vmatprep.subr.bf16.mxu0 0
  %2341 = vmatpush1.bf16.msra.mxu0 0
  %2342 = vmatprep.subr.bf16.mxu0 0
  %2343 = vmatpush1.bf16.msra.mxu0 0
  %2344 = vmatprep.subr.bf16.mxu0 0
  %2345 = vmatpush1.bf16.msra.mxu0 0
  %2346 = vmatprep.subr.bf16.mxu0 0
  %2347 = vmatpush1.bf16.msra.mxu0 0
  %2348 = vmatprep.subr.bf16.mxu0 0
  %2349 = vmatpush1.bf16.msra.mxu0 0
  %2350 = vmatprep.subr.bf16.mxu0 0
  %2351 = vmatpush1.bf16.msra.mxu0 0
  %2352 = vmatprep.mubr.bf16.mxu0 0
  %2353 = vmatmul.mubr.bf16.gmra.mrb[0].mxu0 %v2318
  %v2354 = vpop.f32.mrb[0].mxu0
  %v2355 = vadd.f32 0.0, %v2354
  %v2356 = vpop.f32.mrb[0].mxu0
  %v2357 = vpop.f32.mrb[0].mxu0
  %v2358 = vadd.f32 0.0, %v2357
  %v2359 = vpop.f32.mrb[0].mxu0
  %2360 = vdwg.mxu0
  %v2361 = vadd.f32 %v2257, %v2355
  %v2362 = vadd.f32 %v2260, %v2358
  %v2363 = vld [vmem:[%s1 + $0xa0] sm:$0xf]
  %v2364 = vld [vmem:[%s1 + $0xa8] sm:$0xf]
  %v2367 = vunpack.c.l.b16 %v2363
  %v2368 = vunpack.c.l.b16 %v2364
  %v2369 = vpack.c.b16 %v2368, %v2367
  %vm2370 = vcmask 523264
  %v2372 = vsel %vm2370, %v2369, 0
  %2374 = vmatprep.subr.bf16.mxu0 0
  %2375 = vmatpush1.bf16.msra.mxu0 %v1930
  %2376 = vmatprep.subr.bf16.mxu0 0
  %2377 = vmatpush1.bf16.msra.mxu0 %v1937
  %2378 = vmatprep.subr.bf16.mxu0 0
  %2379 = vmatpush1.bf16.msra.mxu0 %v1943
  %2380 = vmatprep.subr.bf16.mxu0 0
  %2381 = vmatpush1.bf16.msra.mxu0 %v1949
  %2382 = vmatprep.subr.bf16.mxu0 0
  %2383 = vmatpush1.bf16.msra.mxu0 0
  %2384 = vmatprep.subr.bf16.mxu0 0
  %2385 = vmatpush1.bf16.msra.mxu0 0
  %2386 = vmatprep.subr.bf16.mxu0 0
  %2387 = vmatpush1.bf16.msra.mxu0 0
  %2388 = vmatprep.subr.bf16.mxu0 0
  %2389 = vmatpush1.bf16.msra.mxu0 0
  %2390 = vmatprep.subr.bf16.mxu0 0
  %2391 = vmatpush1.bf16.msra.mxu0 0
  %2392 = vmatprep.subr.bf16.mxu0 0
  %2393 = vmatpush1.bf16.msra.mxu0 0
  %2394 = vmatprep.subr.bf16.mxu0 0
  %2395 = vmatpush1.bf16.msra.mxu0 0
  %2396 = vmatprep.subr.bf16.mxu0 0
  %2397 = vmatpush1.bf16.msra.mxu0 0
  %2398 = vmatprep.subr.bf16.mxu0 0
  %2399 = vmatpush1.bf16.msra.mxu0 0
  %2400 = vmatprep.subr.bf16.mxu0 0
  %2401 = vmatpush1.bf16.msra.mxu0 0
  %2402 = vmatprep.subr.bf16.mxu0 0
  %2403 = vmatpush1.bf16.msra.mxu0 0
  %2404 = vmatprep.subr.bf16.mxu0 0
  %2405 = vmatpush1.bf16.msra.mxu0 0
  %2406 = vmatprep.mubr.bf16.mxu0 0
  %2407 = vmatmul.mubr.bf16.gmra.mrb[0].mxu0 %v2372
  %v2408 = vpop.f32.mrb[0].mxu0
  %v2409 = vadd.f32 %v2062, %v2408
  %v2410 = vpop.f32.mrb[0].mxu0
  %v2411 = vpop.f32.mrb[0].mxu0
  %v2412 = vadd.f32 %v2066, %v2411
  %v2413 = vpop.f32.mrb[0].mxu0
  %2414 = vdwg.mxu0
  %v2415 = vmax.f32 %v2409, 0.0
  %v2416 = vmax.f32 %v2412, 0.0
  %v2417 = vpack.c.bf16 %v2416, %v2415
  %v2419 = vsel %vm2127, %v2417, 0
  %2421 = vmatprep.subr.bf16.mxu0 0
  %2422 = vmatpush1.bf16.msra.mxu0 %v2056
  %2423 = vmatprep.subr.bf16.mxu0 0
  %2424 = vmatpush1.bf16.msra.mxu0 %v2057
  %2425 = vmatprep.subr.bf16.mxu0 0
  %2426 = vmatpush1.bf16.msra.mxu0 0
  %2427 = vmatprep.subr.bf16.mxu0 0
  %2428 = vmatpush1.bf16.msra.mxu0 0
  %2429 = vmatprep.subr.bf16.mxu0 0
  %2430 = vmatpush1.bf16.msra.mxu0 0
  %2431 = vmatprep.subr.bf16.mxu0 0
  %2432 = vmatpush1.bf16.msra.mxu0 0
  %2433 = vmatprep.subr.bf16.mxu0 0
  %2434 = vmatpush1.bf16.msra.mxu0 0
  %2435 = vmatprep.subr.bf16.mxu0 0
  %2436 = vmatpush1.bf16.msra.mxu0 0
  %2437 = vmatprep.subr.bf16.mxu0 0
  %2438 = vmatpush1.bf16.msra.mxu0 0
  %2439 = vmatprep.subr.bf16.mxu0 0
  %2440 = vmatpush1.bf16.msra.mxu0 0
  %2441 = vmatprep.subr.bf16.mxu0 0
  %2442 = vmatpush1.bf16.msra.mxu0 0
  %2443 = vmatprep.subr.bf16.mxu0 0
  %2444 = vmatpush1.bf16.msra.mxu0 0
  %2445 = vmatprep.subr.bf16.mxu0 0
  %2446 = vmatpush1.bf16.msra.mxu0 0
  %2447 = vmatprep.subr.bf16.mxu0 0
  %2448 = vmatpush1.bf16.msra.mxu0 0
  %2449 = vmatprep.subr.bf16.mxu0 0
  %2450 = vmatpush1.bf16.msra.mxu0 0
  %2451 = vmatprep.subr.bf16.mxu0 0
  %2452 = vmatpush1.bf16.msra.mxu0 0
  %2453 = vmatprep.mubr.bf16.mxu0 0
  %2454 = vmatmul.mubr.bf16.gmra.mrb[0].mxu0 %v2419
  %v2455 = vpop.f32.mrb[0].mxu0
  %v2456 = vadd.f32 0.0, %v2455
  %v2457 = vpop.f32.mrb[0].mxu0
  %v2458 = vpop.f32.mrb[0].mxu0
  %v2459 = vadd.f32 0.0, %v2458
  %v2460 = vpop.f32.mrb[0].mxu0
  %2461 = vdwg.mxu0
  %v2462 = vadd.f32 %v2361, %v2456
  %v2463 = vadd.f32 %v2362, %v2459
  %v2464 = vpack.c.bf16 %v2463, %v2462
  %2466 = vrot.lane.b32.xlu0 %v2464, 127
  %v2467 = vpop.permute.xlu0 %2466
  %v2469 = vsel %vm290, %v2467, 0
  %v2471 = vmul.bf16 %v2469, %v1187
  %2472 = vrot.lane.b32.xlu0 %v2464, 120
  %v2473 = vpop.permute.xlu0 %2472
  %v2475 = vsel %vm1242, %v2473, 0
  %v2477 = vmul.bf16 %v2475, %v1194
  %2478 = vrot.lane.b32.xlu0 %v2464, 119
  %v2479 = vpop.permute.xlu0 %2478
  %v2481 = vsel %vm1249, %v2479, 0
  %v2483 = vmul.bf16 %v2481, %v1198
  %v2484 = vshra.s32 %v786, 6
  %v2485 = vshra.s32 %v787, 6
  %v2486 = vshra.s32 %v788, 6
  %v2487 = vshra.s32 %v789, 6
  %v2488 = vshra.s32 %v790, 6
  %v2489 = vshra.s32 %v791, 6
  %v2490 = vshra.s32 %v792, 6
  %v2491 = vshra.s32 %v793, 6
  %v2492 = vshra.s32 %v794, 6
  %v2493 = vshra.s32 %v795, 6
  %v2494 = vshra.s32 %v796, 6
  %v2495 = vshra.s32 %v797, 6
  %v2496 = vshra.s32 %v798, 6
  %v2497 = vshra.s32 %v799, 6
  %v2498 = vshra.s32 %v800, 6
  %v2499 = vshra.s32 %v801, 6
  %v2500 = vand.u32 %v786, 63
  %v2501 = vand.u32 %v787, 63
  %v2502 = vand.u32 %v788, 63
  %v2503 = vand.u32 %v789, 63
  %v2504 = vand.u32 %v790, 63
  %v2505 = vand.u32 %v791, 63
  %v2506 = vand.u32 %v792, 63
  %v2507 = vand.u32 %v793, 63
  %v2508 = vand.u32 %v794, 63
  %v2509 = vand.u32 %v795, 63
  %v2510 = vand.u32 %v796, 63
  %v2511 = vand.u32 %v797, 63
  %v2512 = vand.u32 %v798, 63
  %v2513 = vand.u32 %v799, 63
  %v2514 = vand.u32 %v800, 63
  %v2515 = vand.u32 %v801, 63
  %v2516 = vmul.u32 %v2484, 256
  %v2517 = vmul.u32 %v2485, 256
  %v2518 = vmul.u32 %v2486, 256
  %v2519 = vmul.u32 %v2487, 256
  %v2520 = vmul.u32 %v2488, 256
  %v2521 = vmul.u32 %v2489, 256
  %v2522 = vmul.u32 %v2490, 256
  %v2523 = vmul.u32 %v2491, 256
  %v2524 = vmul.u32 %v2492, 256
  %v2525 = vmul.u32 %v2493, 256
  %v2526 = vmul.u32 %v2494, 256
  %v2527 = vmul.u32 %v2495, 256
  %v2528 = vmul.u32 %v2496, 256
  %v2529 = vmul.u32 %v2497, 256
  %v2530 = vmul.u32 %v2498, 256
  %v2531 = vmul.u32 %v2499, 256
  %v2532 = vshra.s32 %v2500, 3
  %v2533 = vshra.s32 %v2501, 3
  %v2534 = vshra.s32 %v2502, 3
  %v2535 = vshra.s32 %v2503, 3
  %v2536 = vshra.s32 %v2504, 3
  %v2537 = vshra.s32 %v2505, 3
  %v2538 = vshra.s32 %v2506, 3
  %v2539 = vshra.s32 %v2507, 3
  %v2540 = vshra.s32 %v2508, 3
  %v2541 = vshra.s32 %v2509, 3
  %v2542 = vshra.s32 %v2510, 3
  %v2543 = vshra.s32 %v2511, 3
  %v2544 = vshra.s32 %v2512, 3
  %v2545 = vshra.s32 %v2513, 3
  %v2546 = vshra.s32 %v2514, 3
  %v2547 = vshra.s32 %v2515, 3
  %v2548 = vmul.u32 %v2532, 2
  %v2549 = vmul.u32 %v2533, 2
  %v2550 = vmul.u32 %v2534, 2
  %v2551 = vmul.u32 %v2535, 2
  %v2552 = vmul.u32 %v2536, 2
  %v2553 = vmul.u32 %v2537, 2
  %v2554 = vmul.u32 %v2538, 2
  %v2555 = vmul.u32 %v2539, 2
  %v2556 = vmul.u32 %v2540, 2
  %v2557 = vmul.u32 %v2541, 2
  %v2558 = vmul.u32 %v2542, 2
  %v2559 = vmul.u32 %v2543, 2
  %v2560 = vmul.u32 %v2544, 2
  %v2561 = vmul.u32 %v2545, 2
  %v2562 = vmul.u32 %v2546, 2
  %v2563 = vmul.u32 %v2547, 2
  %v2564 = vmul.u32 %v2548, 16
  %v2565 = vmul.u32 %v2549, 16
  %v2566 = vmul.u32 %v2550, 16
  %v2567 = vmul.u32 %v2551, 16
  %v2568 = vmul.u32 %v2552, 16
  %v2569 = vmul.u32 %v2553, 16
  %v2570 = vmul.u32 %v2554, 16
  %v2571 = vmul.u32 %v2555, 16
  %v2572 = vmul.u32 %v2556, 16
  %v2573 = vmul.u32 %v2557, 16
  %v2574 = vmul.u32 %v2558, 16
  %v2575 = vmul.u32 %v2559, 16
  %v2576 = vmul.u32 %v2560, 16
  %v2577 = vmul.u32 %v2561, 16
  %v2578 = vmul.u32 %v2562, 16
  %v2579 = vmul.u32 %v2563, 16
  %v2580 = vadd.s32 %v2516, %v2564
  %v2581 = vadd.s32 %v2517, %v2565
  %v2582 = vadd.s32 %v2518, %v2566
  %v2583 = vadd.s32 %v2519, %v2567
  %v2584 = vadd.s32 %v2520, %v2568
  %v2585 = vadd.s32 %v2521, %v2569
  %v2586 = vadd.s32 %v2522, %v2570
  %v2587 = vadd.s32 %v2523, %v2571
  %v2588 = vadd.s32 %v2524, %v2572
  %v2589 = vadd.s32 %v2525, %v2573
  %v2590 = vadd.s32 %v2526, %v2574
  %v2591 = vadd.s32 %v2527, %v2575
  %v2592 = vadd.s32 %v2528, %v2576
  %v2593 = vadd.s32 %v2529, %v2577
  %v2594 = vadd.s32 %v2530, %v2578
  %v2595 = vadd.s32 %v2531, %v2579
  %v2596 = vand.u32 %v2500, 7
  %v2597 = vand.u32 %v2501, 7
  %v2598 = vand.u32 %v2502, 7
  %v2599 = vand.u32 %v2503, 7
  %v2600 = vand.u32 %v2504, 7
  %v2601 = vand.u32 %v2505, 7
  %v2602 = vand.u32 %v2506, 7
  %v2603 = vand.u32 %v2507, 7
  %v2604 = vand.u32 %v2508, 7
  %v2605 = vand.u32 %v2509, 7
  %v2606 = vand.u32 %v2510, 7
  %v2607 = vand.u32 %v2511, 7
  %v2608 = vand.u32 %v2512, 7
  %v2609 = vand.u32 %v2513, 7
  %v2610 = vand.u32 %v2514, 7
  %v2611 = vand.u32 %v2515, 7
  %v2612 = vmul.u32 %v2596, 2
  %v2613 = vmul.u32 %v2597, 2
  %v2614 = vmul.u32 %v2598, 2
  %v2615 = vmul.u32 %v2599, 2
  %v2616 = vmul.u32 %v2600, 2
  %v2617 = vmul.u32 %v2601, 2
  %v2618 = vmul.u32 %v2602, 2
  %v2619 = vmul.u32 %v2603, 2
  %v2620 = vmul.u32 %v2604, 2
  %v2621 = vmul.u32 %v2605, 2
  %v2622 = vmul.u32 %v2606, 2
  %v2623 = vmul.u32 %v2607, 2
  %v2624 = vmul.u32 %v2608, 2
  %v2625 = vmul.u32 %v2609, 2
  %v2626 = vmul.u32 %v2610, 2
  %v2627 = vmul.u32 %v2611, 2
  %v2628 = vadd.s32 %v2580, %v2612
  %v2629 = vadd.s32 %v2581, %v2613
  %v2630 = vadd.s32 %v2582, %v2614
  %v2631 = vadd.s32 %v2583, %v2615
  %v2632 = vadd.s32 %v2584, %v2616
  %v2633 = vadd.s32 %v2585, %v2617
  %v2634 = vadd.s32 %v2586, %v2618
  %v2635 = vadd.s32 %v2587, %v2619
  %v2636 = vadd.s32 %v2588, %v2620
  %v2637 = vadd.s32 %v2589, %v2621
  %v2638 = vadd.s32 %v2590, %v2622
  %v2639 = vadd.s32 %v2591, %v2623
  %v2640 = vadd.s32 %v2592, %v2624
  %v2641 = vadd.s32 %v2593, %v2625
  %v2642 = vadd.s32 %v2594, %v2626
  %v2643 = vadd.s32 %v2595, %v2627
  %vm2644 = vcmp.eq.s32.totalorder %v22, %v2628
  %vm2645 = vcmp.eq.s32.totalorder %v23, %v2628
  %vm2646 = vcmp.eq.s32.totalorder %v24, %v2628
  %vm2647 = vcmp.eq.s32.totalorder %v25, %v2628
  %vm2648 = vcmp.eq.s32.totalorder %v22, %v2629
  %vm2649 = vcmp.eq.s32.totalorder %v23, %v2629
  %vm2650 = vcmp.eq.s32.totalorder %v24, %v2629
  %vm2651 = vcmp.eq.s32.totalorder %v25, %v2629
  %vm2652 = vcmp.eq.s32.totalorder %v22, %v2630
  %vm2653 = vcmp.eq.s32.totalorder %v23, %v2630
  %vm2654 = vcmp.eq.s32.totalorder %v24, %v2630
  %vm2655 = vcmp.eq.s32.totalorder %v25, %v2630
  %vm2656 = vcmp.eq.s32.totalorder %v22, %v2631
  %vm2657 = vcmp.eq.s32.totalorder %v23, %v2631
  %vm2658 = vcmp.eq.s32.totalorder %v24, %v2631
  %vm2659 = vcmp.eq.s32.totalorder %v25, %v2631
  %vm2660 = vcmp.eq.s32.totalorder %v22, %v2632
  %vm2661 = vcmp.eq.s32.totalorder %v23, %v2632
  %vm2662 = vcmp.eq.s32.totalorder %v24, %v2632
  %vm2663 = vcmp.eq.s32.totalorder %v25, %v2632
  %vm2664 = vcmp.eq.s32.totalorder %v22, %v2633
  %vm2665 = vcmp.eq.s32.totalorder %v23, %v2633
  %vm2666 = vcmp.eq.s32.totalorder %v24, %v2633
  %vm2667 = vcmp.eq.s32.totalorder %v25, %v2633
  %vm2668 = vcmp.eq.s32.totalorder %v22, %v2634
  %vm2669 = vcmp.eq.s32.totalorder %v23, %v2634
  %vm2670 = vcmp.eq.s32.totalorder %v24, %v2634
  %vm2671 = vcmp.eq.s32.totalorder %v25, %v2634
  %vm2672 = vcmp.eq.s32.totalorder %v22, %v2635
  %vm2673 = vcmp.eq.s32.totalorder %v23, %v2635
  %vm2674 = vcmp.eq.s32.totalorder %v24, %v2635
  %vm2675 = vcmp.eq.s32.totalorder %v25, %v2635
  %vm2676 = vcmp.eq.s32.totalorder %v22, %v2636
  %vm2677 = vcmp.eq.s32.totalorder %v23, %v2636
  %vm2678 = vcmp.eq.s32.totalorder %v24, %v2636
  %vm2679 = vcmp.eq.s32.totalorder %v25, %v2636
  %vm2680 = vcmp.eq.s32.totalorder %v22, %v2637
  %vm2681 = vcmp.eq.s32.totalorder %v23, %v2637
  %vm2682 = vcmp.eq.s32.totalorder %v24, %v2637
  %vm2683 = vcmp.eq.s32.totalorder %v25, %v2637
  %vm2684 = vcmp.eq.s32.totalorder %v22, %v2638
  %vm2685 = vcmp.eq.s32.totalorder %v23, %v2638
  %vm2686 = vcmp.eq.s32.totalorder %v24, %v2638
  %vm2687 = vcmp.eq.s32.totalorder %v25, %v2638
  %vm2688 = vcmp.eq.s32.totalorder %v22, %v2639
  %vm2689 = vcmp.eq.s32.totalorder %v23, %v2639
  %vm2690 = vcmp.eq.s32.totalorder %v24, %v2639
  %vm2691 = vcmp.eq.s32.totalorder %v25, %v2639
  %vm2692 = vcmp.eq.s32.totalorder %v22, %v2640
  %vm2693 = vcmp.eq.s32.totalorder %v23, %v2640
  %vm2694 = vcmp.eq.s32.totalorder %v24, %v2640
  %vm2695 = vcmp.eq.s32.totalorder %v25, %v2640
  %vm2696 = vcmp.eq.s32.totalorder %v22, %v2641
  %vm2697 = vcmp.eq.s32.totalorder %v23, %v2641
  %vm2698 = vcmp.eq.s32.totalorder %v24, %v2641
  %vm2699 = vcmp.eq.s32.totalorder %v25, %v2641
  %vm2700 = vcmp.eq.s32.totalorder %v22, %v2642
  %vm2701 = vcmp.eq.s32.totalorder %v23, %v2642
  %vm2702 = vcmp.eq.s32.totalorder %v24, %v2642
  %vm2703 = vcmp.eq.s32.totalorder %v25, %v2642
  %vm2704 = vcmp.eq.s32.totalorder %v22, %v2643
  %vm2705 = vcmp.eq.s32.totalorder %v23, %v2643
  %vm2706 = vcmp.eq.s32.totalorder %v24, %v2643
  %vm2707 = vcmp.eq.s32.totalorder %v25, %v2643
  %v2708 = vsel %vm2644, 1, 0
  %v2709 = vsel %vm2645, 1, 0
  %v2710 = vsel %vm2646, 1, 0
  %v2711 = vsel %vm2647, 1, 0
  %v2712 = vsel %vm2648, 1, 0
  %v2713 = vsel %vm2649, 1, 0
  %v2714 = vsel %vm2650, 1, 0
  %v2715 = vsel %vm2651, 1, 0
  %v2716 = vsel %vm2652, 1, 0
  %v2717 = vsel %vm2653, 1, 0
  %v2718 = vsel %vm2654, 1, 0
  %v2719 = vsel %vm2655, 1, 0
  %v2720 = vsel %vm2656, 1, 0
  %v2721 = vsel %vm2657, 1, 0
  %v2722 = vsel %vm2658, 1, 0
  %v2723 = vsel %vm2659, 1, 0
  %v2724 = vsel %vm2660, 1, 0
  %v2725 = vsel %vm2661, 1, 0
  %v2726 = vsel %vm2662, 1, 0
  %v2727 = vsel %vm2663, 1, 0
  %v2728 = vsel %vm2664, 1, 0
  %v2729 = vsel %vm2665, 1, 0
  %v2730 = vsel %vm2666, 1, 0
  %v2731 = vsel %vm2667, 1, 0
  %v2732 = vsel %vm2668, 1, 0
  %v2733 = vsel %vm2669, 1, 0
  %v2734 = vsel %vm2670, 1, 0
  %v2735 = vsel %vm2671, 1, 0
  %v2736 = vsel %vm2672, 1, 0
  %v2737 = vsel %vm2673, 1, 0
  %v2738 = vsel %vm2674, 1, 0
  %v2739 = vsel %vm2675, 1, 0
  %v2740 = vsel %vm2676, 1, 0
  %v2741 = vsel %vm2677, 1, 0
  %v2742 = vsel %vm2678, 1, 0
  %v2743 = vsel %vm2679, 1, 0
  %v2744 = vsel %vm2680, 1, 0
  %v2745 = vsel %vm2681, 1, 0
  %v2746 = vsel %vm2682, 1, 0
  %v2747 = vsel %vm2683, 1, 0
  %v2748 = vsel %vm2684, 1, 0
  %v2749 = vsel %vm2685, 1, 0
  %v2750 = vsel %vm2686, 1, 0
  %v2751 = vsel %vm2687, 1, 0
  %v2752 = vsel %vm2688, 1, 0
  %v2753 = vsel %vm2689, 1, 0
  %v2754 = vsel %vm2690, 1, 0
  %v2755 = vsel %vm2691, 1, 0
  %v2756 = vsel %vm2692, 1, 0
  %v2757 = vsel %vm2693, 1, 0
  %v2758 = vsel %vm2694, 1, 0
  %v2759 = vsel %vm2695, 1, 0
  %v2760 = vsel %vm2696, 1, 0
  %v2761 = vsel %vm2697, 1, 0
  %v2762 = vsel %vm2698, 1, 0
  %v2763 = vsel %vm2699, 1, 0
  %v2764 = vsel %vm2700, 1, 0
  %v2765 = vsel %vm2701, 1, 0
  %v2766 = vsel %vm2702, 1, 0
  %v2767 = vsel %vm2703, 1, 0
  %v2768 = vsel %vm2704, 1, 0
  %v2769 = vsel %vm2705, 1, 0
  %v2770 = vsel %vm2706, 1, 0
  %v2771 = vsel %vm2707, 1, 0
  %v2772 = vcvt.s32.f32 %v2708
  %v2773 = vcvt.s32.f32 %v2709
  %v2774 = vcvt.s32.f32 %v2710
  %v2775 = vcvt.s32.f32 %v2711
  %v2776 = vcvt.s32.f32 %v2712
  %v2777 = vcvt.s32.f32 %v2713
  %v2778 = vcvt.s32.f32 %v2714
  %v2779 = vcvt.s32.f32 %v2715
  %v2780 = vcvt.s32.f32 %v2716
  %v2781 = vcvt.s32.f32 %v2717
  %v2782 = vcvt.s32.f32 %v2718
  %v2783 = vcvt.s32.f32 %v2719
  %v2784 = vcvt.s32.f32 %v2720
  %v2785 = vcvt.s32.f32 %v2721
  %v2786 = vcvt.s32.f32 %v2722
  %v2787 = vcvt.s32.f32 %v2723
  %v2788 = vcvt.s32.f32 %v2724
  %v2789 = vcvt.s32.f32 %v2725
  %v2790 = vcvt.s32.f32 %v2726
  %v2791 = vcvt.s32.f32 %v2727
  %v2792 = vcvt.s32.f32 %v2728
  %v2793 = vcvt.s32.f32 %v2729
  %v2794 = vcvt.s32.f32 %v2730
  %v2795 = vcvt.s32.f32 %v2731
  %v2796 = vcvt.s32.f32 %v2732
  %v2797 = vcvt.s32.f32 %v2733
  %v2798 = vcvt.s32.f32 %v2734
  %v2799 = vcvt.s32.f32 %v2735
  %v2800 = vcvt.s32.f32 %v2736
  %v2801 = vcvt.s32.f32 %v2737
  %v2802 = vcvt.s32.f32 %v2738
  %v2803 = vcvt.s32.f32 %v2739
  %v2804 = vcvt.s32.f32 %v2740
  %v2805 = vcvt.s32.f32 %v2741
  %v2806 = vcvt.s32.f32 %v2742
  %v2807 = vcvt.s32.f32 %v2743
  %v2808 = vcvt.s32.f32 %v2744
  %v2809 = vcvt.s32.f32 %v2745
  %v2810 = vcvt.s32.f32 %v2746
  %v2811 = vcvt.s32.f32 %v2747
  %v2812 = vcvt.s32.f32 %v2748
  %v2813 = vcvt.s32.f32 %v2749
  %v2814 = vcvt.s32.f32 %v2750
  %v2815 = vcvt.s32.f32 %v2751
  %v2816 = vcvt.s32.f32 %v2752
  %v2817 = vcvt.s32.f32 %v2753
  %v2818 = vcvt.s32.f32 %v2754
  %v2819 = vcvt.s32.f32 %v2755
  %v2820 = vcvt.s32.f32 %v2756
  %v2821 = vcvt.s32.f32 %v2757
  %v2822 = vcvt.s32.f32 %v2758
  %v2823 = vcvt.s32.f32 %v2759
  %v2824 = vcvt.s32.f32 %v2760
  %v2825 = vcvt.s32.f32 %v2761
  %v2826 = vcvt.s32.f32 %v2762
  %v2827 = vcvt.s32.f32 %v2763
  %v2828 = vcvt.s32.f32 %v2764
  %v2829 = vcvt.s32.f32 %v2765
  %v2830 = vcvt.s32.f32 %v2766
  %v2831 = vcvt.s32.f32 %v2767
  %v2832 = vcvt.s32.f32 %v2768
  %v2833 = vcvt.s32.f32 %v2769
  %v2834 = vcvt.s32.f32 %v2770
  %v2835 = vcvt.s32.f32 %v2771
  %v2836 = vpack.c.bf16 %v2776, %v2772
  %v2837 = vpack.c.bf16 %v2777, %v2773
  %v2838 = vpack.c.bf16 %v2778, %v2774
  %v2839 = vpack.c.bf16 %v2779, %v2775
  %v2840 = vpack.c.bf16 %v2784, %v2780
  %v2841 = vpack.c.bf16 %v2785, %v2781
  %v2842 = vpack.c.bf16 %v2786, %v2782
  %v2843 = vpack.c.bf16 %v2787, %v2783
  %v2844 = vpack.c.bf16 %v2792, %v2788
  %v2845 = vpack.c.bf16 %v2793, %v2789
  %v2846 = vpack.c.bf16 %v2794, %v2790
  %v2847 = vpack.c.bf16 %v2795, %v2791
  %v2848 = vpack.c.bf16 %v2800, %v2796
  %v2849 = vpack.c.bf16 %v2801, %v2797
  %v2850 = vpack.c.bf16 %v2802, %v2798
  %v2851 = vpack.c.bf16 %v2803, %v2799
  %v2852 = vpack.c.bf16 %v2808, %v2804
  %v2853 = vpack.c.bf16 %v2809, %v2805
  %v2854 = vpack.c.bf16 %v2810, %v2806
  %v2855 = vpack.c.bf16 %v2811, %v2807
  %v2856 = vpack.c.bf16 %v2816, %v2812
  %v2857 = vpack.c.bf16 %v2817, %v2813
  %v2858 = vpack.c.bf16 %v2818, %v2814
  %v2859 = vpack.c.bf16 %v2819, %v2815
  %v2860 = vpack.c.bf16 %v2824, %v2820
  %v2861 = vpack.c.bf16 %v2825, %v2821
  %v2862 = vpack.c.bf16 %v2826, %v2822
  %v2863 = vpack.c.bf16 %v2827, %v2823
  %v2864 = vpack.c.bf16 %v2832, %v2828
  %v2865 = vpack.c.bf16 %v2833, %v2829
  %v2866 = vpack.c.bf16 %v2834, %v2830
  %v2867 = vpack.c.bf16 %v2835, %v2831
  %v2868 = vadd.s32 %v2628, 1
  %v2869 = vadd.s32 %v2629, 1
  %v2870 = vadd.s32 %v2630, 1
  %v2871 = vadd.s32 %v2631, 1
  %v2872 = vadd.s32 %v2632, 1
  %v2873 = vadd.s32 %v2633, 1
  %v2874 = vadd.s32 %v2634, 1
  %v2875 = vadd.s32 %v2635, 1
  %v2876 = vadd.s32 %v2636, 1
  %v2877 = vadd.s32 %v2637, 1
  %v2878 = vadd.s32 %v2638, 1
  %v2879 = vadd.s32 %v2639, 1
  %v2880 = vadd.s32 %v2640, 1
  %v2881 = vadd.s32 %v2641, 1
  %v2882 = vadd.s32 %v2642, 1
  %v2883 = vadd.s32 %v2643, 1
  %vm2884 = vcmp.eq.s32.totalorder %v22, %v2868
  %vm2885 = vcmp.eq.s32.totalorder %v23, %v2868
  %vm2886 = vcmp.eq.s32.totalorder %v24, %v2868
  %vm2887 = vcmp.eq.s32.totalorder %v25, %v2868
  %vm2888 = vcmp.eq.s32.totalorder %v22, %v2869
  %vm2889 = vcmp.eq.s32.totalorder %v23, %v2869
  %vm2890 = vcmp.eq.s32.totalorder %v24, %v2869
  %vm2891 = vcmp.eq.s32.totalorder %v25, %v2869
  %vm2892 = vcmp.eq.s32.totalorder %v22, %v2870
  %vm2893 = vcmp.eq.s32.totalorder %v23, %v2870
  %vm2894 = vcmp.eq.s32.totalorder %v24, %v2870
  %vm2895 = vcmp.eq.s32.totalorder %v25, %v2870
  %vm2896 = vcmp.eq.s32.totalorder %v22, %v2871
  %vm2897 = vcmp.eq.s32.totalorder %v23, %v2871
  %vm2898 = vcmp.eq.s32.totalorder %v24, %v2871
  %vm2899 = vcmp.eq.s32.totalorder %v25, %v2871
  %vm2900 = vcmp.eq.s32.totalorder %v22, %v2872
  %vm2901 = vcmp.eq.s32.totalorder %v23, %v2872
  %vm2902 = vcmp.eq.s32.totalorder %v24, %v2872
  %vm2903 = vcmp.eq.s32.totalorder %v25, %v2872
  %vm2904 = vcmp.eq.s32.totalorder %v22, %v2873
  %vm2905 = vcmp.eq.s32.totalorder %v23, %v2873
  %vm2906 = vcmp.eq.s32.totalorder %v24, %v2873
  %vm2907 = vcmp.eq.s32.totalorder %v25, %v2873
  %vm2908 = vcmp.eq.s32.totalorder %v22, %v2874
  %vm2909 = vcmp.eq.s32.totalorder %v23, %v2874
  %vm2910 = vcmp.eq.s32.totalorder %v24, %v2874
  %vm2911 = vcmp.eq.s32.totalorder %v25, %v2874
  %vm2912 = vcmp.eq.s32.totalorder %v22, %v2875
  %vm2913 = vcmp.eq.s32.totalorder %v23, %v2875
  %vm2914 = vcmp.eq.s32.totalorder %v24, %v2875
  %vm2915 = vcmp.eq.s32.totalorder %v25, %v2875
  %vm2916 = vcmp.eq.s32.totalorder %v22, %v2876
  %vm2917 = vcmp.eq.s32.totalorder %v23, %v2876
  %vm2918 = vcmp.eq.s32.totalorder %v24, %v2876
  %vm2919 = vcmp.eq.s32.totalorder %v25, %v2876
  %vm2920 = vcmp.eq.s32.totalorder %v22, %v2877
  %vm2921 = vcmp.eq.s32.totalorder %v23, %v2877
  %vm2922 = vcmp.eq.s32.totalorder %v24, %v2877
  %vm2923 = vcmp.eq.s32.totalorder %v25, %v2877
  %vm2924 = vcmp.eq.s32.totalorder %v22, %v2878
  %vm2925 = vcmp.eq.s32.totalorder %v23, %v2878
  %vm2926 = vcmp.eq.s32.totalorder %v24, %v2878
  %vm2927 = vcmp.eq.s32.totalorder %v25, %v2878
  %vm2928 = vcmp.eq.s32.totalorder %v22, %v2879
  %vm2929 = vcmp.eq.s32.totalorder %v23, %v2879
  %vm2930 = vcmp.eq.s32.totalorder %v24, %v2879
  %vm2931 = vcmp.eq.s32.totalorder %v25, %v2879
  %vm2932 = vcmp.eq.s32.totalorder %v22, %v2880
  %vm2933 = vcmp.eq.s32.totalorder %v23, %v2880
  %vm2934 = vcmp.eq.s32.totalorder %v24, %v2880
  %vm2935 = vcmp.eq.s32.totalorder %v25, %v2880
  %vm2936 = vcmp.eq.s32.totalorder %v22, %v2881
  %vm2937 = vcmp.eq.s32.totalorder %v23, %v2881
  %vm2938 = vcmp.eq.s32.totalorder %v24, %v2881
  %vm2939 = vcmp.eq.s32.totalorder %v25, %v2881
  %vm2940 = vcmp.eq.s32.totalorder %v22, %v2882
  %vm2941 = vcmp.eq.s32.totalorder %v23, %v2882
  %vm2942 = vcmp.eq.s32.totalorder %v24, %v2882
  %vm2943 = vcmp.eq.s32.totalorder %v25, %v2882
  %vm2944 = vcmp.eq.s32.totalorder %v22, %v2883
  %vm2945 = vcmp.eq.s32.totalorder %v23, %v2883
  %vm2946 = vcmp.eq.s32.totalorder %v24, %v2883
  %vm2947 = vcmp.eq.s32.totalorder %v25, %v2883
  %v2948 = vsel %vm2884, 1, 0
  %v2949 = vsel %vm2885, 1, 0
  %v2950 = vsel %vm2886, 1, 0
  %v2951 = vsel %vm2887, 1, 0
  %v2952 = vsel %vm2888, 1, 0
  %v2953 = vsel %vm2889, 1, 0
  %v2954 = vsel %vm2890, 1, 0
  %v2955 = vsel %vm2891, 1, 0
  %v2956 = vsel %vm2892, 1, 0
  %v2957 = vsel %vm2893, 1, 0
  %v2958 = vsel %vm2894, 1, 0
  %v2959 = vsel %vm2895, 1, 0
  %v2960 = vsel %vm2896, 1, 0
  %v2961 = vsel %vm2897, 1, 0
  %v2962 = vsel %vm2898, 1, 0
  %v2963 = vsel %vm2899, 1, 0
  %v2964 = vsel %vm2900, 1, 0
  %v2965 = vsel %vm2901, 1, 0
  %v2966 = vsel %vm2902, 1, 0
  %v2967 = vsel %vm2903, 1, 0
  %v2968 = vsel %vm2904, 1, 0
  %v2969 = vsel %vm2905, 1, 0
  %v2970 = vsel %vm2906, 1, 0
  %v2971 = vsel %vm2907, 1, 0
  %v2972 = vsel %vm2908, 1, 0
  %v2973 = vsel %vm2909, 1, 0
  %v2974 = vsel %vm2910, 1, 0
  %v2975 = vsel %vm2911, 1, 0
  %v2976 = vsel %vm2912, 1, 0
  %v2977 = vsel %vm2913, 1, 0
  %v2978 = vsel %vm2914, 1, 0
  %v2979 = vsel %vm2915, 1, 0
  %v2980 = vsel %vm2916, 1, 0
  %v2981 = vsel %vm2917, 1, 0
  %v2982 = vsel %vm2918, 1, 0
  %v2983 = vsel %vm2919, 1, 0
  %v2984 = vsel %vm2920, 1, 0
  %v2985 = vsel %vm2921, 1, 0
  %v2986 = vsel %vm2922, 1, 0
  %v2987 = vsel %vm2923, 1, 0
  %v2988 = vsel %vm2924, 1, 0
  %v2989 = vsel %vm2925, 1, 0
  %v2990 = vsel %vm2926, 1, 0
  %v2991 = vsel %vm2927, 1, 0
  %v2992 = vsel %vm2928, 1, 0
  %v2993 = vsel %vm2929, 1, 0
  %v2994 = vsel %vm2930, 1, 0
  %v2995 = vsel %vm2931, 1, 0
  %v2996 = vsel %vm2932, 1, 0
  %v2997 = vsel %vm2933, 1, 0
  %v2998 = vsel %vm2934, 1, 0
  %v2999 = vsel %vm2935, 1, 0
  %v3000 = vsel %vm2936, 1, 0
  %v3001 = vsel %vm2937, 1, 0
  %v3002 = vsel %vm2938, 1, 0
  %v3003 = vsel %vm2939, 1, 0
  %v3004 = vsel %vm2940, 1, 0
  %v3005 = vsel %vm2941, 1, 0
  %v3006 = vsel %vm2942, 1, 0
  %v3007 = vsel %vm2943, 1, 0
  %v3008 = vsel %vm2944, 1, 0
  %v3009 = vsel %vm2945, 1, 0
  %v3010 = vsel %vm2946, 1, 0
  %v3011 = vsel %vm2947, 1, 0
  %v3012 = vcvt.s32.f32 %v2948
  %v3013 = vcvt.s32.f32 %v2949
  %v3014 = vcvt.s32.f32 %v2950
  %v3015 = vcvt.s32.f32 %v2951
  %v3016 = vcvt.s32.f32 %v2952
  %v3017 = vcvt.s32.f32 %v2953
  %v3018 = vcvt.s32.f32 %v2954
  %v3019 = vcvt.s32.f32 %v2955
  %v3020 = vcvt.s32.f32 %v2956
  %v3021 = vcvt.s32.f32 %v2957
  %v3022 = vcvt.s32.f32 %v2958
  %v3023 = vcvt.s32.f32 %v2959
  %v3024 = vcvt.s32.f32 %v2960
  %v3025 = vcvt.s32.f32 %v2961
  %v3026 = vcvt.s32.f32 %v2962
  %v3027 = vcvt.s32.f32 %v2963
  %v3028 = vcvt.s32.f32 %v2964
  %v3029 = vcvt.s32.f32 %v2965
  %v3030 = vcvt.s32.f32 %v2966
  %v3031 = vcvt.s32.f32 %v2967
  %v3032 = vcvt.s32.f32 %v2968
  %v3033 = vcvt.s32.f32 %v2969
  %v3034 = vcvt.s32.f32 %v2970
  %v3035 = vcvt.s32.f32 %v2971
  %v3036 = vcvt.s32.f32 %v2972
  %v3037 = vcvt.s32.f32 %v2973
  %v3038 = vcvt.s32.f32 %v2974
  %v3039 = vcvt.s32.f32 %v2975
  %v3040 = vcvt.s32.f32 %v2976
  %v3041 = vcvt.s32.f32 %v2977
  %v3042 = vcvt.s32.f32 %v2978
  %v3043 = vcvt.s32.f32 %v2979
  %v3044 = vcvt.s32.f32 %v2980
  %v3045 = vcvt.s32.f32 %v2981
  %v3046 = vcvt.s32.f32 %v2982
  %v3047 = vcvt.s32.f32 %v2983
  %v3048 = vcvt.s32.f32 %v2984
  %v3049 = vcvt.s32.f32 %v2985
  %v3050 = vcvt.s32.f32 %v2986
  %v3051 = vcvt.s32.f32 %v2987
  %v3052 = vcvt.s32.f32 %v2988
  %v3053 = vcvt.s32.f32 %v2989
  %v3054 = vcvt.s32.f32 %v2990
  %v3055 = vcvt.s32.f32 %v2991
  %v3056 = vcvt.s32.f32 %v2992
  %v3057 = vcvt.s32.f32 %v2993
  %v3058 = vcvt.s32.f32 %v2994
  %v3059 = vcvt.s32.f32 %v2995
  %v3060 = vcvt.s32.f32 %v2996
  %v3061 = vcvt.s32.f32 %v2997
  %v3062 = vcvt.s32.f32 %v2998
  %v3063 = vcvt.s32.f32 %v2999
  %v3064 = vcvt.s32.f32 %v3000
  %v3065 = vcvt.s32.f32 %v3001
  %v3066 = vcvt.s32.f32 %v3002
  %v3067 = vcvt.s32.f32 %v3003
  %v3068 = vcvt.s32.f32 %v3004
  %v3069 = vcvt.s32.f32 %v3005
  %v3070 = vcvt.s32.f32 %v3006
  %v3071 = vcvt.s32.f32 %v3007
  %v3072 = vcvt.s32.f32 %v3008
  %v3073 = vcvt.s32.f32 %v3009
  %v3074 = vcvt.s32.f32 %v3010
  %v3075 = vcvt.s32.f32 %v3011
  %v3076 = vpack.c.bf16 %v3016, %v3012
  %v3077 = vpack.c.bf16 %v3017, %v3013
  %v3078 = vpack.c.bf16 %v3018, %v3014
  %v3079 = vpack.c.bf16 %v3019, %v3015
  %v3080 = vpack.c.bf16 %v3024, %v3020
  %v3081 = vpack.c.bf16 %v3025, %v3021
  %v3082 = vpack.c.bf16 %v3026, %v3022
  %v3083 = vpack.c.bf16 %v3027, %v3023
  %v3084 = vpack.c.bf16 %v3032, %v3028
  %v3085 = vpack.c.bf16 %v3033, %v3029
  %v3086 = vpack.c.bf16 %v3034, %v3030
  %v3087 = vpack.c.bf16 %v3035, %v3031
  %v3088 = vpack.c.bf16 %v3040, %v3036
  %v3089 = vpack.c.bf16 %v3041, %v3037
  %v3090 = vpack.c.bf16 %v3042, %v3038
  %v3091 = vpack.c.bf16 %v3043, %v3039
  %v3092 = vpack.c.bf16 %v3048, %v3044
  %v3093 = vpack.c.bf16 %v3049, %v3045
  %v3094 = vpack.c.bf16 %v3050, %v3046
  %v3095 = vpack.c.bf16 %v3051, %v3047
  %v3096 = vpack.c.bf16 %v3056, %v3052
  %v3097 = vpack.c.bf16 %v3057, %v3053
  %v3098 = vpack.c.bf16 %v3058, %v3054
  %v3099 = vpack.c.bf16 %v3059, %v3055
  %v3100 = vpack.c.bf16 %v3064, %v3060
  %v3101 = vpack.c.bf16 %v3065, %v3061
  %v3102 = vpack.c.bf16 %v3066, %v3062
  %v3103 = vpack.c.bf16 %v3067, %v3063
  %v3104 = vpack.c.bf16 %v3072, %v3068
  %v3105 = vpack.c.bf16 %v3073, %v3069
  %v3106 = vpack.c.bf16 %v3074, %v3070
  %v3107 = vpack.c.bf16 %v3075, %v3071
  %v3108 = vadd.s32 %v2628, 16
  %v3109 = vadd.s32 %v2629, 16
  %v3110 = vadd.s32 %v2630, 16
  %v3111 = vadd.s32 %v2631, 16
  %v3112 = vadd.s32 %v2632, 16
  %v3113 = vadd.s32 %v2633, 16
  %v3114 = vadd.s32 %v2634, 16
  %v3115 = vadd.s32 %v2635, 16
  %v3116 = vadd.s32 %v2636, 16
  %v3117 = vadd.s32 %v2637, 16
  %v3118 = vadd.s32 %v2638, 16
  %v3119 = vadd.s32 %v2639, 16
  %v3120 = vadd.s32 %v2640, 16
  %v3121 = vadd.s32 %v2641, 16
  %v3122 = vadd.s32 %v2642, 16
  %v3123 = vadd.s32 %v2643, 16
  %vm3124 = vcmp.eq.s32.totalorder %v22, %v3108
  %vm3125 = vcmp.eq.s32.totalorder %v23, %v3108
  %vm3126 = vcmp.eq.s32.totalorder %v24, %v3108
  %vm3127 = vcmp.eq.s32.totalorder %v25, %v3108
  %vm3128 = vcmp.eq.s32.totalorder %v22, %v3109
  %vm3129 = vcmp.eq.s32.totalorder %v23, %v3109
  %vm3130 = vcmp.eq.s32.totalorder %v24, %v3109
  %vm3131 = vcmp.eq.s32.totalorder %v25, %v3109
  %vm3132 = vcmp.eq.s32.totalorder %v22, %v3110
  %vm3133 = vcmp.eq.s32.totalorder %v23, %v3110
  %vm3134 = vcmp.eq.s32.totalorder %v24, %v3110
  %vm3135 = vcmp.eq.s32.totalorder %v25, %v3110
  %vm3136 = vcmp.eq.s32.totalorder %v22, %v3111
  %vm3137 = vcmp.eq.s32.totalorder %v23, %v3111
  %vm3138 = vcmp.eq.s32.totalorder %v24, %v3111
  %vm3139 = vcmp.eq.s32.totalorder %v25, %v3111
  %vm3140 = vcmp.eq.s32.totalorder %v22, %v3112
  %vm3141 = vcmp.eq.s32.totalorder %v23, %v3112
  %vm3142 = vcmp.eq.s32.totalorder %v24, %v3112
  %vm3143 = vcmp.eq.s32.totalorder %v25, %v3112
  %vm3144 = vcmp.eq.s32.totalorder %v22, %v3113
  %vm3145 = vcmp.eq.s32.totalorder %v23, %v3113
  %vm3146 = vcmp.eq.s32.totalorder %v24, %v3113
  %vm3147 = vcmp.eq.s32.totalorder %v25, %v3113
  %vm3148 = vcmp.eq.s32.totalorder %v22, %v3114
  %vm3149 = vcmp.eq.s32.totalorder %v23, %v3114
  %vm3150 = vcmp.eq.s32.totalorder %v24, %v3114
  %vm3151 = vcmp.eq.s32.totalorder %v25, %v3114
  %vm3152 = vcmp.eq.s32.totalorder %v22, %v3115
  %vm3153 = vcmp.eq.s32.totalorder %v23, %v3115
  %vm3154 = vcmp.eq.s32.totalorder %v24, %v3115
  %vm3155 = vcmp.eq.s32.totalorder %v25, %v3115
  %vm3156 = vcmp.eq.s32.totalorder %v22, %v3116
  %vm3157 = vcmp.eq.s32.totalorder %v23, %v3116
  %vm3158 = vcmp.eq.s32.totalorder %v24, %v3116
  %vm3159 = vcmp.eq.s32.totalorder %v25, %v3116
  %vm3160 = vcmp.eq.s32.totalorder %v22, %v3117
  %vm3161 = vcmp.eq.s32.totalorder %v23, %v3117
  %vm3162 = vcmp.eq.s32.totalorder %v24, %v3117
  %vm3163 = vcmp.eq.s32.totalorder %v25, %v3117
  %vm3164 = vcmp.eq.s32.totalorder %v22, %v3118
  %vm3165 = vcmp.eq.s32.totalorder %v23, %v3118
  %vm3166 = vcmp.eq.s32.totalorder %v24, %v3118
  %vm3167 = vcmp.eq.s32.totalorder %v25, %v3118
  %vm3168 = vcmp.eq.s32.totalorder %v22, %v3119
  %vm3169 = vcmp.eq.s32.totalorder %v23, %v3119
  %vm3170 = vcmp.eq.s32.totalorder %v24, %v3119
  %vm3171 = vcmp.eq.s32.totalorder %v25, %v3119
  %vm3172 = vcmp.eq.s32.totalorder %v22, %v3120
  %vm3173 = vcmp.eq.s32.totalorder %v23, %v3120
  %vm3174 = vcmp.eq.s32.totalorder %v24, %v3120
  %vm3175 = vcmp.eq.s32.totalorder %v25, %v3120
  %vm3176 = vcmp.eq.s32.totalorder %v22, %v3121
  %vm3177 = vcmp.eq.s32.totalorder %v23, %v3121
  %vm3178 = vcmp.eq.s32.totalorder %v24, %v3121
  %vm3179 = vcmp.eq.s32.totalorder %v25, %v3121
  %vm3180 = vcmp.eq.s32.totalorder %v22, %v3122
  %vm3181 = vcmp.eq.s32.totalorder %v23, %v3122
  %vm3182 = vcmp.eq.s32.totalorder %v24, %v3122
  %vm3183 = vcmp.eq.s32.totalorder %v25, %v3122
  %vm3184 = vcmp.eq.s32.totalorder %v22, %v3123
  %vm3185 = vcmp.eq.s32.totalorder %v23, %v3123
  %vm3186 = vcmp.eq.s32.totalorder %v24, %v3123
  %vm3187 = vcmp.eq.s32.totalorder %v25, %v3123
  %v3188 = vsel %vm3124, 1, 0
  %v3189 = vsel %vm3125, 1, 0
  %v3190 = vsel %vm3126, 1, 0
  %v3191 = vsel %vm3127, 1, 0
  %v3192 = vsel %vm3128, 1, 0
  %v3193 = vsel %vm3129, 1, 0
  %v3194 = vsel %vm3130, 1, 0
  %v3195 = vsel %vm3131, 1, 0
  %v3196 = vsel %vm3132, 1, 0
  %v3197 = vsel %vm3133, 1, 0
  %v3198 = vsel %vm3134, 1, 0
  %v3199 = vsel %vm3135, 1, 0
  %v3200 = vsel %vm3136, 1, 0
  %v3201 = vsel %vm3137, 1, 0
  %v3202 = vsel %vm3138, 1, 0
  %v3203 = vsel %vm3139, 1, 0
  %v3204 = vsel %vm3140, 1, 0
  %v3205 = vsel %vm3141, 1, 0
  %v3206 = vsel %vm3142, 1, 0
  %v3207 = vsel %vm3143, 1, 0
  %v3208 = vsel %vm3144, 1, 0
  %v3209 = vsel %vm3145, 1, 0
  %v3210 = vsel %vm3146, 1, 0
  %v3211 = vsel %vm3147, 1, 0
  %v3212 = vsel %vm3148, 1, 0
  %v3213 = vsel %vm3149, 1, 0
  %v3214 = vsel %vm3150, 1, 0
  %v3215 = vsel %vm3151, 1, 0
  %v3216 = vsel %vm3152, 1, 0
  %v3217 = vsel %vm3153, 1, 0
  %v3218 = vsel %vm3154, 1, 0
  %v3219 = vsel %vm3155, 1, 0
  %v3220 = vsel %vm3156, 1, 0
  %v3221 = vsel %vm3157, 1, 0
  %v3222 = vsel %vm3158, 1, 0
  %v3223 = vsel %vm3159, 1, 0
  %v3224 = vsel %vm3160, 1, 0
  %v3225 = vsel %vm3161, 1, 0
  %v3226 = vsel %vm3162, 1, 0
  %v3227 = vsel %vm3163, 1, 0
  %v3228 = vsel %vm3164, 1, 0
  %v3229 = vsel %vm3165, 1, 0
  %v3230 = vsel %vm3166, 1, 0
  %v3231 = vsel %vm3167, 1, 0
  %v3232 = vsel %vm3168, 1, 0
  %v3233 = vsel %vm3169, 1, 0
  %v3234 = vsel %vm3170, 1, 0
  %v3235 = vsel %vm3171, 1, 0
  %v3236 = vsel %vm3172, 1, 0
  %v3237 = vsel %vm3173, 1, 0
  %v3238 = vsel %vm3174, 1, 0
  %v3239 = vsel %vm3175, 1, 0
  %v3240 = vsel %vm3176, 1, 0
  %v3241 = vsel %vm3177, 1, 0
  %v3242 = vsel %vm3178, 1, 0
  %v3243 = vsel %vm3179, 1, 0
  %v3244 = vsel %vm3180, 1, 0
  %v3245 = vsel %vm3181, 1, 0
  %v3246 = vsel %vm3182, 1, 0
  %v3247 = vsel %vm3183, 1, 0
  %v3248 = vsel %vm3184, 1, 0
  %v3249 = vsel %vm3185, 1, 0
  %v3250 = vsel %vm3186, 1, 0
  %v3251 = vsel %vm3187, 1, 0
  %v3252 = vcvt.s32.f32 %v3188
  %v3253 = vcvt.s32.f32 %v3189
  %v3254 = vcvt.s32.f32 %v3190
  %v3255 = vcvt.s32.f32 %v3191
  %v3256 = vcvt.s32.f32 %v3192
  %v3257 = vcvt.s32.f32 %v3193
  %v3258 = vcvt.s32.f32 %v3194
  %v3259 = vcvt.s32.f32 %v3195
  %v3260 = vcvt.s32.f32 %v3196
  %v3261 = vcvt.s32.f32 %v3197
  %v3262 = vcvt.s32.f32 %v3198
  %v3263 = vcvt.s32.f32 %v3199
  %v3264 = vcvt.s32.f32 %v3200
  %v3265 = vcvt.s32.f32 %v3201
  %v3266 = vcvt.s32.f32 %v3202
  %v3267 = vcvt.s32.f32 %v3203
  %v3268 = vcvt.s32.f32 %v3204
  %v3269 = vcvt.s32.f32 %v3205
  %v3270 = vcvt.s32.f32 %v3206
  %v3271 = vcvt.s32.f32 %v3207
  %v3272 = vcvt.s32.f32 %v3208
  %v3273 = vcvt.s32.f32 %v3209
  %v3274 = vcvt.s32.f32 %v3210
  %v3275 = vcvt.s32.f32 %v3211
  %v3276 = vcvt.s32.f32 %v3212
  %v3277 = vcvt.s32.f32 %v3213
  %v3278 = vcvt.s32.f32 %v3214
  %v3279 = vcvt.s32.f32 %v3215
  %v3280 = vcvt.s32.f32 %v3216
  %v3281 = vcvt.s32.f32 %v3217
  %v3282 = vcvt.s32.f32 %v3218
  %v3283 = vcvt.s32.f32 %v3219
  %v3284 = vcvt.s32.f32 %v3220
  %v3285 = vcvt.s32.f32 %v3221
  %v3286 = vcvt.s32.f32 %v3222
  %v3287 = vcvt.s32.f32 %v3223
  %v3288 = vcvt.s32.f32 %v3224
  %v3289 = vcvt.s32.f32 %v3225
  %v3290 = vcvt.s32.f32 %v3226
  %v3291 = vcvt.s32.f32 %v3227
  %v3292 = vcvt.s32.f32 %v3228
  %v3293 = vcvt.s32.f32 %v3229
  %v3294 = vcvt.s32.f32 %v3230
  %v3295 = vcvt.s32.f32 %v3231
  %v3296 = vcvt.s32.f32 %v3232
  %v3297 = vcvt.s32.f32 %v3233
  %v3298 = vcvt.s32.f32 %v3234
  %v3299 = vcvt.s32.f32 %v3235
  %v3300 = vcvt.s32.f32 %v3236
  %v3301 = vcvt.s32.f32 %v3237
  %v3302 = vcvt.s32.f32 %v3238
  %v3303 = vcvt.s32.f32 %v3239
  %v3304 = vcvt.s32.f32 %v3240
  %v3305 = vcvt.s32.f32 %v3241
  %v3306 = vcvt.s32.f32 %v3242
  %v3307 = vcvt.s32.f32 %v3243
  %v3308 = vcvt.s32.f32 %v3244
  %v3309 = vcvt.s32.f32 %v3245
  %v3310 = vcvt.s32.f32 %v3246
  %v3311 = vcvt.s32.f32 %v3247
  %v3312 = vcvt.s32.f32 %v3248
  %v3313 = vcvt.s32.f32 %v3249
  %v3314 = vcvt.s32.f32 %v3250
  %v3315 = vcvt.s32.f32 %v3251
  %v3316 = vpack.c.bf16 %v3256, %v3252
  %v3317 = vpack.c.bf16 %v3257, %v3253
  %v3318 = vpack.c.bf16 %v3258, %v3254
  %v3319 = vpack.c.bf16 %v3259, %v3255
  %v3320 = vpack.c.bf16 %v3264, %v3260
  %v3321 = vpack.c.bf16 %v3265, %v3261
  %v3322 = vpack.c.bf16 %v3266, %v3262
  %v3323 = vpack.c.bf16 %v3267, %v3263
  %v3324 = vpack.c.bf16 %v3272, %v3268
  %v3325 = vpack.c.bf16 %v3273, %v3269
  %v3326 = vpack.c.bf16 %v3274, %v3270
  %v3327 = vpack.c.bf16 %v3275, %v3271
  %v3328 = vpack.c.bf16 %v3280, %v3276
  %v3329 = vpack.c.bf16 %v3281, %v3277
  %v3330 = vpack.c.bf16 %v3282, %v3278
  %v3331 = vpack.c.bf16 %v3283, %v3279
  %v3332 = vpack.c.bf16 %v3288, %v3284
  %v3333 = vpack.c.bf16 %v3289, %v3285
  %v3334 = vpack.c.bf16 %v3290, %v3286
  %v3335 = vpack.c.bf16 %v3291, %v3287
  %v3336 = vpack.c.bf16 %v3296, %v3292
  %v3337 = vpack.c.bf16 %v3297, %v3293
  %v3338 = vpack.c.bf16 %v3298, %v3294
  %v3339 = vpack.c.bf16 %v3299, %v3295
  %v3340 = vpack.c.bf16 %v3304, %v3300
  %v3341 = vpack.c.bf16 %v3305, %v3301
  %v3342 = vpack.c.bf16 %v3306, %v3302
  %v3343 = vpack.c.bf16 %v3307, %v3303
  %v3344 = vpack.c.bf16 %v3312, %v3308
  %v3345 = vpack.c.bf16 %v3313, %v3309
  %v3346 = vpack.c.bf16 %v3314, %v3310
  %v3347 = vpack.c.bf16 %v3315, %v3311
  %v3348 = vadd.s32 %v3108, 1
  %v3349 = vadd.s32 %v3109, 1
  %v3350 = vadd.s32 %v3110, 1
  %v3351 = vadd.s32 %v3111, 1
  %v3352 = vadd.s32 %v3112, 1
  %v3353 = vadd.s32 %v3113, 1
  %v3354 = vadd.s32 %v3114, 1
  %v3355 = vadd.s32 %v3115, 1
  %v3356 = vadd.s32 %v3116, 1
  %v3357 = vadd.s32 %v3117, 1
  %v3358 = vadd.s32 %v3118, 1
  %v3359 = vadd.s32 %v3119, 1
  %v3360 = vadd.s32 %v3120, 1
  %v3361 = vadd.s32 %v3121, 1
  %v3362 = vadd.s32 %v3122, 1
  %v3363 = vadd.s32 %v3123, 1
  %vm3364 = vcmp.eq.s32.totalorder %v22, %v3348
  %vm3365 = vcmp.eq.s32.totalorder %v23, %v3348
  %vm3366 = vcmp.eq.s32.totalorder %v24, %v3348
  %vm3367 = vcmp.eq.s32.totalorder %v25, %v3348
  %vm3368 = vcmp.eq.s32.totalorder %v22, %v3349
  %vm3369 = vcmp.eq.s32.totalorder %v23, %v3349
  %vm3370 = vcmp.eq.s32.totalorder %v24, %v3349
  %vm3371 = vcmp.eq.s32.totalorder %v25, %v3349
  %vm3372 = vcmp.eq.s32.totalorder %v22, %v3350
  %vm3373 = vcmp.eq.s32.totalorder %v23, %v3350
  %vm3374 = vcmp.eq.s32.totalorder %v24, %v3350
  %vm3375 = vcmp.eq.s32.totalorder %v25, %v3350
  %vm3376 = vcmp.eq.s32.totalorder %v22, %v3351
  %vm3377 = vcmp.eq.s32.totalorder %v23, %v3351
  %vm3378 = vcmp.eq.s32.totalorder %v24, %v3351
  %vm3379 = vcmp.eq.s32.totalorder %v25, %v3351
  %vm3380 = vcmp.eq.s32.totalorder %v22, %v3352
  %vm3381 = vcmp.eq.s32.totalorder %v23, %v3352
  %vm3382 = vcmp.eq.s32.totalorder %v24, %v3352
  %vm3383 = vcmp.eq.s32.totalorder %v25, %v3352
  %vm3384 = vcmp.eq.s32.totalorder %v22, %v3353
  %vm3385 = vcmp.eq.s32.totalorder %v23, %v3353
  %vm3386 = vcmp.eq.s32.totalorder %v24, %v3353
  %vm3387 = vcmp.eq.s32.totalorder %v25, %v3353
  %vm3388 = vcmp.eq.s32.totalorder %v22, %v3354
  %vm3389 = vcmp.eq.s32.totalorder %v23, %v3354
  %vm3390 = vcmp.eq.s32.totalorder %v24, %v3354
  %vm3391 = vcmp.eq.s32.totalorder %v25, %v3354
  %vm3392 = vcmp.eq.s32.totalorder %v22, %v3355
  %vm3393 = vcmp.eq.s32.totalorder %v23, %v3355
  %vm3394 = vcmp.eq.s32.totalorder %v24, %v3355
  %vm3395 = vcmp.eq.s32.totalorder %v25, %v3355
  %vm3396 = vcmp.eq.s32.totalorder %v22, %v3356
  %vm3397 = vcmp.eq.s32.totalorder %v23, %v3356
  %vm3398 = vcmp.eq.s32.totalorder %v24, %v3356
  %vm3399 = vcmp.eq.s32.totalorder %v25, %v3356
  %vm3400 = vcmp.eq.s32.totalorder %v22, %v3357
  %vm3401 = vcmp.eq.s32.totalorder %v23, %v3357
  %vm3402 = vcmp.eq.s32.totalorder %v24, %v3357
  %vm3403 = vcmp.eq.s32.totalorder %v25, %v3357
  %vm3404 = vcmp.eq.s32.totalorder %v22, %v3358
  %vm3405 = vcmp.eq.s32.totalorder %v23, %v3358
  %vm3406 = vcmp.eq.s32.totalorder %v24, %v3358
  %vm3407 = vcmp.eq.s32.totalorder %v25, %v3358
  %vm3408 = vcmp.eq.s32.totalorder %v22, %v3359
  %vm3409 = vcmp.eq.s32.totalorder %v23, %v3359
  %vm3410 = vcmp.eq.s32.totalorder %v24, %v3359
  %vm3411 = vcmp.eq.s32.totalorder %v25, %v3359
  %vm3412 = vcmp.eq.s32.totalorder %v22, %v3360
  %vm3413 = vcmp.eq.s32.totalorder %v23, %v3360
  %vm3414 = vcmp.eq.s32.totalorder %v24, %v3360
  %vm3415 = vcmp.eq.s32.totalorder %v25, %v3360
  %vm3416 = vcmp.eq.s32.totalorder %v22, %v3361
  %vm3417 = vcmp.eq.s32.totalorder %v23, %v3361
  %vm3418 = vcmp.eq.s32.totalorder %v24, %v3361
  %vm3419 = vcmp.eq.s32.totalorder %v25, %v3361
  %vm3420 = vcmp.eq.s32.totalorder %v22, %v3362
  %vm3421 = vcmp.eq.s32.totalorder %v23, %v3362
  %vm3422 = vcmp.eq.s32.totalorder %v24, %v3362
  %vm3423 = vcmp.eq.s32.totalorder %v25, %v3362
  %vm3424 = vcmp.eq.s32.totalorder %v22, %v3363
  %vm3425 = vcmp.eq.s32.totalorder %v23, %v3363
  %vm3426 = vcmp.eq.s32.totalorder %v24, %v3363
  %vm3427 = vcmp.eq.s32.totalorder %v25, %v3363
  %v3428 = vsel %vm3364, 1, 0
  %v3429 = vsel %vm3365, 1, 0
  %v3430 = vsel %vm3366, 1, 0
  %v3431 = vsel %vm3367, 1, 0
  %v3432 = vsel %vm3368, 1, 0
  %v3433 = vsel %vm3369, 1, 0
  %v3434 = vsel %vm3370, 1, 0
  %v3435 = vsel %vm3371, 1, 0
  %v3436 = vsel %vm3372, 1, 0
  %v3437 = vsel %vm3373, 1, 0
  %v3438 = vsel %vm3374, 1, 0
  %v3439 = vsel %vm3375, 1, 0
  %v3440 = vsel %vm3376, 1, 0
  %v3441 = vsel %vm3377, 1, 0
  %v3442 = vsel %vm3378, 1, 0
  %v3443 = vsel %vm3379, 1, 0
  %v3444 = vsel %vm3380, 1, 0
  %v3445 = vsel %vm3381, 1, 0
  %v3446 = vsel %vm3382, 1, 0
  %v3447 = vsel %vm3383, 1, 0
  %v3448 = vsel %vm3384, 1, 0
  %v3449 = vsel %vm3385, 1, 0
  %v3450 = vsel %vm3386, 1, 0
  %v3451 = vsel %vm3387, 1, 0
  %v3452 = vsel %vm3388, 1, 0
  %v3453 = vsel %vm3389, 1, 0
  %v3454 = vsel %vm3390, 1, 0
  %v3455 = vsel %vm3391, 1, 0
  %v3456 = vsel %vm3392, 1, 0
  %v3457 = vsel %vm3393, 1, 0
  %v3458 = vsel %vm3394, 1, 0
  %v3459 = vsel %vm3395, 1, 0
  %v3460 = vsel %vm3396, 1, 0
  %v3461 = vsel %vm3397, 1, 0
  %v3462 = vsel %vm3398, 1, 0
  %v3463 = vsel %vm3399, 1, 0
  %v3464 = vsel %vm3400, 1, 0
  %v3465 = vsel %vm3401, 1, 0
  %v3466 = vsel %vm3402, 1, 0
  %v3467 = vsel %vm3403, 1, 0
  %v3468 = vsel %vm3404, 1, 0
  %v3469 = vsel %vm3405, 1, 0
  %v3470 = vsel %vm3406, 1, 0
  %v3471 = vsel %vm3407, 1, 0
  %v3472 = vsel %vm3408, 1, 0
  %v3473 = vsel %vm3409, 1, 0
  %v3474 = vsel %vm3410, 1, 0
  %v3475 = vsel %vm3411, 1, 0
  %v3476 = vsel %vm3412, 1, 0
  %v3477 = vsel %vm3413, 1, 0
  %v3478 = vsel %vm3414, 1, 0
  %v3479 = vsel %vm3415, 1, 0
  %v3480 = vsel %vm3416, 1, 0
  %v3481 = vsel %vm3417, 1, 0
  %v3482 = vsel %vm3418, 1, 0
  %v3483 = vsel %vm3419, 1, 0
  %v3484 = vsel %vm3420, 1, 0
  %v3485 = vsel %vm3421, 1, 0
  %v3486 = vsel %vm3422, 1, 0
  %v3487 = vsel %vm3423, 1, 0
  %v3488 = vsel %vm3424, 1, 0
  %v3489 = vsel %vm3425, 1, 0
  %v3490 = vsel %vm3426, 1, 0
  %v3491 = vsel %vm3427, 1, 0
  %v3492 = vcvt.s32.f32 %v3428
  %v3493 = vcvt.s32.f32 %v3429
  %v3494 = vcvt.s32.f32 %v3430
  %v3495 = vcvt.s32.f32 %v3431
  %v3496 = vcvt.s32.f32 %v3432
  %v3497 = vcvt.s32.f32 %v3433
  %v3498 = vcvt.s32.f32 %v3434
  %v3499 = vcvt.s32.f32 %v3435
  %v3500 = vcvt.s32.f32 %v3436
  %v3501 = vcvt.s32.f32 %v3437
  %v3502 = vcvt.s32.f32 %v3438
  %v3503 = vcvt.s32.f32 %v3439
  %v3504 = vcvt.s32.f32 %v3440
  %v3505 = vcvt.s32.f32 %v3441
  %v3506 = vcvt.s32.f32 %v3442
  %v3507 = vcvt.s32.f32 %v3443
  %v3508 = vcvt.s32.f32 %v3444
  %v3509 = vcvt.s32.f32 %v3445
  %v3510 = vcvt.s32.f32 %v3446
  %v3511 = vcvt.s32.f32 %v3447
  %v3512 = vcvt.s32.f32 %v3448
  %v3513 = vcvt.s32.f32 %v3449
  %v3514 = vcvt.s32.f32 %v3450
  %v3515 = vcvt.s32.f32 %v3451
  %v3516 = vcvt.s32.f32 %v3452
  %v3517 = vcvt.s32.f32 %v3453
  %v3518 = vcvt.s32.f32 %v3454
  %v3519 = vcvt.s32.f32 %v3455
  %v3520 = vcvt.s32.f32 %v3456
  %v3521 = vcvt.s32.f32 %v3457
  %v3522 = vcvt.s32.f32 %v3458
  %v3523 = vcvt.s32.f32 %v3459
  %v3524 = vcvt.s32.f32 %v3460
  %v3525 = vcvt.s32.f32 %v3461
  %v3526 = vcvt.s32.f32 %v3462
  %v3527 = vcvt.s32.f32 %v3463
  %v3528 = vcvt.s32.f32 %v3464
  %v3529 = vcvt.s32.f32 %v3465
  %v3530 = vcvt.s32.f32 %v3466
  %v3531 = vcvt.s32.f32 %v3467
  %v3532 = vcvt.s32.f32 %v3468
  %v3533 = vcvt.s32.f32 %v3469
  %v3534 = vcvt.s32.f32 %v3470
  %v3535 = vcvt.s32.f32 %v3471
  %v3536 = vcvt.s32.f32 %v3472
  %v3537 = vcvt.s32.f32 %v3473
  %v3538 = vcvt.s32.f32 %v3474
  %v3539 = vcvt.s32.f32 %v3475
  %v3540 = vcvt.s32.f32 %v3476
  %v3541 = vcvt.s32.f32 %v3477
  %v3542 = vcvt.s32.f32 %v3478
  %v3543 = vcvt.s32.f32 %v3479
  %v3544 = vcvt.s32.f32 %v3480
  %v3545 = vcvt.s32.f32 %v3481
  %v3546 = vcvt.s32.f32 %v3482
  %v3547 = vcvt.s32.f32 %v3483
  %v3548 = vcvt.s32.f32 %v3484
  %v3549 = vcvt.s32.f32 %v3485
  %v3550 = vcvt.s32.f32 %v3486
  %v3551 = vcvt.s32.f32 %v3487
  %v3552 = vcvt.s32.f32 %v3488
  %v3553 = vcvt.s32.f32 %v3489
  %v3554 = vcvt.s32.f32 %v3490
  %v3555 = vcvt.s32.f32 %v3491
  %v3556 = vpack.c.bf16 %v3496, %v3492
  %v3557 = vpack.c.bf16 %v3497, %v3493
  %v3558 = vpack.c.bf16 %v3498, %v3494
  %v3559 = vpack.c.bf16 %v3499, %v3495
  %v3560 = vpack.c.bf16 %v3504, %v3500
  %v3561 = vpack.c.bf16 %v3505, %v3501
  %v3562 = vpack.c.bf16 %v3506, %v3502
  %v3563 = vpack.c.bf16 %v3507, %v3503
  %v3564 = vpack.c.bf16 %v3512, %v3508
  %v3565 = vpack.c.bf16 %v3513, %v3509
  %v3566 = vpack.c.bf16 %v3514, %v3510
  %v3567 = vpack.c.bf16 %v3515, %v3511
  %v3568 = vpack.c.bf16 %v3520, %v3516
  %v3569 = vpack.c.bf16 %v3521, %v3517
  %v3570 = vpack.c.bf16 %v3522, %v3518
  %v3571 = vpack.c.bf16 %v3523, %v3519
  %v3572 = vpack.c.bf16 %v3528, %v3524
  %v3573 = vpack.c.bf16 %v3529, %v3525
  %v3574 = vpack.c.bf16 %v3530, %v3526
  %v3575 = vpack.c.bf16 %v3531, %v3527
  %v3576 = vpack.c.bf16 %v3536, %v3532
  %v3577 = vpack.c.bf16 %v3537, %v3533
  %v3578 = vpack.c.bf16 %v3538, %v3534
  %v3579 = vpack.c.bf16 %v3539, %v3535
  %v3580 = vpack.c.bf16 %v3544, %v3540
  %v3581 = vpack.c.bf16 %v3545, %v3541
  %v3582 = vpack.c.bf16 %v3546, %v3542
  %v3583 = vpack.c.bf16 %v3547, %v3543
  %v3584 = vpack.c.bf16 %v3552, %v3548
  %v3585 = vpack.c.bf16 %v3553, %v3549
  %v3586 = vpack.c.bf16 %v3554, %v3550
  %v3587 = vpack.c.bf16 %v3555, %v3551
  %v3588 = vld [vmem:[%s1 + $0xb0] sm:$0xf]
  %v3589 = vld [vmem:[%s1 + $0xb8] sm:$0xf]
  %3590 = vset.pattern.permute.xlu0 8
  %3591 = vperm.xlu0 %3590, %v19
  %v3592 = vpop.permute.xlu0 %3591
  %3594 = vset.pattern.permute.xlu0 8
  %3595 = vperm.xlu0 %3594, %v20
  %v3596 = vpop.permute.xlu0 %3595
  %v3600 = vunpack.c.l.b16 %v3588
  %v3601 = vunpack.c.l.b16 %v3589
  %v3602 = vpack.c.b16 %v3601, %v3600
  %v3604 = vsel %vm221, %v3602, 0
  %3606 = vmatprep.subr.bf16.mxu0 0
  %3607 = vmatpush1.bf16.msra.mxu0 %v2464
  %3608 = vmatprep.subr.bf16.mxu0 0
  %3609 = vmatpush1.bf16.msra.mxu0 0
  %3610 = vmatprep.subr.bf16.mxu0 0
  %3611 = vmatpush1.bf16.msra.mxu0 0
  %3612 = vmatprep.subr.bf16.mxu0 0
  %3613 = vmatpush1.bf16.msra.mxu0 0
  %3614 = vmatprep.subr.bf16.mxu0 0
  %3615 = vmatpush1.bf16.msra.mxu0 0
  %3616 = vmatprep.subr.bf16.mxu0 0
  %3617 = vmatpush1.bf16.msra.mxu0 0
  %3618 = vmatprep.subr.bf16.mxu0 0
  %3619 = vmatpush1.bf16.msra.mxu0 0
  %3620 = vmatprep.subr.bf16.mxu0 0
  %3621 = vmatpush1.bf16.msra.mxu0 0
  %3622 = vmatprep.subr.bf16.mxu0 0
  %3623 = vmatpush1.bf16.msra.mxu0 0
  %3624 = vmatprep.subr.bf16.mxu0 0
  %3625 = vmatpush1.bf16.msra.mxu0 0
  %3626 = vmatprep.subr.bf16.mxu0 0
  %3627 = vmatpush1.bf16.msra.mxu0 0
  %3628 = vmatprep.subr.bf16.mxu0 0
  %3629 = vmatpush1.bf16.msra.mxu0 0
  %3630 = vmatprep.subr.bf16.mxu0 0
  %3631 = vmatpush1.bf16.msra.mxu0 0
  %3632 = vmatprep.subr.bf16.mxu0 0
  %3633 = vmatpush1.bf16.msra.mxu0 0
  %3634 = vmatprep.subr.bf16.mxu0 0
  %3635 = vmatpush1.bf16.msra.mxu0 0
  %3636 = vmatprep.subr.bf16.mxu0 0
  %3637 = vmatpush1.bf16.msra.mxu0 0
  %3638 = vmatprep.mubr.bf16.mxu0 0
  %3639 = vmatmul.mubr.bf16.gmra.mrb[0].mxu0 %v3604
  %v3640 = vpop.f32.mrb[0].mxu0
  %v3641 = vadd.f32 %v3592, %v3640
  %v3642 = vpop.f32.mrb[0].mxu0
  %v3643 = vpop.f32.mrb[0].mxu0
  %v3644 = vadd.f32 %v3596, %v3643
  %v3645 = vpop.f32.mrb[0].mxu0
  %3646 = vdwg.mxu0
  %v3647 = vmax.f32 %v3641, 0.0
  %v3648 = vmax.f32 %v3644, 0.0
  %v3649 = vpack.c.bf16 %v3648, %v3647
  %v3650 = vld [vmem:[%s1 + $0xc0] sm:$0xf]
  %v3651 = vld [vmem:[%s1 + $0xc8] sm:$0xf]
  %v3654 = vunpack.c.l.b16 %v3650
  %v3655 = vunpack.c.l.b16 %v3651
  %v3656 = vpack.c.b16 %v3655, %v3654
  %v3658 = vsel %vm2127, %v3656, 0
  %3660 = vmatprep.subr.bf16.mxu0 0
  %3661 = vmatpush1.bf16.msra.mxu0 %v2464
  %3662 = vmatprep.subr.bf16.mxu0 0
  %3663 = vmatpush1.bf16.msra.mxu0 %v2471
  %3664 = vmatprep.subr.bf16.mxu0 0
  %3665 = vmatpush1.bf16.msra.mxu0 0
  %3666 = vmatprep.subr.bf16.mxu0 0
  %3667 = vmatpush1.bf16.msra.mxu0 0
  %3668 = vmatprep.subr.bf16.mxu0 0
  %3669 = vmatpush1.bf16.msra.mxu0 0
  %3670 = vmatprep.subr.bf16.mxu0 0
  %3671 = vmatpush1.bf16.msra.mxu0 0
  %3672 = vmatprep.subr.bf16.mxu0 0
  %3673 = vmatpush1.bf16.msra.mxu0 0
  %3674 = vmatprep.subr.bf16.mxu0 0
  %3675 = vmatpush1.bf16.msra.mxu0 0
  %3676 = vmatprep.subr.bf16.mxu0 0
  %3677 = vmatpush1.bf16.msra.mxu0 0
  %3678 = vmatprep.subr.bf16.mxu0 0
  %3679 = vmatpush1.bf16.msra.mxu0 0
  %3680 = vmatprep.subr.bf16.mxu0 0
  %3681 = vmatpush1.bf16.msra.mxu0 0
  %3682 = vmatprep.subr.bf16.mxu0 0
  %3683 = vmatpush1.bf16.msra.mxu0 0
  %3684 = vmatprep.subr.bf16.mxu0 0
  %3685 = vmatpush1.bf16.msra.mxu0 0
  %3686 = vmatprep.subr.bf16.mxu0 0
  %3687 = vmatpush1.bf16.msra.mxu0 0
  %3688 = vmatprep.subr.bf16.mxu0 0
  %3689 = vmatpush1.bf16.msra.mxu0 0
  %3690 = vmatprep.subr.bf16.mxu0 0
  %3691 = vmatpush1.bf16.msra.mxu0 0
  %3692 = vmatprep.mubr.bf16.mxu0 0
  %3693 = vmatmul.mubr.bf16.gmra.mrb[0].mxu0 %v3658
  %v3694 = vpop.f32.mrb[0].mxu0
  %v3695 = vadd.f32 %v3592, %v3694
  %v3696 = vpop.f32.mrb[0].mxu0
  %v3697 = vpop.f32.mrb[0].mxu0
  %v3698 = vadd.f32 %v3596, %v3697
  %v3699 = vpop.f32.mrb[0].mxu0
  %3700 = vdwg.mxu0
  %v3701 = vmax.f32 %v3695, 0.0
  %v3702 = vmax.f32 %v3698, 0.0
  %v3703 = vpack.c.bf16 %v3702, %v3701
  %3704 = vmatprep.subr.bf16.mxu0 %v3077
  %3705 = vmatpush1.bf16.msra.mxu0 %v3076
  %3706 = vmatprep.subr.bf16.mxu0 %v3081
  %3707 = vmatpush1.bf16.msra.mxu0 %v3080
  %3708 = vmatprep.subr.bf16.mxu0 %v3085
  %3709 = vmatpush1.bf16.msra.mxu0 %v3084
  %3710 = vmatprep.subr.bf16.mxu0 %v3089
  %3711 = vmatpush1.bf16.msra.mxu0 %v3088
  %3712 = vmatprep.subr.bf16.mxu0 %v3093
  %3713 = vmatpush1.bf16.msra.mxu0 %v3092
  %3714 = vmatprep.subr.bf16.mxu0 %v3097
  %3715 = vmatpush1.bf16.msra.mxu0 %v3096
  %3716 = vmatprep.subr.bf16.mxu0 %v3101
  %3717 = vmatpush1.bf16.msra.mxu0 %v3100
  %3718 = vmatprep.subr.bf16.mxu0 %v3105
  %3719 = vmatpush1.bf16.msra.mxu0 %v3104
  %3720 = vmatprep.subr.bf16.mxu0 0
  %3721 = vmatpush1.bf16.msra.mxu0 0
  %3722 = vmatprep.subr.bf16.mxu0 0
  %3723 = vmatpush1.bf16.msra.mxu0 0
  %3724 = vmatprep.subr.bf16.mxu0 0
  %3725 = vmatpush1.bf16.msra.mxu0 0
  %3726 = vmatprep.subr.bf16.mxu0 0
  %3727 = vmatpush1.bf16.msra.mxu0 0
  %3728 = vmatprep.subr.bf16.mxu0 0
  %3729 = vmatpush1.bf16.msra.mxu0 0
  %3730 = vmatprep.subr.bf16.mxu0 0
  %3731 = vmatpush1.bf16.msra.mxu0 0
  %3732 = vmatprep.subr.bf16.mxu0 0
  %3733 = vmatpush1.bf16.msra.mxu0 0
  %3734 = vmatprep.subr.bf16.mxu0 0
  %3735 = vmatpush1.bf16.msra.mxu0 0
  %3736 = vmatprep.mubr.bf16.mxu0 0
  %3737 = vmatmul.mubr.bf16.gmra.mrb[0].mxu0 %v3703
  %v3738 = vpop.f32.mrb[0].mxu0
  %v3739 = vadd.f32 0.0, %v3738
  %v3740 = vpop.f32.mrb[0].mxu0
  %v3741 = vadd.f32 0.0, %v3740
  %v3742 = vpop.f32.mrb[0].mxu0
  %v3743 = vadd.f32 0.0, %v3742
  %v3744 = vpop.f32.mrb[0].mxu0
  %v3745 = vadd.f32 0.0, %v3744
  %3746 = vdwg.mxu0
  %3747 = vmatprep.subr.bf16.mxu0 %v3079
  %3748 = vmatpush1.bf16.msra.mxu0 %v3078
  %3749 = vmatprep.subr.bf16.mxu0 %v3083
  %3750 = vmatpush1.bf16.msra.mxu0 %v3082
  %3751 = vmatprep.subr.bf16.mxu0 %v3087
  %3752 = vmatpush1.bf16.msra.mxu0 %v3086
  %3753 = vmatprep.subr.bf16.mxu0 %v3091
  %3754 = vmatpush1.bf16.msra.mxu0 %v3090
  %3755 = vmatprep.subr.bf16.mxu0 %v3095
  %3756 = vmatpush1.bf16.msra.mxu0 %v3094
  %3757 = vmatprep.subr.bf16.mxu0 %v3099
  %3758 = vmatpush1.bf16.msra.mxu0 %v3098
  %3759 = vmatprep.subr.bf16.mxu0 %v3103
  %3760 = vmatpush1.bf16.msra.mxu0 %v3102
  %3761 = vmatprep.subr.bf16.mxu0 %v3107
  %3762 = vmatpush1.bf16.msra.mxu0 %v3106
  %3763 = vmatprep.subr.bf16.mxu0 0
  %3764 = vmatpush1.bf16.msra.mxu0 0
  %3765 = vmatprep.subr.bf16.mxu0 0
  %3766 = vmatpush1.bf16.msra.mxu0 0
  %3767 = vmatprep.subr.bf16.mxu0 0
  %3768 = vmatpush1.bf16.msra.mxu0 0
  %3769 = vmatprep.subr.bf16.mxu0 0
  %3770 = vmatpush1.bf16.msra.mxu0 0
  %3771 = vmatprep.subr.bf16.mxu0 0
  %3772 = vmatpush1.bf16.msra.mxu0 0
  %3773 = vmatprep.subr.bf16.mxu0 0
  %3774 = vmatpush1.bf16.msra.mxu0 0
  %3775 = vmatprep.subr.bf16.mxu0 0
  %3776 = vmatpush1.bf16.msra.mxu0 0
  %3777 = vmatprep.subr.bf16.mxu0 0
  %3778 = vmatpush1.bf16.msra.mxu0 0
  %3779 = vmatprep.mubr.bf16.mxu0 0
  %3780 = vmatmul.mubr.bf16.gmra.mrb[0].mxu0 %v3703
  %v3781 = vpop.f32.mrb[0].mxu0
  %v3782 = vadd.f32 0.0, %v3781
  %v3783 = vpop.f32.mrb[0].mxu0
  %v3784 = vadd.f32 0.0, %v3783
  %v3785 = vpop.f32.mrb[0].mxu0
  %v3786 = vadd.f32 0.0, %v3785
  %v3787 = vpop.f32.mrb[0].mxu0
  %v3788 = vadd.f32 0.0, %v3787
  %3789 = vdwg.mxu0
  %3790 = vmatprep.subr.bf16.mxu0 %v2837
  %3791 = vmatpush1.bf16.msra.mxu0 %v2836
  %3792 = vmatprep.subr.bf16.mxu0 %v2841
  %3793 = vmatpush1.bf16.msra.mxu0 %v2840
  %3794 = vmatprep.subr.bf16.mxu0 %v2845
  %3795 = vmatpush1.bf16.msra.mxu0 %v2844
  %3796 = vmatprep.subr.bf16.mxu0 %v2849
  %3797 = vmatpush1.bf16.msra.mxu0 %v2848
  %3798 = vmatprep.subr.bf16.mxu0 %v2853
  %3799 = vmatpush1.bf16.msra.mxu0 %v2852
  %3800 = vmatprep.subr.bf16.mxu0 %v2857
  %3801 = vmatpush1.bf16.msra.mxu0 %v2856
  %3802 = vmatprep.subr.bf16.mxu0 %v2861
  %3803 = vmatpush1.bf16.msra.mxu0 %v2860
  %3804 = vmatprep.subr.bf16.mxu0 %v2865
  %3805 = vmatpush1.bf16.msra.mxu0 %v2864
  %3806 = vmatprep.subr.bf16.mxu0 0
  %3807 = vmatpush1.bf16.msra.mxu0 0
  %3808 = vmatprep.subr.bf16.mxu0 0
  %3809 = vmatpush1.bf16.msra.mxu0 0
  %3810 = vmatprep.subr.bf16.mxu0 0
  %3811 = vmatpush1.bf16.msra.mxu0 0
  %3812 = vmatprep.subr.bf16.mxu0 0
  %3813 = vmatpush1.bf16.msra.mxu0 0
  %3814 = vmatprep.subr.bf16.mxu0 0
  %3815 = vmatpush1.bf16.msra.mxu0 0
  %3816 = vmatprep.subr.bf16.mxu0 0
  %3817 = vmatpush1.bf16.msra.mxu0 0
  %3818 = vmatprep.subr.bf16.mxu0 0
  %3819 = vmatpush1.bf16.msra.mxu0 0
  %3820 = vmatprep.subr.bf16.mxu0 0
  %3821 = vmatpush1.bf16.msra.mxu0 0
  %3822 = vmatprep.mubr.bf16.mxu0 0
  %3823 = vmatmul.mubr.bf16.gmra.mrb[0].mxu0 %v3649
  %v3824 = vpop.f32.mrb[0].mxu0
  %v3825 = vadd.f32 %v3739, %v3824
  %v3826 = vpop.f32.mrb[0].mxu0
  %v3827 = vadd.f32 %v3741, %v3826
  %v3828 = vpop.f32.mrb[0].mxu0
  %v3829 = vadd.f32 %v3743, %v3828
  %v3830 = vpop.f32.mrb[0].mxu0
  %v3831 = vadd.f32 %v3745, %v3830
  %3832 = vdwg.mxu0
  %3833 = vmatprep.subr.bf16.mxu0 %v2839
  %3834 = vmatpush1.bf16.msra.mxu0 %v2838
  %3835 = vmatprep.subr.bf16.mxu0 %v2843
  %3836 = vmatpush1.bf16.msra.mxu0 %v2842
  %3837 = vmatprep.subr.bf16.mxu0 %v2847
  %3838 = vmatpush1.bf16.msra.mxu0 %v2846
  %3839 = vmatprep.subr.bf16.mxu0 %v2851
  %3840 = vmatpush1.bf16.msra.mxu0 %v2850
  %3841 = vmatprep.subr.bf16.mxu0 %v2855
  %3842 = vmatpush1.bf16.msra.mxu0 %v2854
  %3843 = vmatprep.subr.bf16.mxu0 %v2859
  %3844 = vmatpush1.bf16.msra.mxu0 %v2858
  %3845 = vmatprep.subr.bf16.mxu0 %v2863
  %3846 = vmatpush1.bf16.msra.mxu0 %v2862
  %3847 = vmatprep.subr.bf16.mxu0 %v2867
  %3848 = vmatpush1.bf16.msra.mxu0 %v2866
  %3849 = vmatprep.subr.bf16.mxu0 0
  %3850 = vmatpush1.bf16.msra.mxu0 0
  %3851 = vmatprep.subr.bf16.mxu0 0
  %3852 = vmatpush1.bf16.msra.mxu0 0
  %3853 = vmatprep.subr.bf16.mxu0 0
  %3854 = vmatpush1.bf16.msra.mxu0 0
  %3855 = vmatprep.subr.bf16.mxu0 0
  %3856 = vmatpush1.bf16.msra.mxu0 0
  %3857 = vmatprep.subr.bf16.mxu0 0
  %3858 = vmatpush1.bf16.msra.mxu0 0
  %3859 = vmatprep.subr.bf16.mxu0 0
  %3860 = vmatpush1.bf16.msra.mxu0 0
  %3861 = vmatprep.subr.bf16.mxu0 0
  %3862 = vmatpush1.bf16.msra.mxu0 0
  %3863 = vmatprep.subr.bf16.mxu0 0
  %3864 = vmatpush1.bf16.msra.mxu0 0
  %3865 = vmatprep.mubr.bf16.mxu0 0
  %3866 = vmatmul.mubr.bf16.gmra.mrb[0].mxu0 %v3649
  %v3867 = vpop.f32.mrb[0].mxu0
  %v3868 = vadd.f32 %v3782, %v3867
  %v3869 = vpop.f32.mrb[0].mxu0
  %v3870 = vadd.f32 %v3784, %v3869
  %v3871 = vpop.f32.mrb[0].mxu0
  %v3872 = vadd.f32 %v3786, %v3871
  %v3873 = vpop.f32.mrb[0].mxu0
  %v3874 = vadd.f32 %v3788, %v3873
  %3875 = vdwg.mxu0
  %v3876 = vld [vmem:[%s1 + $0xd0] sm:$0xf]
  %v3877 = vld [vmem:[%s1 + $0xd8] sm:$0xf]
  %v3880 = vunpack.c.l.b16 %v3876
  %v3881 = vunpack.c.l.b16 %v3877
  %v3882 = vpack.c.b16 %v3881, %v3880
  %v3884 = vsel %vm2127, %v3882, 0
  %3886 = vmatprep.subr.bf16.mxu0 0
  %3887 = vmatpush1.bf16.msra.mxu0 %v2464
  %3888 = vmatprep.subr.bf16.mxu0 0
  %3889 = vmatpush1.bf16.msra.mxu0 %v2477
  %3890 = vmatprep.subr.bf16.mxu0 0
  %3891 = vmatpush1.bf16.msra.mxu0 0
  %3892 = vmatprep.subr.bf16.mxu0 0
  %3893 = vmatpush1.bf16.msra.mxu0 0
  %3894 = vmatprep.subr.bf16.mxu0 0
  %3895 = vmatpush1.bf16.msra.mxu0 0
  %3896 = vmatprep.subr.bf16.mxu0 0
  %3897 = vmatpush1.bf16.msra.mxu0 0
  %3898 = vmatprep.subr.bf16.mxu0 0
  %3899 = vmatpush1.bf16.msra.mxu0 0
  %3900 = vmatprep.subr.bf16.mxu0 0
  %3901 = vmatpush1.bf16.msra.mxu0 0
  %3902 = vmatprep.subr.bf16.mxu0 0
  %3903 = vmatpush1.bf16.msra.mxu0 0
  %3904 = vmatprep.subr.bf16.mxu0 0
  %3905 = vmatpush1.bf16.msra.mxu0 0
  %3906 = vmatprep.subr.bf16.mxu0 0
  %3907 = vmatpush1.bf16.msra.mxu0 0
  %3908 = vmatprep.subr.bf16.mxu0 0
  %3909 = vmatpush1.bf16.msra.mxu0 0
  %3910 = vmatprep.subr.bf16.mxu0 0
  %3911 = vmatpush1.bf16.msra.mxu0 0
  %3912 = vmatprep.subr.bf16.mxu0 0
  %3913 = vmatpush1.bf16.msra.mxu0 0
  %3914 = vmatprep.subr.bf16.mxu0 0
  %3915 = vmatpush1.bf16.msra.mxu0 0
  %3916 = vmatprep.subr.bf16.mxu0 0
  %3917 = vmatpush1.bf16.msra.mxu0 0
  %3918 = vmatprep.mubr.bf16.mxu0 0
  %3919 = vmatmul.mubr.bf16.gmra.mrb[0].mxu0 %v3884
  %v3920 = vpop.f32.mrb[0].mxu0
  %v3921 = vadd.f32 %v3592, %v3920
  %v3922 = vpop.f32.mrb[0].mxu0
  %v3923 = vpop.f32.mrb[0].mxu0
  %v3924 = vadd.f32 %v3596, %v3923
  %v3925 = vpop.f32.mrb[0].mxu0
  %3926 = vdwg.mxu0
  %v3927 = vmax.f32 %v3921, 0.0
  %v3928 = vmax.f32 %v3924, 0.0
  %v3929 = vpack.c.bf16 %v3928, %v3927
  %3930 = vmatprep.subr.bf16.mxu0 %v3317
  %3931 = vmatpush1.bf16.msra.mxu0 %v3316
  %3932 = vmatprep.subr.bf16.mxu0 %v3321
  %3933 = vmatpush1.bf16.msra.mxu0 %v3320
  %3934 = vmatprep.subr.bf16.mxu0 %v3325
  %3935 = vmatpush1.bf16.msra.mxu0 %v3324
  %3936 = vmatprep.subr.bf16.mxu0 %v3329
  %3937 = vmatpush1.bf16.msra.mxu0 %v3328
  %3938 = vmatprep.subr.bf16.mxu0 %v3333
  %3939 = vmatpush1.bf16.msra.mxu0 %v3332
  %3940 = vmatprep.subr.bf16.mxu0 %v3337
  %3941 = vmatpush1.bf16.msra.mxu0 %v3336
  %3942 = vmatprep.subr.bf16.mxu0 %v3341
  %3943 = vmatpush1.bf16.msra.mxu0 %v3340
  %3944 = vmatprep.subr.bf16.mxu0 %v3345
  %3945 = vmatpush1.bf16.msra.mxu0 %v3344
  %3946 = vmatprep.subr.bf16.mxu0 0
  %3947 = vmatpush1.bf16.msra.mxu0 0
  %3948 = vmatprep.subr.bf16.mxu0 0
  %3949 = vmatpush1.bf16.msra.mxu0 0
  %3950 = vmatprep.subr.bf16.mxu0 0
  %3951 = vmatpush1.bf16.msra.mxu0 0
  %3952 = vmatprep.subr.bf16.mxu0 0
  %3953 = vmatpush1.bf16.msra.mxu0 0
  %3954 = vmatprep.subr.bf16.mxu0 0
  %3955 = vmatpush1.bf16.msra.mxu0 0
  %3956 = vmatprep.subr.bf16.mxu0 0
  %3957 = vmatpush1.bf16.msra.mxu0 0
  %3958 = vmatprep.subr.bf16.mxu0 0
  %3959 = vmatpush1.bf16.msra.mxu0 0
  %3960 = vmatprep.subr.bf16.mxu0 0
  %3961 = vmatpush1.bf16.msra.mxu0 0
  %3962 = vmatprep.mubr.bf16.mxu0 0
  %3963 = vmatmul.mubr.bf16.gmra.mrb[0].mxu0 %v3929
  %v3964 = vpop.f32.mrb[0].mxu0
  %v3965 = vadd.f32 0.0, %v3964
  %v3966 = vpop.f32.mrb[0].mxu0
  %v3967 = vadd.f32 0.0, %v3966
  %v3968 = vpop.f32.mrb[0].mxu0
  %v3969 = vadd.f32 0.0, %v3968
  %v3970 = vpop.f32.mrb[0].mxu0
  %v3971 = vadd.f32 0.0, %v3970
  %3972 = vdwg.mxu0
  %3973 = vmatprep.subr.bf16.mxu0 %v3319
  %3974 = vmatpush1.bf16.msra.mxu0 %v3318
  %3975 = vmatprep.subr.bf16.mxu0 %v3323
  %3976 = vmatpush1.bf16.msra.mxu0 %v3322
  %3977 = vmatprep.subr.bf16.mxu0 %v3327
  %3978 = vmatpush1.bf16.msra.mxu0 %v3326
  %3979 = vmatprep.subr.bf16.mxu0 %v3331
  %3980 = vmatpush1.bf16.msra.mxu0 %v3330
  %3981 = vmatprep.subr.bf16.mxu0 %v3335
  %3982 = vmatpush1.bf16.msra.mxu0 %v3334
  %3983 = vmatprep.subr.bf16.mxu0 %v3339
  %3984 = vmatpush1.bf16.msra.mxu0 %v3338
  %3985 = vmatprep.subr.bf16.mxu0 %v3343
  %3986 = vmatpush1.bf16.msra.mxu0 %v3342
  %3987 = vmatprep.subr.bf16.mxu0 %v3347
  %3988 = vmatpush1.bf16.msra.mxu0 %v3346
  %3989 = vmatprep.subr.bf16.mxu0 0
  %3990 = vmatpush1.bf16.msra.mxu0 0
  %3991 = vmatprep.subr.bf16.mxu0 0
  %3992 = vmatpush1.bf16.msra.mxu0 0
  %3993 = vmatprep.subr.bf16.mxu0 0
  %3994 = vmatpush1.bf16.msra.mxu0 0
  %3995 = vmatprep.subr.bf16.mxu0 0
  %3996 = vmatpush1.bf16.msra.mxu0 0
  %3997 = vmatprep.subr.bf16.mxu0 0
  %3998 = vmatpush1.bf16.msra.mxu0 0
  %3999 = vmatprep.subr.bf16.mxu0 0
  %4000 = vmatpush1.bf16.msra.mxu0 0
  %4001 = vmatprep.subr.bf16.mxu0 0
  %4002 = vmatpush1.bf16.msra.mxu0 0
  %4003 = vmatprep.subr.bf16.mxu0 0
  %4004 = vmatpush1.bf16.msra.mxu0 0
  %4005 = vmatprep.mubr.bf16.mxu0 0
  %4006 = vmatmul.mubr.bf16.gmra.mrb[0].mxu0 %v3929
  %v4007 = vpop.f32.mrb[0].mxu0
  %v4008 = vadd.f32 0.0, %v4007
  %v4009 = vpop.f32.mrb[0].mxu0
  %v4010 = vadd.f32 0.0, %v4009
  %v4011 = vpop.f32.mrb[0].mxu0
  %v4012 = vadd.f32 0.0, %v4011
  %v4013 = vpop.f32.mrb[0].mxu0
  %v4014 = vadd.f32 0.0, %v4013
  %4015 = vdwg.mxu0
  %v4016 = vadd.f32 %v3825, %v3965
  %v4017 = vadd.f32 %v3827, %v3967
  %v4018 = vadd.f32 %v3868, %v4008
  %v4019 = vadd.f32 %v3870, %v4010
  %v4020 = vadd.f32 %v3829, %v3969
  %v4021 = vadd.f32 %v3831, %v3971
  %v4022 = vadd.f32 %v3872, %v4012
  %v4023 = vadd.f32 %v3874, %v4014
  %v4024 = vld [vmem:[%s1 + $0xe0] sm:$0xf]
  %v4025 = vld [vmem:[%s1 + $0xe8] sm:$0xf]
  %v4028 = vunpack.c.l.b16 %v4024
  %v4029 = vunpack.c.l.b16 %v4025
  %v4030 = vpack.c.b16 %v4029, %v4028
  %v4032 = vsel %vm2370, %v4030, 0
  %4034 = vmatprep.subr.bf16.mxu0 0
  %4035 = vmatpush1.bf16.msra.mxu0 %v2464
  %4036 = vmatprep.subr.bf16.mxu0 0
  %4037 = vmatpush1.bf16.msra.mxu0 %v2471
  %4038 = vmatprep.subr.bf16.mxu0 0
  %4039 = vmatpush1.bf16.msra.mxu0 %v2477
  %4040 = vmatprep.subr.bf16.mxu0 0
  %4041 = vmatpush1.bf16.msra.mxu0 %v2483
  %4042 = vmatprep.subr.bf16.mxu0 0
  %4043 = vmatpush1.bf16.msra.mxu0 0
  %4044 = vmatprep.subr.bf16.mxu0 0
  %4045 = vmatpush1.bf16.msra.mxu0 0
  %4046 = vmatprep.subr.bf16.mxu0 0
  %4047 = vmatpush1.bf16.msra.mxu0 0
  %4048 = vmatprep.subr.bf16.mxu0 0
  %4049 = vmatpush1.bf16.msra.mxu0 0
  %4050 = vmatprep.subr.bf16.mxu0 0
  %4051 = vmatpush1.bf16.msra.mxu0 0
  %4052 = vmatprep.subr.bf16.mxu0 0
  %4053 = vmatpush1.bf16.msra.mxu0 0
  %4054 = vmatprep.subr.bf16.mxu0 0
  %4055 = vmatpush1.bf16.msra.mxu0 0
  %4056 = vmatprep.subr.bf16.mxu0 0
  %4057 = vmatpush1.bf16.msra.mxu0 0
  %4058 = vmatprep.subr.bf16.mxu0 0
  %4059 = vmatpush1.bf16.msra.mxu0 0
  %4060 = vmatprep.subr.bf16.mxu0 0
  %4061 = vmatpush1.bf16.msra.mxu0 0
  %4062 = vmatprep.subr.bf16.mxu0 0
  %4063 = vmatpush1.bf16.msra.mxu0 0
  %4064 = vmatprep.subr.bf16.mxu0 0
  %4065 = vmatpush1.bf16.msra.mxu0 0
  %4066 = vmatprep.mubr.bf16.mxu0 0
  %4067 = vmatmul.mubr.bf16.gmra.mrb[0].mxu0 %v4032
  %v4068 = vpop.f32.mrb[0].mxu0
  %v4069 = vadd.f32 %v3592, %v4068
  %v4070 = vpop.f32.mrb[0].mxu0
  %v4071 = vpop.f32.mrb[0].mxu0
  %v4072 = vadd.f32 %v3596, %v4071
  %v4073 = vpop.f32.mrb[0].mxu0
  %4074 = vdwg.mxu0
  %v4075 = vmax.f32 %v4069, 0.0
  %v4076 = vmax.f32 %v4072, 0.0
  %v4077 = vpack.c.bf16 %v4076, %v4075
  %4078 = vmatprep.subr.bf16.mxu0 %v3557
  %4079 = vmatpush1.bf16.msra.mxu0 %v3556
  %4080 = vmatprep.subr.bf16.mxu0 %v3561
  %4081 = vmatpush1.bf16.msra.mxu0 %v3560
  %4082 = vmatprep.subr.bf16.mxu0 %v3565
  %4083 = vmatpush1.bf16.msra.mxu0 %v3564
  %4084 = vmatprep.subr.bf16.mxu0 %v3569
  %4085 = vmatpush1.bf16.msra.mxu0 %v3568
  %4086 = vmatprep.subr.bf16.mxu0 %v3573
  %4087 = vmatpush1.bf16.msra.mxu0 %v3572
  %4088 = vmatprep.subr.bf16.mxu0 %v3577
  %4089 = vmatpush1.bf16.msra.mxu0 %v3576
  %4090 = vmatprep.subr.bf16.mxu0 %v3581
  %4091 = vmatpush1.bf16.msra.mxu0 %v3580
  %4092 = vmatprep.subr.bf16.mxu0 %v3585
  %4093 = vmatpush1.bf16.msra.mxu0 %v3584
  %4094 = vmatprep.subr.bf16.mxu0 0
  %4095 = vmatpush1.bf16.msra.mxu0 0
  %4096 = vmatprep.subr.bf16.mxu0 0
  %4097 = vmatpush1.bf16.msra.mxu0 0
  %4098 = vmatprep.subr.bf16.mxu0 0
  %4099 = vmatpush1.bf16.msra.mxu0 0
  %4100 = vmatprep.subr.bf16.mxu0 0
  %4101 = vmatpush1.bf16.msra.mxu0 0
  %4102 = vmatprep.subr.bf16.mxu0 0
  %4103 = vmatpush1.bf16.msra.mxu0 0
  %4104 = vmatprep.subr.bf16.mxu0 0
  %4105 = vmatpush1.bf16.msra.mxu0 0
  %4106 = vmatprep.subr.bf16.mxu0 0
  %4107 = vmatpush1.bf16.msra.mxu0 0
  %4108 = vmatprep.subr.bf16.mxu0 0
  %4109 = vmatpush1.bf16.msra.mxu0 0
  %4110 = vmatprep.mubr.bf16.mxu0 0
  %4111 = vmatmul.mubr.bf16.gmra.mrb[0].mxu0 %v4077
  %v4112 = vpop.f32.mrb[0].mxu0
  %v4113 = vadd.f32 0.0, %v4112
  %v4114 = vpop.f32.mrb[0].mxu0
  %v4115 = vadd.f32 0.0, %v4114
  %v4116 = vpop.f32.mrb[0].mxu0
  %v4117 = vadd.f32 0.0, %v4116
  %v4118 = vpop.f32.mrb[0].mxu0
  %v4119 = vadd.f32 0.0, %v4118
  %4120 = vdwg.mxu0
  %4121 = vmatprep.subr.bf16.mxu0 %v3559
  %4122 = vmatpush1.bf16.msra.mxu0 %v3558
  %4123 = vmatprep.subr.bf16.mxu0 %v3563
  %4124 = vmatpush1.bf16.msra.mxu0 %v3562
  %4125 = vmatprep.subr.bf16.mxu0 %v3567
  %4126 = vmatpush1.bf16.msra.mxu0 %v3566
  %4127 = vmatprep.subr.bf16.mxu0 %v3571
  %4128 = vmatpush1.bf16.msra.mxu0 %v3570
  %4129 = vmatprep.subr.bf16.mxu0 %v3575
  %4130 = vmatpush1.bf16.msra.mxu0 %v3574
  %4131 = vmatprep.subr.bf16.mxu0 %v3579
  %4132 = vmatpush1.bf16.msra.mxu0 %v3578
  %4133 = vmatprep.subr.bf16.mxu0 %v3583
  %4134 = vmatpush1.bf16.msra.mxu0 %v3582
  %4135 = vmatprep.subr.bf16.mxu0 %v3587
  %4136 = vmatpush1.bf16.msra.mxu0 %v3586
  %4137 = vmatprep.subr.bf16.mxu0 0
  %4138 = vmatpush1.bf16.msra.mxu0 0
  %4139 = vmatprep.subr.bf16.mxu0 0
  %4140 = vmatpush1.bf16.msra.mxu0 0
  %4141 = vmatprep.subr.bf16.mxu0 0
  %4142 = vmatpush1.bf16.msra.mxu0 0
  %4143 = vmatprep.subr.bf16.mxu0 0
  %4144 = vmatpush1.bf16.msra.mxu0 0
  %4145 = vmatprep.subr.bf16.mxu0 0
  %4146 = vmatpush1.bf16.msra.mxu0 0
  %4147 = vmatprep.subr.bf16.mxu0 0
  %4148 = vmatpush1.bf16.msra.mxu0 0
  %4149 = vmatprep.subr.bf16.mxu0 0
  %4150 = vmatpush1.bf16.msra.mxu0 0
  %4151 = vmatprep.subr.bf16.mxu0 0
  %4152 = vmatpush1.bf16.msra.mxu0 0
  %4153 = vmatprep.mubr.bf16.mxu0 0
  %4154 = vmatmul.mubr.bf16.gmra.mrb[0].mxu0 %v4077
  %v4155 = vpop.f32.mrb[0].mxu0
  %v4156 = vadd.f32 0.0, %v4155
  %v4157 = vpop.f32.mrb[0].mxu0
  %v4158 = vadd.f32 0.0, %v4157
  %v4159 = vpop.f32.mrb[0].mxu0
  %v4160 = vadd.f32 0.0, %v4159
  %v4161 = vpop.f32.mrb[0].mxu0
  %v4162 = vadd.f32 0.0, %v4161
  %4163 = vdwg.mxu0
  %v4164 = vadd.f32 %v4016, %v4113
  %v4165 = vadd.f32 %v4017, %v4115
  %v4166 = vadd.f32 %v4018, %v4156
  %v4167 = vadd.f32 %v4019, %v4158
  %v4168 = vadd.f32 %v4020, %v4117
  %v4169 = vadd.f32 %v4021, %v4119
  %v4170 = vadd.f32 %v4022, %v4160
  %v4171 = vadd.f32 %v4023, %v4162
  %v4172 = vpack.c.bf16 %v4168, %v4164
  %v4173 = vpack.c.bf16 %v4169, %v4165
  %v4174 = vpack.c.bf16 %v4170, %v4166
  %v4175 = vpack.c.bf16 %v4171, %v4167
  %4180 = vrot.lane.b32.xlu0 %v4172, 17
  %v4181 = vpop.permute.xlu0 %4180
  %4182 = vrot.lane.b32.xlu0 %v4173, 17
  %v4183 = vpop.permute.xlu0 %4182
  %4184 = vrot.lane.b32.xlu0 %v4174, 17
  %v4185 = vpop.permute.xlu0 %4184
  %4186 = vrot.lane.b32.xlu0 %v4175, 17
  %v4187 = vpop.permute.xlu0 %4186
  %v4188 = vsel %vm190, %v4181, %v4183
  %v4189 = vsel %vm190, %v4183, %v4185
  %v4190 = vsel %vm190, %v4185, %v4187
  %v4195 = vsel %vm197, 0, %v4181
  %v4197 = vmul.bf16 %v4195, %v66
  %v4198 = vmul.bf16 %v4188, %v67
  %v4199 = vmul.bf16 %v4189, %v68
  %v4200 = vmul.bf16 %v4190, %v69
  %4201 = vrot.lane.b32.xlu0 %v4172, 16
  %v4202 = vpop.permute.xlu0 %4201
  %4203 = vrot.lane.b32.xlu0 %v4173, 16
  %v4204 = vpop.permute.xlu0 %4203
  %4205 = vrot.lane.b32.xlu0 %v4174, 16
  %v4206 = vpop.permute.xlu0 %4205
  %4207 = vrot.lane.b32.xlu0 %v4175, 16
  %v4208 = vpop.permute.xlu0 %4207
  %v4209 = vsel %vm214, %v4202, %v4204
  %v4210 = vsel %vm214, %v4204, %v4206
  %v4211 = vsel %vm214, %v4206, %v4208
  %v4216 = vsel %vm221, 0, %v4202
  %v4218 = vmul.bf16 %v4216, %v78
  %v4219 = vmul.bf16 %v4209, %v79
  %v4220 = vmul.bf16 %v4210, %v80
  %v4221 = vmul.bf16 %v4211, %v81
  %4222 = vrot.lane.b32.xlu0 %v4172, 15
  %v4223 = vpop.permute.xlu0 %4222
  %4224 = vrot.lane.b32.xlu0 %v4173, 15
  %v4225 = vpop.permute.xlu0 %4224
  %4226 = vrot.lane.b32.xlu0 %v4174, 15
  %v4227 = vpop.permute.xlu0 %4226
  %4228 = vrot.lane.b32.xlu0 %v4175, 15
  %v4229 = vpop.permute.xlu0 %4228
  %v4230 = vsel %vm237, %v4223, %v4225
  %v4231 = vsel %vm237, %v4225, %v4227
  %v4232 = vsel %vm237, %v4227, %v4229
  %v4237 = vsel %vm244, 0, %v4223
  %v4239 = vmul.bf16 %v4237, %v94
  %v4240 = vmul.bf16 %v4230, %v95
  %v4241 = vmul.bf16 %v4231, %v96
  %v4242 = vmul.bf16 %v4232, %v97
  %4243 = vrot.lane.b32.xlu0 %v4172, 1
  %v4244 = vpop.permute.xlu0 %4243
  %4245 = vrot.lane.b32.xlu0 %v4173, 1
  %v4246 = vpop.permute.xlu0 %4245
  %4247 = vrot.lane.b32.xlu0 %v4174, 1
  %v4248 = vpop.permute.xlu0 %4247
  %4249 = vrot.lane.b32.xlu0 %v4175, 1
  %v4250 = vpop.permute.xlu0 %4249
  %v4251 = vsel %vm260, %v4244, %v4246
  %v4252 = vsel %vm260, %v4246, %v4248
  %v4253 = vsel %vm260, %v4248, %v4250
  %v4258 = vsel %vm267, 0, %v4244
  %v4260 = vmul.bf16 %v4258, %v106
  %v4261 = vmul.bf16 %v4251, %v107
  %v4262 = vmul.bf16 %v4252, %v108
  %v4263 = vmul.bf16 %v4253, %v109
  %4264 = vrot.lane.b32.xlu0 %v4172, 127
  %v4265 = vpop.permute.xlu0 %4264
  %4266 = vrot.lane.b32.xlu0 %v4173, 127
  %v4267 = vpop.permute.xlu0 %4266
  %4268 = vrot.lane.b32.xlu0 %v4174, 127
  %v4269 = vpop.permute.xlu0 %4268
  %4270 = vrot.lane.b32.xlu0 %v4175, 127
  %v4271 = vpop.permute.xlu0 %4270
  %v4272 = vsel %vm283, %v4265, %v4267
  %v4273 = vsel %vm283, %v4267, %v4269
  %v4274 = vsel %vm283, %v4269, %v4271
  %v4279 = vsel %vm290, %v4271, 0
  %v4281 = vmul.bf16 %v4272, %v118
  %v4282 = vmul.bf16 %v4273, %v119
  %v4283 = vmul.bf16 %v4274, %v120
  %v4284 = vmul.bf16 %v4279, %v121
  %4285 = vrot.lane.b32.xlu0 %v4172, 113
  %v4286 = vpop.permute.xlu0 %4285
  %4287 = vrot.lane.b32.xlu0 %v4173, 113
  %v4288 = vpop.permute.xlu0 %4287
  %4289 = vrot.lane.b32.xlu0 %v4174, 113
  %v4290 = vpop.permute.xlu0 %4289
  %4291 = vrot.lane.b32.xlu0 %v4175, 113
  %v4292 = vpop.permute.xlu0 %4291
  %v4293 = vsel %vm306, %v4286, %v4288
  %v4294 = vsel %vm306, %v4288, %v4290
  %v4295 = vsel %vm306, %v4290, %v4292
  %v4300 = vsel %vm313, %v4292, 0
  %v4302 = vmul.bf16 %v4293, %v134
  %v4303 = vmul.bf16 %v4294, %v135
  %v4304 = vmul.bf16 %v4295, %v136
  %v4305 = vmul.bf16 %v4300, %v137
  %4306 = vrot.lane.b32.xlu0 %v4172, 112
  %v4307 = vpop.permute.xlu0 %4306
  %4308 = vrot.lane.b32.xlu0 %v4173, 112
  %v4309 = vpop.permute.xlu0 %4308
  %4310 = vrot.lane.b32.xlu0 %v4174, 112
  %v4311 = vpop.permute.xlu0 %4310
  %4312 = vrot.lane.b32.xlu0 %v4175, 112
  %v4313 = vpop.permute.xlu0 %4312
  %v4314 = vsel %vm329, %v4307, %v4309
  %v4315 = vsel %vm329, %v4309, %v4311
  %v4316 = vsel %vm329, %v4311, %v4313
  %v4321 = vsel %vm336, %v4313, 0
  %v4323 = vmul.bf16 %v4314, %v146
  %v4324 = vmul.bf16 %v4315, %v147
  %v4325 = vmul.bf16 %v4316, %v148
  %v4326 = vmul.bf16 %v4321, %v149
  %4327 = vrot.lane.b32.xlu0 %v4172, 111
  %v4328 = vpop.permute.xlu0 %4327
  %4329 = vrot.lane.b32.xlu0 %v4173, 111
  %v4330 = vpop.permute.xlu0 %4329
  %4331 = vrot.lane.b32.xlu0 %v4174, 111
  %v4332 = vpop.permute.xlu0 %4331
  %4333 = vrot.lane.b32.xlu0 %v4175, 111
  %v4334 = vpop.permute.xlu0 %4333
  %v4335 = vsel %vm352, %v4328, %v4330
  %v4336 = vsel %vm352, %v4330, %v4332
  %v4337 = vsel %vm352, %v4332, %v4334
  %v4342 = vsel %vm359, %v4334, 0
  %v4344 = vmul.bf16 %v4335, %v162
  %v4345 = vmul.bf16 %v4336, %v163
  %v4346 = vmul.bf16 %v4337, %v164
  %v4347 = vmul.bf16 %v4342, %v165
  %v4348 = vld [vmem:[%s1 + $0xf0] sm:$0xff]
  %v4349 = vld [vmem:[%s1 + $0xf8] sm:$0xff]
  %4350 = vset.pattern.permute.xlu0 9
  %4351 = vperm.xlu0 %4350, %v19
  %v4352 = vpop.permute.xlu0 %4351
  %4354 = vset.pattern.permute.xlu0 9
  %4355 = vperm.xlu0 %4354, %v20
  %v4356 = vpop.permute.xlu0 %4355
  %v4360 = vunpack.c.l.b16 %v4348
  %v4361 = vunpack.c.h.b16 %v4348
  %v4362 = vunpack.c.l.b16 %v4349
  %v4363 = vunpack.c.h.b16 %v4349
  %v4364 = vpack.c.b16 %v4362, %v4360
  %v4365 = vpack.c.b16 %v4363, %v4361
  %v4368 = vsel %vm221, %v4365, 0
  %4370 = vmatprep.subr.bf16.mxu0 %v4198
  %4371 = vmatpush1.bf16.msra.mxu0 %v4197
  %4372 = vmatprep.subr.bf16.mxu0 %v4219
  %4373 = vmatpush1.bf16.msra.mxu0 %v4218
  %4374 = vmatprep.subr.bf16.mxu0 %v4240
  %4375 = vmatpush1.bf16.msra.mxu0 %v4239
  %4376 = vmatprep.subr.bf16.mxu0 %v4261
  %4377 = vmatpush1.bf16.msra.mxu0 %v4260
  %4378 = vmatprep.subr.bf16.mxu0 %v4173
  %4379 = vmatpush1.bf16.msra.mxu0 %v4172
  %4380 = vmatprep.subr.bf16.mxu0 %v4282
  %4381 = vmatpush1.bf16.msra.mxu0 %v4281
  %4382 = vmatprep.subr.bf16.mxu0 %v4303
  %4383 = vmatpush1.bf16.msra.mxu0 %v4302
  %4384 = vmatprep.subr.bf16.mxu0 %v4324
  %4385 = vmatpush1.bf16.msra.mxu0 %v4323
  %4386 = vmatprep.subr.bf16.mxu0 %v4345
  %4387 = vmatpush1.bf16.msra.mxu0 %v4344
  %4388 = vmatprep.subr.bf16.mxu0 0
  %4389 = vmatpush1.bf16.msra.mxu0 0
  %4390 = vmatprep.subr.bf16.mxu0 0
  %4391 = vmatpush1.bf16.msra.mxu0 0
  %4392 = vmatprep.subr.bf16.mxu0 0
  %4393 = vmatpush1.bf16.msra.mxu0 0
  %4394 = vmatprep.subr.bf16.mxu0 0
  %4395 = vmatpush1.bf16.msra.mxu0 0
  %4396 = vmatprep.subr.bf16.mxu0 0
  %4397 = vmatpush1.bf16.msra.mxu0 0
  %4398 = vmatprep.subr.bf16.mxu0 0
  %4399 = vmatpush1.bf16.msra.mxu0 0
  %4400 = vmatprep.subr.bf16.mxu0 0
  %4401 = vmatpush1.bf16.msra.mxu0 0
  %4402 = vmatprep.mubr.bf16.mxu0 %v4368
  %4403 = vmatmul.mubr.bf16.gmra.mrb[0].mxu0 %v4364
  %v4404 = vpop.f32.mrb[0].mxu0
  %v4405 = vadd.f32 %v4352, %v4404
  %v4406 = vpop.f32.mrb[0].mxu0
  %v4407 = vadd.f32 %v4352, %v4406
  %v4408 = vpop.f32.mrb[0].mxu0
  %v4409 = vadd.f32 %v4356, %v4408
  %v4410 = vpop.f32.mrb[0].mxu0
  %v4411 = vadd.f32 %v4356, %v4410
  %4412 = vdwg.mxu0
  %4413 = vmatprep.subr.bf16.mxu0 %v4200
  %4414 = vmatpush1.bf16.msra.mxu0 %v4199
  %4415 = vmatprep.subr.bf16.mxu0 %v4221
  %4416 = vmatpush1.bf16.msra.mxu0 %v4220
  %4417 = vmatprep.subr.bf16.mxu0 %v4242
  %4418 = vmatpush1.bf16.msra.mxu0 %v4241
  %4419 = vmatprep.subr.bf16.mxu0 %v4263
  %4420 = vmatpush1.bf16.msra.mxu0 %v4262
  %4421 = vmatprep.subr.bf16.mxu0 %v4175
  %4422 = vmatpush1.bf16.msra.mxu0 %v4174
  %4423 = vmatprep.subr.bf16.mxu0 %v4284
  %4424 = vmatpush1.bf16.msra.mxu0 %v4283
  %4425 = vmatprep.subr.bf16.mxu0 %v4305
  %4426 = vmatpush1.bf16.msra.mxu0 %v4304
  %4427 = vmatprep.subr.bf16.mxu0 %v4326
  %4428 = vmatpush1.bf16.msra.mxu0 %v4325
  %4429 = vmatprep.subr.bf16.mxu0 %v4347
  %4430 = vmatpush1.bf16.msra.mxu0 %v4346
  %4431 = vmatprep.subr.bf16.mxu0 0
  %4432 = vmatpush1.bf16.msra.mxu0 0
  %4433 = vmatprep.subr.bf16.mxu0 0
  %4434 = vmatpush1.bf16.msra.mxu0 0
  %4435 = vmatprep.subr.bf16.mxu0 0
  %4436 = vmatpush1.bf16.msra.mxu0 0
  %4437 = vmatprep.subr.bf16.mxu0 0
  %4438 = vmatpush1.bf16.msra.mxu0 0
  %4439 = vmatprep.subr.bf16.mxu0 0
  %4440 = vmatpush1.bf16.msra.mxu0 0
  %4441 = vmatprep.subr.bf16.mxu0 0
  %4442 = vmatpush1.bf16.msra.mxu0 0
  %4443 = vmatprep.subr.bf16.mxu0 0
  %4444 = vmatpush1.bf16.msra.mxu0 0
  %4445 = vmatprep.mubr.bf16.mxu0 %v4368
  %4446 = vmatmul.mubr.bf16.gmra.mrb[0].mxu0 %v4364
  %v4447 = vpop.f32.mrb[0].mxu0
  %v4448 = vadd.f32 %v4352, %v4447
  %v4449 = vpop.f32.mrb[0].mxu0
  %v4450 = vadd.f32 %v4352, %v4449
  %v4451 = vpop.f32.mrb[0].mxu0
  %v4452 = vadd.f32 %v4356, %v4451
  %v4453 = vpop.f32.mrb[0].mxu0
  %v4454 = vadd.f32 %v4356, %v4453
  %4455 = vdwg.mxu0
  %4456 = vst [vmem:[%s3] sm:$0xff] %v4405
  %4457 = vst [vmem:[%s3 + $0x8] sm:$0xff] %v4407
  %4458 = vst [vmem:[%s3 + $0x10] sm:$0xff] %v4448
  %4459 = vst [vmem:[%s3 + $0x18] sm:$0xff] %v4450
  %4460 = vst [vmem:[%s3 + $0x20] sm:$0xff] %v4409
  %4461 = vst [vmem:[%s3 + $0x28] sm:$0xff] %v4411
  %4462 = vst [vmem:[%s3 + $0x30] sm:$0xff] %v4452
  %4463 = vst [vmem:[%s3 + $0x38] sm:$0xff] %v4454
  // Predicated region
  $region14: #{encoder_decoder_resnet_forward.1} parent=0 // pred_check
    _
  $region15: #{encoder_decoder_resnet_forward.1} parent=0 // pred_check_branch
    %4465 = sbr.rel (0) target = $region17
  $region16: #{encoder_decoder_resnet_forward.1} parent=0 // pred_region
    _
  $region17: #{encoder_decoder_resnet_forward.1} parent=0 // pred_fallthru
    _
  // Predicated region
  $region18: #{encoder_decoder_resnet_forward.1} parent=0 // pred_check
    _
  $region19: #{encoder_decoder_resnet_forward.1} parent=0 // pred_check_branch
    %4467 = sbr.rel (0) target = $region21
  $region20: #{encoder_decoder_resnet_forward.1} parent=0 // pred_region
    _
  $region21: #{encoder_decoder_resnet_forward.1} parent=0 // pred_fallthru
    _

</llo_original>
